<compile_context>
chip_gen: v7x
topology: tpu7x:2x2x1
jax: 0.10.0
libtpu: 0.0.40
codegen_flags: <defaults>
</compile_context>

<pallas_src>
import numpy as np
import jax
import jax.numpy as jnp
from jax.experimental import pallas as pl
from jax.experimental.pallas import tpu as pltpu

NEG_SLOPE = 0.01  # PyTorch nn.LeakyReLU default negative_slope


# ----------------------------------------------------------------------------
# Host-side weight preparation (done ONCE, outside the traced forward)
# ----------------------------------------------------------------------------
def _hwio_from_convtranspose(w_t):
    """PyTorch ConvTranspose2d weight (Cin, Cout, 3, 3) -> equivalent forward-conv
    kernel in HWIO layout (spatially flipped)."""
    w = np.asarray(w_t, np.float32)
    return np.transpose(w[:, :, ::-1, ::-1], (2, 3, 0, 1))  # (3, 3, Cin, Cout)


def _hwio_from_conv(w_c):
    """PyTorch Conv2d weight (Cout, Cin, 3, 3) -> HWIO."""
    return np.transpose(np.asarray(w_c, np.float32), (2, 3, 1, 0))


def _build_w_toeplitz(w_hwio, w_in, stride):
    """Fold the kw taps, W-padding (=1) and W-dilation (stride) of a 3x3 conv on a
    (possibly dilated) input into 3 banded matrices T[kh] of shape
    (W_in*Cin, W_out*Cout) so that
        out[h_out, w_out*Cout + co] =
            sum_kh  Adp[h_out + kh, :] @ T[kh]
    where Adp is the H-dilated & H-padded activation with x[i] at row i*stride+1.
    """
    kH, kW, cin, cout = w_hwio.shape
    assert kH == 3 and kW == 3
    w_out_sz = (w_in - 1) * stride + 1
    T = np.zeros((3, w_in * cin, w_out_sz * cout), np.float32)
    w = np.asarray(w_hwio, np.float32)
    for w_o in range(w_out_sz):
        for kw in range(kW):
            v = w_o + kw - 1          # column in the dilated (un-padded) W axis
            if v < 0 or v % stride != 0:
                continue
            w_i = v // stride
            if w_i >= w_in:
                continue
            T[:, w_i * cin:(w_i + 1) * cin, w_o * cout:(w_o + 1) * cout] = w[:, kw, :, :]
    return T


def prepare_params(params, latent_hw):
    """Pack all decoder weights for the fused Pallas kernel."""
    _, W = latent_hw
    packed = {"strides": [], "layers": [], "out_channels": int(np.asarray(params["b_final"]).shape[0])}

    def add_layer(w_hwio, b, w_in, stride):
        T = _build_w_toeplitz(w_hwio, w_in, stride)
        w_out = (w_in - 1) * stride + 1
        b_flat = np.tile(np.asarray(b, np.float32), w_out).reshape(1, -1)
        packed["layers"].append((jnp.asarray(T), jnp.asarray(b_flat)))
        return w_out

    for blk in params["blocks"]:
        s = int(blk["stride"])
        packed["strides"].append(s)
        W = add_layer(_hwio_from_convtranspose(blk["wt"]), blk["bt"], W, s)
        W = add_layer(_hwio_from_conv(blk["res"]["w1"]), blk["res"]["b1"], W, 1)
        W = add_layer(_hwio_from_conv(blk["res"]["w2"]), blk["res"]["b2"], W, 1)
    add_layer(_hwio_from_convtranspose(params["w_final"]), params["b_final"], W, 1)
    return packed


# ----------------------------------------------------------------------------
# Fused decoder Pallas kernel
# ----------------------------------------------------------------------------
def _make_decoder_kernel(block_strides):
    n_blocks = len(block_strides)

    def dilate_pad_rows(A, stride):
        """H-direction: insert (stride-1) zero rows between rows and pad 1 row top
        and bottom.  Pure sublane concatenation -- no reshapes."""
        zrow = jnp.zeros((1, A.shape[1]), jnp.float32)
        if stride == 1:
            pieces = [zrow, A, zrow]
        else:
            H = A.shape[0]
            pieces = [zrow]
            for i in range(H):
                pieces.append(A[i:i + 1])
                if i < H - 1:
                    pieces.extend([zrow] * (stride - 1))
            pieces.append(zrow)
        return jnp.concatenate(pieces, axis=0)   # ((H_in-1)*stride + 3, W_in*Cin)

    def conv_layer(A, T_ref, b_ref, stride, act, residual=None):
        """A: (H_in, W_in*Cin)  ->  (H_out, W_out*Cout)."""
        H_in = A.shape[0]
        H_out = (H_in - 1) * stride + 1
        Adp = dilate_pad_rows(A, stride)                     # (H_out + 2, W_in*Cin)
        acc = jnp.zeros((H_out, T_ref.shape[2]), jnp.float32)
        for kh in range(3):                                  # 3 fat matmuls per conv
            acc = acc + jnp.dot(Adp[kh:kh + H_out], T_ref[kh],
                                preferred_element_type=jnp.float32)
        acc = acc + b_ref[...]
        if residual is not None:
            acc = acc + residual
        if act == "leaky":
            acc = jnp.where(acc >= 0.0, acc, acc * NEG_SLOPE)
        elif act == "sigmoid":
            acc = 1.0 / (1.0 + jnp.exp(-acc))                # exp on EUP; one tiny divide
        return acc

    def kernel(x_ref, *refs):
        out_ref = refs[-1]
        wrefs = refs[:-1]

        A = x_ref[0].astype(jnp.float32)                     # (H0, W0*C0)
        wi = 0
        for b in range(n_blocks):
            s = block_strides[b]
            # ConvTranspose2d + LeakyReLU
            A = conv_layer(A, wrefs[wi], wrefs[wi + 1], s, "leaky"); wi += 2
            # ResidualBlock: conv1 + leaky, conv2 + residual-add + leaky (fused)
            h = conv_layer(A, wrefs[wi], wrefs[wi + 1], 1, "leaky"); wi += 2
            A = conv_layer(h, wrefs[wi], wrefs[wi + 1], 1, "leaky", residual=A); wi += 2
        # final ConvTranspose2d(stride=1) + Sigmoid
        A = conv_layer(A, wrefs[wi], wrefs[wi + 1], 1, "sigmoid")
        out_ref[...] = A[None].astype(out_ref.dtype)

    return kernel


def _const_spec(shape):
    zeros = (0,) * len(shape)
    return pl.BlockSpec(tuple(shape), lambda n: zeros)


def decoder_forward_pallas(latent_state, packed):
    """latent_state: NCHW (or CHW).  Returns NCHW, matching the PyTorch module."""
    if latent_state.ndim == 3:
        latent_state = latent_state[None]
    lat = jnp.transpose(latent_state, (0, 2, 3, 1)).astype(jnp.float32)  # NCHW -> NHWC
    N, H0, W0, C0 = lat.shape
    x = lat.reshape(N, H0, W0 * C0)                                      # lane-dense 2-D per image

    strides = tuple(packed["strides"])
    Hf, Wf = H0, W0
    for s in strides:
        Hf, Wf = (Hf - 1) * s + 1, (Wf - 1) * s + 1
    Cf = packed["out_channels"]

    flat_weights = []
    in_specs = [pl.BlockSpec((1, H0, W0 * C0), lambda n: (n, 0, 0))]
    for T, b in packed["layers"]:
        flat_weights += [T, b]
        in_specs.append(_const_spec(T.shape))
        in_specs.append(_const_spec(b.shape))

    out = pl.pallas_call(
        _make_decoder_kernel(strides),
        out_shape=jax.ShapeDtypeStruct((N, Hf, Wf * Cf), jnp.float32),
        grid=(N,),
        in_specs=in_specs,
        out_specs=pl.BlockSpec((1, Hf, Wf * Cf), lambda n: (n, 0, 0)),
        compiler_params=pltpu.CompilerParams(dimension_semantics=("parallel",)),
    )(x, *flat_weights)

    out = out.reshape(N, Hf, Wf, Cf)
    return jnp.transpose(out, (0, 3, 1, 2))                              # NHWC -> NCHW


# ----------------------------------------------------------------------------
# Pure-JAX (XLA) reference, directly from the un-packed PyTorch-layout params
# ----------------------------------------------------------------------------
def decoder_forward_ref(latent_state, params):
    if latent_state.ndim == 3:
        latent_state = latent_state[None]
    x = jnp.transpose(latent_state, (0, 2, 3, 1)).astype(jnp.float32)

    def conv(x, w_hwio, b, lhs_dilation, act, residual=None):
        out = jax.lax.conv_general_dilated(
            x, jnp.asarray(w_hwio), window_strides=(1, 1),
            padding=[(1, 1), (1, 1)], lhs_dilation=lhs_dilation,
            dimension_numbers=("NHWC", "HWIO", "NHWC"))
        out = out + jnp.asarray(b).reshape(1, 1, 1, -1)
        if residual is not None:
            out = out + residual
        if act == "leaky":
            out = jnp.where(out >= 0, out, out * NEG_SLOPE)
        elif act == "sigmoid":
            out = jax.nn.sigmoid(out)
        return out

    for blk in params["blocks"]:
        s = int(blk["stride"])
        x = conv(x, _hwio_from_convtranspose(blk["wt"]), blk["bt"], (s, s), "leaky")
        h = conv(x, _hwio_from_conv(blk["res"]["w1"]), blk["res"]["b1"], (1, 1), "leaky")
        x = conv(h, _hwio_from_conv(blk["res"]["w2"]), blk["res"]["b2"], (1, 1), "leaky",
                 residual=x)
    x = conv(x, _hwio_from_convtranspose(params["w_final"]), params["b_final"], (1, 1),
             "sigmoid")
    return jnp.transpose(x, (0, 3, 1, 2))


# ----------------------------------------------------------------------------
# Deterministic parameter initialization (shapes as in Decoder.__init__)
# ----------------------------------------------------------------------------
def init_params(key, latent_channels, cnn_net_arch, out_channels):
    blocks = []
    in_ch = latent_channels
    for out_ch, k, s, p in reversed(cnn_net_arch):
        assert k == 3 and p == 1, "kernel restricted to 3x3 / padding=1 variants"
        key, k1, k2, k3, k4, k5, k6 = jax.random.split(key, 7)
        blocks.append({
            "wt": 0.1 * jax.random.normal(k1, (in_ch, out_ch, 3, 3), jnp.float32),
            "bt": 0.1 * jax.random.normal(k2, (out_ch,), jnp.float32),
            "stride": s,
            "res": {
                "w1": 0.1 * jax.random.normal(k3, (out_ch, out_ch, 3, 3), jnp.float32),
                "b1": 0.1 * jax.random.normal(k4, (out_ch,), jnp.float32),
                "w2": 0.1 * jax.random.normal(k5, (out_ch, out_ch, 3, 3), jnp.float32),
                "b2": 0.1 * jax.random.normal(k6, (out_ch,), jnp.float32),
            },
        })
        in_ch = out_ch
    key, kf1, kf2 = jax.random.split(key, 3)
    return {
        "blocks": blocks,
        "w_final": 0.1 * jax.random.normal(kf1, (in_ch, out_channels, 3, 3), jnp.float32),
        "b_final": 0.1 * jax.random.normal(kf2, (out_channels,), jnp.float32),
    }


if __name__ == "__main__":
    key = jax.random.PRNGKey(0)
    batch = 2
    latent_shape = (8, 4, 4)                       # (C, H, W)
    out_channels = 3
    cnn_net_arch = [(6, 3, 1, 1), (12, 3, 2, 1)]   # (out_ch, kernel, stride, pad)

    key, kx, kp = jax.random.split(key, 3)
    latent = jax.random.normal(kx, (batch,) + latent_shape, jnp.float32)
    params = init_params(kp, latent_shape[0], cnn_net_arch, out_channels)

    packed = prepare_params(params, latent_shape[1:])   # one-time offline packing

    fwd = jax.jit(lambda lat: decoder_forward_pallas(lat, packed))
    out = jax.block_until_ready(fwd(latent))

    # sanity: shape and values vs XLA reference built from the raw params
    assert out.shape == (batch, out_channels, 7, 7), out.shape
    ref = jax.block_until_ready(decoder_forward_ref(latent, params))
    np.testing.assert_allclose(np.asarray(out), np.asarray(ref), atol=2e-4, rtol=2e-4)

    print("KERNEL_OK")
</pallas_src>

<mosaic_0001>
module attributes {stable_mosaic.version = 11 : i64} {
  func.func @kernel(%arg0: i32, %arg1: memref<1x4x32xf32, #tpu.memory_space<vmem>>, %arg2: memref<3x32x84xf32, #tpu.memory_space<vmem>>, %arg3: memref<1x84xf32, #tpu.memory_space<vmem>>, %arg4: memref<3x84x84xf32, #tpu.memory_space<vmem>>, %arg5: memref<1x84xf32, #tpu.memory_space<vmem>>, %arg6: memref<3x84x84xf32, #tpu.memory_space<vmem>>, %arg7: memref<1x84xf32, #tpu.memory_space<vmem>>, %arg8: memref<3x84x42xf32, #tpu.memory_space<vmem>>, %arg9: memref<1x42xf32, #tpu.memory_space<vmem>>, %arg10: memref<3x42x42xf32, #tpu.memory_space<vmem>>, %arg11: memref<1x42xf32, #tpu.memory_space<vmem>>, %arg12: memref<3x42x42xf32, #tpu.memory_space<vmem>>, %arg13: memref<1x42xf32, #tpu.memory_space<vmem>>, %arg14: memref<3x42x21xf32, #tpu.memory_space<vmem>>, %arg15: memref<1x21xf32, #tpu.memory_space<vmem>>, %arg16: memref<1x7x21xf32, #tpu.memory_space<vmem>>) attributes {dimension_semantics = [#tpu.dimension_semantics<parallel>], iteration_bounds = array<i64: 2>, scalar_prefetch = 0 : i64, scratch_operands = 0 : i64, tpu.core_type = #tpu.core_type<tc>, window_params = [{transform_indices = @transform_0, window_bounds = array<i64: 1, 4, 32>}, {pipeline_mode = #tpu.pipeline_mode<synchronous>, transform_indices = @transform_1, window_bounds = array<i64: 3, 32, 84>}, {pipeline_mode = #tpu.pipeline_mode<synchronous>, transform_indices = @transform_2, window_bounds = array<i64: 1, 84>}, {pipeline_mode = #tpu.pipeline_mode<synchronous>, transform_indices = @transform_3, window_bounds = array<i64: 3, 84, 84>}, {pipeline_mode = #tpu.pipeline_mode<synchronous>, transform_indices = @transform_4, window_bounds = array<i64: 1, 84>}, {pipeline_mode = #tpu.pipeline_mode<synchronous>, transform_indices = @transform_5, window_bounds = array<i64: 3, 84, 84>}, {pipeline_mode = #tpu.pipeline_mode<synchronous>, transform_indices = @transform_6, window_bounds = array<i64: 1, 84>}, {pipeline_mode = #tpu.pipeline_mode<synchronous>, transform_indices = @transform_7, window_bounds = array<i64: 3, 84, 42>}, {pipeline_mode = #tpu.pipeline_mode<synchronous>, transform_indices = @transform_8, window_bounds = array<i64: 1, 42>}, {pipeline_mode = #tpu.pipeline_mode<synchronous>, transform_indices = @transform_9, window_bounds = array<i64: 3, 42, 42>}, {pipeline_mode = #tpu.pipeline_mode<synchronous>, transform_indices = @transform_10, window_bounds = array<i64: 1, 42>}, {pipeline_mode = #tpu.pipeline_mode<synchronous>, transform_indices = @transform_11, window_bounds = array<i64: 3, 42, 42>}, {pipeline_mode = #tpu.pipeline_mode<synchronous>, transform_indices = @transform_12, window_bounds = array<i64: 1, 42>}, {pipeline_mode = #tpu.pipeline_mode<synchronous>, transform_indices = @transform_13, window_bounds = array<i64: 3, 42, 21>}, {pipeline_mode = #tpu.pipeline_mode<synchronous>, transform_indices = @transform_14, window_bounds = array<i64: 1, 21>}, {transform_indices = @transform_15, window_bounds = array<i64: 1, 7, 21>}]} {
    %c0 = arith.constant 0 : index
    %c0_0 = arith.constant 0 : index
    %c0_1 = arith.constant 0 : index
    %0 = vector.load %arg1[%c0, %c0_0, %c0_1] : memref<1x4x32xf32, #tpu.memory_space<vmem>>, vector<1x4x32xf32>
    %1 = vector.shape_cast %0 : vector<1x4x32xf32> to vector<4x32xf32>
    %cst = arith.constant 0.000000e+00 : f32
    %2 = vector.broadcast %cst : f32 to vector<1x32xf32>
    %3 = vector.extract_strided_slice %1 {offsets = [0, 0], sizes = [1, 32], strides = [1, 1]} : vector<4x32xf32> to vector<1x32xf32>
    %4 = vector.extract_strided_slice %1 {offsets = [1, 0], sizes = [1, 32], strides = [1, 1]} : vector<4x32xf32> to vector<1x32xf32>
    %5 = vector.extract_strided_slice %1 {offsets = [2, 0], sizes = [1, 32], strides = [1, 1]} : vector<4x32xf32> to vector<1x32xf32>
    %6 = vector.extract_strided_slice %1 {offsets = [3, 0], sizes = [1, 32], strides = [1, 1]} : vector<4x32xf32> to vector<1x32xf32>
    %7 = tpu.concatenate %2, %3, %2, %4, %2, %5, %2, %6, %2 in 0 : vector<1x32xf32>, vector<1x32xf32>, vector<1x32xf32>, vector<1x32xf32>, vector<1x32xf32>, vector<1x32xf32>, vector<1x32xf32>, vector<1x32xf32>, vector<1x32xf32> -> vector<9x32xf32>
    %cst_2 = arith.constant 0.000000e+00 : f32
    %8 = vector.broadcast %cst_2 : f32 to vector<7x84xf32>
    %9 = vector.extract_strided_slice %7 {offsets = [0, 0], sizes = [7, 32], strides = [1, 1]} : vector<9x32xf32> to vector<7x32xf32>
    %c0_3 = arith.constant 0 : index
    %c0_4 = arith.constant 0 : index
    %c0_5 = arith.constant 0 : index
    %10 = vector.load %arg2[%c0_3, %c0_4, %c0_5] : memref<3x32x84xf32, #tpu.memory_space<vmem>>, vector<1x32x84xf32>
    %11 = vector.shape_cast %10 : vector<1x32x84xf32> to vector<32x84xf32>
    %cst_6 = arith.constant dense<0.000000e+00> : vector<7x84xf32>
    %12 = tpu.matmul %9, %11, %cst_6 {dimension_numbers = #tpu.dot_dimension_numbers<[1], [0], [0], [1], [0, 0, 1, 1], [], []>} : vector<7x32xf32>, vector<32x84xf32>, vector<7x84xf32> -> vector<7x84xf32>
    %13 = arith.addf %8, %12 : vector<7x84xf32>
    %14 = vector.extract_strided_slice %7 {offsets = [1, 0], sizes = [7, 32], strides = [1, 1]} : vector<9x32xf32> to vector<7x32xf32>
    %c1 = arith.constant 1 : index
    %c0_7 = arith.constant 0 : index
    %c0_8 = arith.constant 0 : index
    %15 = vector.load %arg2[%c1, %c0_7, %c0_8] : memref<3x32x84xf32, #tpu.memory_space<vmem>>, vector<1x32x84xf32>
    %16 = vector.shape_cast %15 : vector<1x32x84xf32> to vector<32x84xf32>
    %cst_9 = arith.constant dense<0.000000e+00> : vector<7x84xf32>
    %17 = tpu.matmul %14, %16, %cst_9 {dimension_numbers = #tpu.dot_dimension_numbers<[1], [0], [0], [1], [0, 0, 1, 1], [], []>} : vector<7x32xf32>, vector<32x84xf32>, vector<7x84xf32> -> vector<7x84xf32>
    %18 = arith.addf %13, %17 : vector<7x84xf32>
    %19 = vector.extract_strided_slice %7 {offsets = [2, 0], sizes = [7, 32], strides = [1, 1]} : vector<9x32xf32> to vector<7x32xf32>
    %c2 = arith.constant 2 : index
    %c0_10 = arith.constant 0 : index
    %c0_11 = arith.constant 0 : index
    %20 = vector.load %arg2[%c2, %c0_10, %c0_11] : memref<3x32x84xf32, #tpu.memory_space<vmem>>, vector<1x32x84xf32>
    %21 = vector.shape_cast %20 : vector<1x32x84xf32> to vector<32x84xf32>
    %cst_12 = arith.constant dense<0.000000e+00> : vector<7x84xf32>
    %22 = tpu.matmul %19, %21, %cst_12 {dimension_numbers = #tpu.dot_dimension_numbers<[1], [0], [0], [1], [0, 0, 1, 1], [], []>} : vector<7x32xf32>, vector<32x84xf32>, vector<7x84xf32> -> vector<7x84xf32>
    %23 = arith.addf %18, %22 : vector<7x84xf32>
    %c0_13 = arith.constant 0 : index
    %c0_14 = arith.constant 0 : index
    %24 = vector.load %arg3[%c0_13, %c0_14] : memref<1x84xf32, #tpu.memory_space<vmem>>, vector<1x84xf32>
    %25 = vector.broadcast %24 : vector<1x84xf32> to vector<7x84xf32>
    %26 = arith.addf %23, %25 : vector<7x84xf32>
    %cst_15 = arith.constant 0.000000e+00 : f32
    %27 = vector.broadcast %cst_15 : f32 to vector<7x84xf32>
    %28 = arith.cmpf oge, %26, %27 : vector<7x84xf32>
    %cst_16 = arith.constant 0.00999999977 : f32
    %29 = vector.broadcast %cst_16 : f32 to vector<7x84xf32>
    %30 = arith.mulf %26, %29 : vector<7x84xf32>
    %31 = arith.select %28, %26, %30 : vector<7x84xi1>, vector<7x84xf32>
    %cst_17 = arith.constant 0.000000e+00 : f32
    %32 = vector.broadcast %cst_17 : f32 to vector<1x84xf32>
    %33 = tpu.concatenate %32, %31, %32 in 0 : vector<1x84xf32>, vector<7x84xf32>, vector<1x84xf32> -> vector<9x84xf32>
    %cst_18 = arith.constant 0.000000e+00 : f32
    %34 = vector.broadcast %cst_18 : f32 to vector<7x84xf32>
    %35 = vector.extract_strided_slice %33 {offsets = [0, 0], sizes = [7, 84], strides = [1, 1]} : vector<9x84xf32> to vector<7x84xf32>
    %c0_19 = arith.constant 0 : index
    %c0_20 = arith.constant 0 : index
    %c0_21 = arith.constant 0 : index
    %36 = vector.load %arg4[%c0_19, %c0_20, %c0_21] : memref<3x84x84xf32, #tpu.memory_space<vmem>>, vector<1x84x84xf32>
    %37 = vector.shape_cast %36 : vector<1x84x84xf32> to vector<84x84xf32>
    %cst_22 = arith.constant dense<0.000000e+00> : vector<7x84xf32>
    %38 = tpu.matmul %35, %37, %cst_22 {dimension_numbers = #tpu.dot_dimension_numbers<[1], [0], [0], [1], [0, 0, 1, 1], [], []>} : vector<7x84xf32>, vector<84x84xf32>, vector<7x84xf32> -> vector<7x84xf32>
    %39 = arith.addf %34, %38 : vector<7x84xf32>
    %40 = vector.extract_strided_slice %33 {offsets = [1, 0], sizes = [7, 84], strides = [1, 1]} : vector<9x84xf32> to vector<7x84xf32>
    %c1_23 = arith.constant 1 : index
    %c0_24 = arith.constant 0 : index
    %c0_25 = arith.constant 0 : index
    %41 = vector.load %arg4[%c1_23, %c0_24, %c0_25] : memref<3x84x84xf32, #tpu.memory_space<vmem>>, vector<1x84x84xf32>
    %42 = vector.shape_cast %41 : vector<1x84x84xf32> to vector<84x84xf32>
    %cst_26 = arith.constant dense<0.000000e+00> : vector<7x84xf32>
    %43 = tpu.matmul %40, %42, %cst_26 {dimension_numbers = #tpu.dot_dimension_numbers<[1], [0], [0], [1], [0, 0, 1, 1], [], []>} : vector<7x84xf32>, vector<84x84xf32>, vector<7x84xf32> -> vector<7x84xf32>
    %44 = arith.addf %39, %43 : vector<7x84xf32>
    %45 = vector.extract_strided_slice %33 {offsets = [2, 0], sizes = [7, 84], strides = [1, 1]} : vector<9x84xf32> to vector<7x84xf32>
    %c2_27 = arith.constant 2 : index
    %c0_28 = arith.constant 0 : index
    %c0_29 = arith.constant 0 : index
    %46 = vector.load %arg4[%c2_27, %c0_28, %c0_29] : memref<3x84x84xf32, #tpu.memory_space<vmem>>, vector<1x84x84xf32>
    %47 = vector.shape_cast %46 : vector<1x84x84xf32> to vector<84x84xf32>
    %cst_30 = arith.constant dense<0.000000e+00> : vector<7x84xf32>
    %48 = tpu.matmul %45, %47, %cst_30 {dimension_numbers = #tpu.dot_dimension_numbers<[1], [0], [0], [1], [0, 0, 1, 1], [], []>} : vector<7x84xf32>, vector<84x84xf32>, vector<7x84xf32> -> vector<7x84xf32>
    %49 = arith.addf %44, %48 : vector<7x84xf32>
    %c0_31 = arith.constant 0 : index
    %c0_32 = arith.constant 0 : index
    %50 = vector.load %arg5[%c0_31, %c0_32] : memref<1x84xf32, #tpu.memory_space<vmem>>, vector<1x84xf32>
    %51 = vector.broadcast %50 : vector<1x84xf32> to vector<7x84xf32>
    %52 = arith.addf %49, %51 : vector<7x84xf32>
    %cst_33 = arith.constant 0.000000e+00 : f32
    %53 = vector.broadcast %cst_33 : f32 to vector<7x84xf32>
    %54 = arith.cmpf oge, %52, %53 : vector<7x84xf32>
    %cst_34 = arith.constant 0.00999999977 : f32
    %55 = vector.broadcast %cst_34 : f32 to vector<7x84xf32>
    %56 = arith.mulf %52, %55 : vector<7x84xf32>
    %57 = arith.select %54, %52, %56 : vector<7x84xi1>, vector<7x84xf32>
    %cst_35 = arith.constant 0.000000e+00 : f32
    %58 = vector.broadcast %cst_35 : f32 to vector<1x84xf32>
    %59 = tpu.concatenate %58, %57, %58 in 0 : vector<1x84xf32>, vector<7x84xf32>, vector<1x84xf32> -> vector<9x84xf32>
    %cst_36 = arith.constant 0.000000e+00 : f32
    %60 = vector.broadcast %cst_36 : f32 to vector<7x84xf32>
    %61 = vector.extract_strided_slice %59 {offsets = [0, 0], sizes = [7, 84], strides = [1, 1]} : vector<9x84xf32> to vector<7x84xf32>
    %c0_37 = arith.constant 0 : index
    %c0_38 = arith.constant 0 : index
    %c0_39 = arith.constant 0 : index
    %62 = vector.load %arg6[%c0_37, %c0_38, %c0_39] : memref<3x84x84xf32, #tpu.memory_space<vmem>>, vector<1x84x84xf32>
    %63 = vector.shape_cast %62 : vector<1x84x84xf32> to vector<84x84xf32>
    %cst_40 = arith.constant dense<0.000000e+00> : vector<7x84xf32>
    %64 = tpu.matmul %61, %63, %cst_40 {dimension_numbers = #tpu.dot_dimension_numbers<[1], [0], [0], [1], [0, 0, 1, 1], [], []>} : vector<7x84xf32>, vector<84x84xf32>, vector<7x84xf32> -> vector<7x84xf32>
    %65 = arith.addf %60, %64 : vector<7x84xf32>
    %66 = vector.extract_strided_slice %59 {offsets = [1, 0], sizes = [7, 84], strides = [1, 1]} : vector<9x84xf32> to vector<7x84xf32>
    %c1_41 = arith.constant 1 : index
    %c0_42 = arith.constant 0 : index
    %c0_43 = arith.constant 0 : index
    %67 = vector.load %arg6[%c1_41, %c0_42, %c0_43] : memref<3x84x84xf32, #tpu.memory_space<vmem>>, vector<1x84x84xf32>
    %68 = vector.shape_cast %67 : vector<1x84x84xf32> to vector<84x84xf32>
    %cst_44 = arith.constant dense<0.000000e+00> : vector<7x84xf32>
    %69 = tpu.matmul %66, %68, %cst_44 {dimension_numbers = #tpu.dot_dimension_numbers<[1], [0], [0], [1], [0, 0, 1, 1], [], []>} : vector<7x84xf32>, vector<84x84xf32>, vector<7x84xf32> -> vector<7x84xf32>
    %70 = arith.addf %65, %69 : vector<7x84xf32>
    %71 = vector.extract_strided_slice %59 {offsets = [2, 0], sizes = [7, 84], strides = [1, 1]} : vector<9x84xf32> to vector<7x84xf32>
    %c2_45 = arith.constant 2 : index
    %c0_46 = arith.constant 0 : index
    %c0_47 = arith.constant 0 : index
    %72 = vector.load %arg6[%c2_45, %c0_46, %c0_47] : memref<3x84x84xf32, #tpu.memory_space<vmem>>, vector<1x84x84xf32>
    %73 = vector.shape_cast %72 : vector<1x84x84xf32> to vector<84x84xf32>
    %cst_48 = arith.constant dense<0.000000e+00> : vector<7x84xf32>
    %74 = tpu.matmul %71, %73, %cst_48 {dimension_numbers = #tpu.dot_dimension_numbers<[1], [0], [0], [1], [0, 0, 1, 1], [], []>} : vector<7x84xf32>, vector<84x84xf32>, vector<7x84xf32> -> vector<7x84xf32>
    %75 = arith.addf %70, %74 : vector<7x84xf32>
    %c0_49 = arith.constant 0 : index
    %c0_50 = arith.constant 0 : index
    %76 = vector.load %arg7[%c0_49, %c0_50] : memref<1x84xf32, #tpu.memory_space<vmem>>, vector<1x84xf32>
    %77 = vector.broadcast %76 : vector<1x84xf32> to vector<7x84xf32>
    %78 = arith.addf %75, %77 : vector<7x84xf32>
    %79 = arith.addf %78, %31 : vector<7x84xf32>
    %cst_51 = arith.constant 0.000000e+00 : f32
    %80 = vector.broadcast %cst_51 : f32 to vector<7x84xf32>
    %81 = arith.cmpf oge, %79, %80 : vector<7x84xf32>
    %cst_52 = arith.constant 0.00999999977 : f32
    %82 = vector.broadcast %cst_52 : f32 to vector<7x84xf32>
    %83 = arith.mulf %79, %82 : vector<7x84xf32>
    %84 = arith.select %81, %79, %83 : vector<7x84xi1>, vector<7x84xf32>
    %cst_53 = arith.constant 0.000000e+00 : f32
    %85 = vector.broadcast %cst_53 : f32 to vector<1x84xf32>
    %86 = tpu.concatenate %85, %84, %85 in 0 : vector<1x84xf32>, vector<7x84xf32>, vector<1x84xf32> -> vector<9x84xf32>
    %cst_54 = arith.constant 0.000000e+00 : f32
    %87 = vector.broadcast %cst_54 : f32 to vector<7x42xf32>
    %88 = vector.extract_strided_slice %86 {offsets = [0, 0], sizes = [7, 84], strides = [1, 1]} : vector<9x84xf32> to vector<7x84xf32>
    %c0_55 = arith.constant 0 : index
    %c0_56 = arith.constant 0 : index
    %c0_57 = arith.constant 0 : index
    %89 = vector.load %arg8[%c0_55, %c0_56, %c0_57] : memref<3x84x42xf32, #tpu.memory_space<vmem>>, vector<1x84x42xf32>
    %90 = vector.shape_cast %89 : vector<1x84x42xf32> to vector<84x42xf32>
    %cst_58 = arith.constant dense<0.000000e+00> : vector<7x42xf32>
    %91 = tpu.matmul %88, %90, %cst_58 {dimension_numbers = #tpu.dot_dimension_numbers<[1], [0], [0], [1], [0, 0, 1, 1], [], []>} : vector<7x84xf32>, vector<84x42xf32>, vector<7x42xf32> -> vector<7x42xf32>
    %92 = arith.addf %87, %91 : vector<7x42xf32>
    %93 = vector.extract_strided_slice %86 {offsets = [1, 0], sizes = [7, 84], strides = [1, 1]} : vector<9x84xf32> to vector<7x84xf32>
    %c1_59 = arith.constant 1 : index
    %c0_60 = arith.constant 0 : index
    %c0_61 = arith.constant 0 : index
    %94 = vector.load %arg8[%c1_59, %c0_60, %c0_61] : memref<3x84x42xf32, #tpu.memory_space<vmem>>, vector<1x84x42xf32>
    %95 = vector.shape_cast %94 : vector<1x84x42xf32> to vector<84x42xf32>
    %cst_62 = arith.constant dense<0.000000e+00> : vector<7x42xf32>
    %96 = tpu.matmul %93, %95, %cst_62 {dimension_numbers = #tpu.dot_dimension_numbers<[1], [0], [0], [1], [0, 0, 1, 1], [], []>} : vector<7x84xf32>, vector<84x42xf32>, vector<7x42xf32> -> vector<7x42xf32>
    %97 = arith.addf %92, %96 : vector<7x42xf32>
    %98 = vector.extract_strided_slice %86 {offsets = [2, 0], sizes = [7, 84], strides = [1, 1]} : vector<9x84xf32> to vector<7x84xf32>
    %c2_63 = arith.constant 2 : index
    %c0_64 = arith.constant 0 : index
    %c0_65 = arith.constant 0 : index
    %99 = vector.load %arg8[%c2_63, %c0_64, %c0_65] : memref<3x84x42xf32, #tpu.memory_space<vmem>>, vector<1x84x42xf32>
    %100 = vector.shape_cast %99 : vector<1x84x42xf32> to vector<84x42xf32>
    %cst_66 = arith.constant dense<0.000000e+00> : vector<7x42xf32>
    %101 = tpu.matmul %98, %100, %cst_66 {dimension_numbers = #tpu.dot_dimension_numbers<[1], [0], [0], [1], [0, 0, 1, 1], [], []>} : vector<7x84xf32>, vector<84x42xf32>, vector<7x42xf32> -> vector<7x42xf32>
    %102 = arith.addf %97, %101 : vector<7x42xf32>
    %c0_67 = arith.constant 0 : index
    %c0_68 = arith.constant 0 : index
    %103 = vector.load %arg9[%c0_67, %c0_68] : memref<1x42xf32, #tpu.memory_space<vmem>>, vector<1x42xf32>
    %104 = vector.broadcast %103 : vector<1x42xf32> to vector<7x42xf32>
    %105 = arith.addf %102, %104 : vector<7x42xf32>
    %cst_69 = arith.constant 0.000000e+00 : f32
    %106 = vector.broadcast %cst_69 : f32 to vector<7x42xf32>
    %107 = arith.cmpf oge, %105, %106 : vector<7x42xf32>
    %cst_70 = arith.constant 0.00999999977 : f32
    %108 = vector.broadcast %cst_70 : f32 to vector<7x42xf32>
    %109 = arith.mulf %105, %108 : vector<7x42xf32>
    %110 = arith.select %107, %105, %109 : vector<7x42xi1>, vector<7x42xf32>
    %cst_71 = arith.constant 0.000000e+00 : f32
    %111 = vector.broadcast %cst_71 : f32 to vector<1x42xf32>
    %112 = tpu.concatenate %111, %110, %111 in 0 : vector<1x42xf32>, vector<7x42xf32>, vector<1x42xf32> -> vector<9x42xf32>
    %cst_72 = arith.constant 0.000000e+00 : f32
    %113 = vector.broadcast %cst_72 : f32 to vector<7x42xf32>
    %114 = vector.extract_strided_slice %112 {offsets = [0, 0], sizes = [7, 42], strides = [1, 1]} : vector<9x42xf32> to vector<7x42xf32>
    %c0_73 = arith.constant 0 : index
    %c0_74 = arith.constant 0 : index
    %c0_75 = arith.constant 0 : index
    %115 = vector.load %arg10[%c0_73, %c0_74, %c0_75] : memref<3x42x42xf32, #tpu.memory_space<vmem>>, vector<1x42x42xf32>
    %116 = vector.shape_cast %115 : vector<1x42x42xf32> to vector<42x42xf32>
    %cst_76 = arith.constant dense<0.000000e+00> : vector<7x42xf32>
    %117 = tpu.matmul %114, %116, %cst_76 {dimension_numbers = #tpu.dot_dimension_numbers<[1], [0], [0], [1], [0, 0, 1, 1], [], []>} : vector<7x42xf32>, vector<42x42xf32>, vector<7x42xf32> -> vector<7x42xf32>
    %118 = arith.addf %113, %117 : vector<7x42xf32>
    %119 = vector.extract_strided_slice %112 {offsets = [1, 0], sizes = [7, 42], strides = [1, 1]} : vector<9x42xf32> to vector<7x42xf32>
    %c1_77 = arith.constant 1 : index
    %c0_78 = arith.constant 0 : index
    %c0_79 = arith.constant 0 : index
    %120 = vector.load %arg10[%c1_77, %c0_78, %c0_79] : memref<3x42x42xf32, #tpu.memory_space<vmem>>, vector<1x42x42xf32>
    %121 = vector.shape_cast %120 : vector<1x42x42xf32> to vector<42x42xf32>
    %cst_80 = arith.constant dense<0.000000e+00> : vector<7x42xf32>
    %122 = tpu.matmul %119, %121, %cst_80 {dimension_numbers = #tpu.dot_dimension_numbers<[1], [0], [0], [1], [0, 0, 1, 1], [], []>} : vector<7x42xf32>, vector<42x42xf32>, vector<7x42xf32> -> vector<7x42xf32>
    %123 = arith.addf %118, %122 : vector<7x42xf32>
    %124 = vector.extract_strided_slice %112 {offsets = [2, 0], sizes = [7, 42], strides = [1, 1]} : vector<9x42xf32> to vector<7x42xf32>
    %c2_81 = arith.constant 2 : index
    %c0_82 = arith.constant 0 : index
    %c0_83 = arith.constant 0 : index
    %125 = vector.load %arg10[%c2_81, %c0_82, %c0_83] : memref<3x42x42xf32, #tpu.memory_space<vmem>>, vector<1x42x42xf32>
    %126 = vector.shape_cast %125 : vector<1x42x42xf32> to vector<42x42xf32>
    %cst_84 = arith.constant dense<0.000000e+00> : vector<7x42xf32>
    %127 = tpu.matmul %124, %126, %cst_84 {dimension_numbers = #tpu.dot_dimension_numbers<[1], [0], [0], [1], [0, 0, 1, 1], [], []>} : vector<7x42xf32>, vector<42x42xf32>, vector<7x42xf32> -> vector<7x42xf32>
    %128 = arith.addf %123, %127 : vector<7x42xf32>
    %c0_85 = arith.constant 0 : index
    %c0_86 = arith.constant 0 : index
    %129 = vector.load %arg11[%c0_85, %c0_86] : memref<1x42xf32, #tpu.memory_space<vmem>>, vector<1x42xf32>
    %130 = vector.broadcast %129 : vector<1x42xf32> to vector<7x42xf32>
    %131 = arith.addf %128, %130 : vector<7x42xf32>
    %cst_87 = arith.constant 0.000000e+00 : f32
    %132 = vector.broadcast %cst_87 : f32 to vector<7x42xf32>
    %133 = arith.cmpf oge, %131, %132 : vector<7x42xf32>
    %cst_88 = arith.constant 0.00999999977 : f32
    %134 = vector.broadcast %cst_88 : f32 to vector<7x42xf32>
    %135 = arith.mulf %131, %134 : vector<7x42xf32>
    %136 = arith.select %133, %131, %135 : vector<7x42xi1>, vector<7x42xf32>
    %cst_89 = arith.constant 0.000000e+00 : f32
    %137 = vector.broadcast %cst_89 : f32 to vector<1x42xf32>
    %138 = tpu.concatenate %137, %136, %137 in 0 : vector<1x42xf32>, vector<7x42xf32>, vector<1x42xf32> -> vector<9x42xf32>
    %cst_90 = arith.constant 0.000000e+00 : f32
    %139 = vector.broadcast %cst_90 : f32 to vector<7x42xf32>
    %140 = vector.extract_strided_slice %138 {offsets = [0, 0], sizes = [7, 42], strides = [1, 1]} : vector<9x42xf32> to vector<7x42xf32>
    %c0_91 = arith.constant 0 : index
    %c0_92 = arith.constant 0 : index
    %c0_93 = arith.constant 0 : index
    %141 = vector.load %arg12[%c0_91, %c0_92, %c0_93] : memref<3x42x42xf32, #tpu.memory_space<vmem>>, vector<1x42x42xf32>
    %142 = vector.shape_cast %141 : vector<1x42x42xf32> to vector<42x42xf32>
    %cst_94 = arith.constant dense<0.000000e+00> : vector<7x42xf32>
    %143 = tpu.matmul %140, %142, %cst_94 {dimension_numbers = #tpu.dot_dimension_numbers<[1], [0], [0], [1], [0, 0, 1, 1], [], []>} : vector<7x42xf32>, vector<42x42xf32>, vector<7x42xf32> -> vector<7x42xf32>
    %144 = arith.addf %139, %143 : vector<7x42xf32>
    %145 = vector.extract_strided_slice %138 {offsets = [1, 0], sizes = [7, 42], strides = [1, 1]} : vector<9x42xf32> to vector<7x42xf32>
    %c1_95 = arith.constant 1 : index
    %c0_96 = arith.constant 0 : index
    %c0_97 = arith.constant 0 : index
    %146 = vector.load %arg12[%c1_95, %c0_96, %c0_97] : memref<3x42x42xf32, #tpu.memory_space<vmem>>, vector<1x42x42xf32>
    %147 = vector.shape_cast %146 : vector<1x42x42xf32> to vector<42x42xf32>
    %cst_98 = arith.constant dense<0.000000e+00> : vector<7x42xf32>
    %148 = tpu.matmul %145, %147, %cst_98 {dimension_numbers = #tpu.dot_dimension_numbers<[1], [0], [0], [1], [0, 0, 1, 1], [], []>} : vector<7x42xf32>, vector<42x42xf32>, vector<7x42xf32> -> vector<7x42xf32>
    %149 = arith.addf %144, %148 : vector<7x42xf32>
    %150 = vector.extract_strided_slice %138 {offsets = [2, 0], sizes = [7, 42], strides = [1, 1]} : vector<9x42xf32> to vector<7x42xf32>
    %c2_99 = arith.constant 2 : index
    %c0_100 = arith.constant 0 : index
    %c0_101 = arith.constant 0 : index
    %151 = vector.load %arg12[%c2_99, %c0_100, %c0_101] : memref<3x42x42xf32, #tpu.memory_space<vmem>>, vector<1x42x42xf32>
    %152 = vector.shape_cast %151 : vector<1x42x42xf32> to vector<42x42xf32>
    %cst_102 = arith.constant dense<0.000000e+00> : vector<7x42xf32>
    %153 = tpu.matmul %150, %152, %cst_102 {dimension_numbers = #tpu.dot_dimension_numbers<[1], [0], [0], [1], [0, 0, 1, 1], [], []>} : vector<7x42xf32>, vector<42x42xf32>, vector<7x42xf32> -> vector<7x42xf32>
    %154 = arith.addf %149, %153 : vector<7x42xf32>
    %c0_103 = arith.constant 0 : index
    %c0_104 = arith.constant 0 : index
    %155 = vector.load %arg13[%c0_103, %c0_104] : memref<1x42xf32, #tpu.memory_space<vmem>>, vector<1x42xf32>
    %156 = vector.broadcast %155 : vector<1x42xf32> to vector<7x42xf32>
    %157 = arith.addf %154, %156 : vector<7x42xf32>
    %158 = arith.addf %157, %110 : vector<7x42xf32>
    %cst_105 = arith.constant 0.000000e+00 : f32
    %159 = vector.broadcast %cst_105 : f32 to vector<7x42xf32>
    %160 = arith.cmpf oge, %158, %159 : vector<7x42xf32>
    %cst_106 = arith.constant 0.00999999977 : f32
    %161 = vector.broadcast %cst_106 : f32 to vector<7x42xf32>
    %162 = arith.mulf %158, %161 : vector<7x42xf32>
    %163 = arith.select %160, %158, %162 : vector<7x42xi1>, vector<7x42xf32>
    %cst_107 = arith.constant 0.000000e+00 : f32
    %164 = vector.broadcast %cst_107 : f32 to vector<1x42xf32>
    %165 = tpu.concatenate %164, %163, %164 in 0 : vector<1x42xf32>, vector<7x42xf32>, vector<1x42xf32> -> vector<9x42xf32>
    %cst_108 = arith.constant 0.000000e+00 : f32
    %166 = vector.broadcast %cst_108 : f32 to vector<7x21xf32>
    %167 = vector.extract_strided_slice %165 {offsets = [0, 0], sizes = [7, 42], strides = [1, 1]} : vector<9x42xf32> to vector<7x42xf32>
    %c0_109 = arith.constant 0 : index
    %c0_110 = arith.constant 0 : index
    %c0_111 = arith.constant 0 : index
    %168 = vector.load %arg14[%c0_109, %c0_110, %c0_111] : memref<3x42x21xf32, #tpu.memory_space<vmem>>, vector<1x42x21xf32>
    %169 = vector.shape_cast %168 : vector<1x42x21xf32> to vector<42x21xf32>
    %cst_112 = arith.constant dense<0.000000e+00> : vector<7x21xf32>
    %170 = tpu.matmul %167, %169, %cst_112 {dimension_numbers = #tpu.dot_dimension_numbers<[1], [0], [0], [1], [0, 0, 1, 1], [], []>} : vector<7x42xf32>, vector<42x21xf32>, vector<7x21xf32> -> vector<7x21xf32>
    %171 = arith.addf %166, %170 : vector<7x21xf32>
    %172 = vector.extract_strided_slice %165 {offsets = [1, 0], sizes = [7, 42], strides = [1, 1]} : vector<9x42xf32> to vector<7x42xf32>
    %c1_113 = arith.constant 1 : index
    %c0_114 = arith.constant 0 : index
    %c0_115 = arith.constant 0 : index
    %173 = vector.load %arg14[%c1_113, %c0_114, %c0_115] : memref<3x42x21xf32, #tpu.memory_space<vmem>>, vector<1x42x21xf32>
    %174 = vector.shape_cast %173 : vector<1x42x21xf32> to vector<42x21xf32>
    %cst_116 = arith.constant dense<0.000000e+00> : vector<7x21xf32>
    %175 = tpu.matmul %172, %174, %cst_116 {dimension_numbers = #tpu.dot_dimension_numbers<[1], [0], [0], [1], [0, 0, 1, 1], [], []>} : vector<7x42xf32>, vector<42x21xf32>, vector<7x21xf32> -> vector<7x21xf32>
    %176 = arith.addf %171, %175 : vector<7x21xf32>
    %177 = vector.extract_strided_slice %165 {offsets = [2, 0], sizes = [7, 42], strides = [1, 1]} : vector<9x42xf32> to vector<7x42xf32>
    %c2_117 = arith.constant 2 : index
    %c0_118 = arith.constant 0 : index
    %c0_119 = arith.constant 0 : index
    %178 = vector.load %arg14[%c2_117, %c0_118, %c0_119] : memref<3x42x21xf32, #tpu.memory_space<vmem>>, vector<1x42x21xf32>
    %179 = vector.shape_cast %178 : vector<1x42x21xf32> to vector<42x21xf32>
    %cst_120 = arith.constant dense<0.000000e+00> : vector<7x21xf32>
    %180 = tpu.matmul %177, %179, %cst_120 {dimension_numbers = #tpu.dot_dimension_numbers<[1], [0], [0], [1], [0, 0, 1, 1], [], []>} : vector<7x42xf32>, vector<42x21xf32>, vector<7x21xf32> -> vector<7x21xf32>
    %181 = arith.addf %176, %180 : vector<7x21xf32>
    %c0_121 = arith.constant 0 : index
    %c0_122 = arith.constant 0 : index
    %182 = vector.load %arg15[%c0_121, %c0_122] : memref<1x21xf32, #tpu.memory_space<vmem>>, vector<1x21xf32>
    %183 = vector.broadcast %182 : vector<1x21xf32> to vector<7x21xf32>
    %184 = arith.addf %181, %183 : vector<7x21xf32>
    %cst_123 = arith.constant 0.000000e+00 : f32
    %185 = vector.broadcast %cst_123 : f32 to vector<7x21xf32>
    %186 = arith.subf %185, %184 : vector<7x21xf32>
    %187 = math.exp %186 : vector<7x21xf32>
    %cst_124 = arith.constant 1.000000e+00 : f32
    %188 = vector.broadcast %cst_124 : f32 to vector<7x21xf32>
    %189 = arith.addf %188, %187 : vector<7x21xf32>
    %cst_125 = arith.constant 1.000000e+00 : f32
    %190 = vector.broadcast %cst_125 : f32 to vector<7x21xf32>
    %191 = arith.divf %190, %189 : vector<7x21xf32>
    %192 = vector.shape_cast %191 : vector<7x21xf32> to vector<1x7x21xf32>
    %c0_126 = arith.constant 0 : index
    %c0_127 = arith.constant 0 : index
    %c0_128 = arith.constant 0 : index
    %193 = vector.load %arg16[%c0_126, %c0_127, %c0_128] : memref<1x7x21xf32, #tpu.memory_space<vmem>>, vector<1x7x21xf32>
    tpu.vector_store %arg16[%c0_126, %c0_127, %c0_128], %192 {strides = array<i32>} : memref<1x7x21xf32, #tpu.memory_space<vmem>>, vector<1x7x21xf32>,
    return
  }
  func.func @transform_0(%arg0: i32) -> (i32, i32, i32) {
    %c0_i32 = arith.constant 0 : i32
    %c0_i32_0 = arith.constant 0 : i32
    %c0_i32_1 = arith.constant 0 : i32
    return %arg0, %c0_i32, %c0_i32_0 : i32, i32, i32
  }
  func.func @transform_1(%arg0: i32) -> (i32, i32, i32) {
    %c0_i32 = arith.constant 0 : i32
    %c0_i32_0 = arith.constant 0 : i32
    %c0_i32_1 = arith.constant 0 : i32
    %c0_i32_2 = arith.constant 0 : i32
    return %c0_i32, %c0_i32_0, %c0_i32_1 : i32, i32, i32
  }
  func.func @transform_2(%arg0: i32) -> (i32, i32) {
    %c0_i32 = arith.constant 0 : i32
    %c0_i32_0 = arith.constant 0 : i32
    %c0_i32_1 = arith.constant 0 : i32
    return %c0_i32, %c0_i32_0 : i32, i32
  }
  func.func @transform_3(%arg0: i32) -> (i32, i32, i32) {
    %c0_i32 = arith.constant 0 : i32
    %c0_i32_0 = arith.constant 0 : i32
    %c0_i32_1 = arith.constant 0 : i32
    %c0_i32_2 = arith.constant 0 : i32
    return %c0_i32, %c0_i32_0, %c0_i32_1 : i32, i32, i32
  }
  func.func @transform_4(%arg0: i32) -> (i32, i32) {
    %c0_i32 = arith.constant 0 : i32
    %c0_i32_0 = arith.constant 0 : i32
    %c0_i32_1 = arith.constant 0 : i32
    return %c0_i32, %c0_i32_0 : i32, i32
  }
  func.func @transform_5(%arg0: i32) -> (i32, i32, i32) {
    %c0_i32 = arith.constant 0 : i32
    %c0_i32_0 = arith.constant 0 : i32
    %c0_i32_1 = arith.constant 0 : i32
    %c0_i32_2 = arith.constant 0 : i32
    return %c0_i32, %c0_i32_0, %c0_i32_1 : i32, i32, i32
  }
  func.func @transform_6(%arg0: i32) -> (i32, i32) {
    %c0_i32 = arith.constant 0 : i32
    %c0_i32_0 = arith.constant 0 : i32
    %c0_i32_1 = arith.constant 0 : i32
    return %c0_i32, %c0_i32_0 : i32, i32
  }
  func.func @transform_7(%arg0: i32) -> (i32, i32, i32) {
    %c0_i32 = arith.constant 0 : i32
    %c0_i32_0 = arith.constant 0 : i32
    %c0_i32_1 = arith.constant 0 : i32
    %c0_i32_2 = arith.constant 0 : i32
    return %c0_i32, %c0_i32_0, %c0_i32_1 : i32, i32, i32
  }
  func.func @transform_8(%arg0: i32) -> (i32, i32) {
    %c0_i32 = arith.constant 0 : i32
    %c0_i32_0 = arith.constant 0 : i32
    %c0_i32_1 = arith.constant 0 : i32
    return %c0_i32, %c0_i32_0 : i32, i32
  }
  func.func @transform_9(%arg0: i32) -> (i32, i32, i32) {
    %c0_i32 = arith.constant 0 : i32
    %c0_i32_0 = arith.constant 0 : i32
    %c0_i32_1 = arith.constant 0 : i32
    %c0_i32_2 = arith.constant 0 : i32
    return %c0_i32, %c0_i32_0, %c0_i32_1 : i32, i32, i32
  }
  func.func @transform_10(%arg0: i32) -> (i32, i32) {
    %c0_i32 = arith.constant 0 : i32
    %c0_i32_0 = arith.constant 0 : i32
    %c0_i32_1 = arith.constant 0 : i32
    return %c0_i32, %c0_i32_0 : i32, i32
  }
  func.func @transform_11(%arg0: i32) -> (i32, i32, i32) {
    %c0_i32 = arith.constant 0 : i32
    %c0_i32_0 = arith.constant 0 : i32
    %c0_i32_1 = arith.constant 0 : i32
    %c0_i32_2 = arith.constant 0 : i32
    return %c0_i32, %c0_i32_0, %c0_i32_1 : i32, i32, i32
  }
  func.func @transform_12(%arg0: i32) -> (i32, i32) {
    %c0_i32 = arith.constant 0 : i32
    %c0_i32_0 = arith.constant 0 : i32
    %c0_i32_1 = arith.constant 0 : i32
    return %c0_i32, %c0_i32_0 : i32, i32
  }
  func.func @transform_13(%arg0: i32) -> (i32, i32, i32) {
    %c0_i32 = arith.constant 0 : i32
    %c0_i32_0 = arith.constant 0 : i32
    %c0_i32_1 = arith.constant 0 : i32
    %c0_i32_2 = arith.constant 0 : i32
    return %c0_i32, %c0_i32_0, %c0_i32_1 : i32, i32, i32
  }
  func.func @transform_14(%arg0: i32) -> (i32, i32) {
    %c0_i32 = arith.constant 0 : i32
    %c0_i32_0 = arith.constant 0 : i32
    %c0_i32_1 = arith.constant 0 : i32
    return %c0_i32, %c0_i32_0 : i32, i32
  }
  func.func @transform_15(%arg0: i32) -> (i32, i32, i32) {
    %c0_i32 = arith.constant 0 : i32
    %c0_i32_0 = arith.constant 0 : i32
    %c0_i32_1 = arith.constant 0 : i32
    return %arg0, %c0_i32, %c0_i32_0 : i32, i32, i32
  }
}

</mosaic_0001>

<llo_original>
// kernel: _lambda_.1
$region0: #{_lambda_.1}
  #allocation0 [shape = 'u32[]', space=smem, size = 0x4, offset = 0x4, fixed_abs, tag = 'smem constant byte address 0x4 - core index']
  #allocation1 [shape = 'u32[144,128]{1,0:T(1,128)}', space=vmem, size = 0x12000, scoped, tag = 'internal scratch']
  %s0 = inlined_call_operand.vmem [shape: f32[2,4,32], index: 0, kind: input, shape index: {}]
  %s1 = inlined_call_operand.hbm [shape: f32[3,32,84], index: 1, kind: input, shape index: {}]
  %s2 = inlined_call_operand.vmem [shape: f32[1,84], index: 2, kind: input, shape index: {}]
  %s3 = inlined_call_operand.hbm [shape: f32[3,84,84], index: 3, kind: input, shape index: {}]
  %s4 = inlined_call_operand.vmem [shape: f32[1,84], index: 4, kind: input, shape index: {}]
  %s5 = inlined_call_operand.hbm [shape: f32[3,84,84], index: 5, kind: input, shape index: {}]
  %s6 = inlined_call_operand.vmem [shape: f32[1,84], index: 6, kind: input, shape index: {}]
  %s7 = inlined_call_operand.hbm [shape: f32[3,84,42], index: 7, kind: input, shape index: {}]
  %s8 = inlined_call_operand.vmem [shape: f32[1,42], index: 8, kind: input, shape index: {}]
  %s9 = inlined_call_operand.hbm [shape: f32[3,42,42], index: 9, kind: input, shape index: {}]
  %s10 = inlined_call_operand.vmem [shape: f32[1,42], index: 10, kind: input, shape index: {}]
  %s11 = inlined_call_operand.hbm [shape: f32[3,42,42], index: 11, kind: input, shape index: {}]
  %s12 = inlined_call_operand.vmem [shape: f32[1,42], index: 12, kind: input, shape index: {}]
  %s13 = inlined_call_operand.hbm [shape: f32[3,42,21], index: 13, kind: input, shape index: {}]
  %s14 = inlined_call_operand.vmem [shape: f32[1,21], index: 14, kind: input, shape index: {}]
  %s15 = inlined_call_operand.vmem [shape: f32[2,7,21], index: 15, kind: output, shape index: {}]
  %s16 = sld [smem:[#allocation0]]
  $region121: #{_lambda_.1} parent=0
    _
  %s18 = ssub.s32 1, %s16
  %s19 = scalar_select 0, %s18, %s16
  $region1: #{_lambda_.1} parent=0
    #allocation2 [shape = 'u8[49152]{0}', space=vmem, size = 0xc000, scoped, tag = 'input window, operand 1, single buffered']
    #allocation3 [shape = 's32[2]{0}', space=sflag, size = 0x8, scoped, tag = 'scoped memory for _lambda_.1']
    #allocation4 [shape = 'u8[135168]{0}', space=vmem, size = 0x21000, scoped, tag = 'input window, operand 3, single buffered']
    #allocation5 [shape = 's32[1]{0}', space=sflag, size = 0x4, scoped, tag = 'scoped memory for _lambda_.1']
    #allocation6 [shape = 'u8[135168]{0}', space=vmem, size = 0x21000, scoped, tag = 'input window, operand 5, single buffered']
    #allocation7 [shape = 'u8[135168]{0}', space=vmem, size = 0x21000, scoped, tag = 'input window, operand 7, single buffered']
    #allocation8 [shape = 's32[1]{0}', space=sflag, size = 0x4, scoped, tag = 'scoped memory for _lambda_.1']
    #allocation9 [shape = 'u8[73728]{0}', space=vmem, size = 0x12000, scoped, tag = 'input window, operand 9, single buffered']
    #allocation10 [shape = 'u8[73728]{0}', space=vmem, size = 0x12000, scoped, tag = 'input window, operand 11, single buffered']
    #allocation11 [shape = 's32[1]{0}', space=sflag, size = 0x4, scoped, tag = 'scoped memory for _lambda_.1']
    #allocation12 [shape = 'u8[73728]{0}', space=vmem, size = 0x12000, scoped, tag = 'input window, operand 13, single buffered']
    %20 = vsyncpa [#allocation3], 0
    %21 = vsyncpa [#allocation5], 0
    %22 = vsyncpa [#allocation8], 0
    %23 = vsyncpa [#allocation11], 0
    loop: start=0, step=1, limit=4
    $region2: #{_lambda_.1} parent=1 // loop_pre_header
      _
    $region3: #{_lambda_.1} parent=1 // loop_header
      %s25 = sphi 0, %s29
      %p26 = scmp.ge.s32.totalorder %s25, 4
      %s35 = sphi 0, %s37
      %s38 = sphi 0, %s35
      %s39 = sphi 0, %s38
      %s55 = sphi 0, %s39
      %s59 = sphi 0, %s59
      %s61 = sphi 0, %s59
      %s62 = sphi 0, %s61
      %s76 = sphi 0, %s62
      %s80 = sphi 0, %s80
      %s82 = sphi 0, %s80
      %s83 = sphi 0, %s82
      %s97 = sphi 0, %s83
      %s101 = sphi 0, %s101
      %s103 = sphi 0, %s101
      %s104 = sphi 0, %s103
      %s118 = sphi 0, %s104
      %s122 = sphi 0, %s122
      %s124 = sphi 0, %s122
      %s125 = sphi 0, %s124
      %s139 = sphi 0, %s125
      %s143 = sphi 0, %s143
      %s145 = sphi 0, %s143
      %s146 = sphi 0, %s145
      %s160 = sphi 0, %s146
      %s164 = sphi 0, %s164
      %s166 = sphi 0, %s164
      %s167 = sphi 0, %s166
      %s181 = sphi 0, %s167
      %s185 = sphi 0, %s185
      %s187 = sphi 0, %s185
      %s188 = sphi 0, %s187
      %s202 = sphi 0, %s188
      %s206 = sphi 0, %s206
      %s208 = sphi 0, %s206
      %s209 = sphi 0, %s208
      %s223 = sphi 0, %s209
      %s227 = sphi 0, %s227
      %s229 = sphi 0, %s227
      %s230 = sphi 0, %s229
      %s244 = sphi 0, %s230
      %s248 = sphi 0, %s248
      %s250 = sphi 0, %s248
      %s251 = sphi 0, %s250
      %s265 = sphi 0, %s251
      %s269 = sphi 0, %s269
      %s271 = sphi 0, %s269
      %s272 = sphi 0, %s271
      %s286 = sphi 0, %s272
      %s290 = sphi 0, %s290
      %s292 = sphi 0, %s290
      %s293 = sphi 0, %s292
      %s307 = sphi 0, %s293
      %s311 = sphi 0, %s311
      %s313 = sphi 0, %s311
      %s314 = sphi 0, %s313
      %s328 = sphi 0, %s314
      %s332 = sphi 0, %s332
      %s334 = sphi 0, %s332
      %s335 = sphi 0, %s334
      %s349 = sphi 0, %s335
      %s355 = sphi 0, %s357
      %s358 = sphi 0, %s355
      %s359 = sphi 0, %s358
      %s375 = sphi 0, %s359
    $region4: #{_lambda_.1} parent=1 // loop_header_branch
      %28 = sbr.rel (%p26) target = $region8
    $region5: #{_lambda_.1} parent=1 // loop_body
      %s30 = ssub.s32 %s25, 1
      %s31 = ssub.s32 %s25, 2
      %s32 = sadd.s32 %s25, 1
      %s33 = ssub.s32 %s25, %s32
      %p34 = scmp.eq.s32.totalorder %s33, 0
      %s36 = sadd.s32 %s35, 1
      %s37 = scalar_select %p34, %s35, %s36
      %p40 = pneg %p34
      %p41 = scmp.eq.s32.totalorder %s25, 1
      %p42 = por %p40, %p41
      %p43 = scmp.ne.s32.totalorder %s35, %s38
      %p44 = scmp.eq.s32.totalorder %s25, 0
      %p45 = por %p43, %p44
      %p46 = scmp.ne.s32.totalorder %s35, %s38
      %p47 = scmp.eq.s32.totalorder %s30, 1
      %p48 = por %p46, %p47
      %p49 = scmp.ne.s32.totalorder %s38, %s39
      %p50 = scmp.eq.s32.totalorder %s30, 0
      %p51 = por %p49, %p50
      %p52 = scmp.ne.s32.totalorder %s38, %s39
      %p53 = scmp.eq.s32.totalorder %s31, 1
      %p54 = por %p52, %p53
      %p56 = scmp.ne.s32.totalorder %s39, %s55
      %p57 = scmp.eq.s32.totalorder %s31, 0
      %p58 = por %p56, %p57
      %s60 = sadd.s32 %s59, 1
      %p63 = scmp.eq.s32.totalorder %s25, 1
      %p64 = scmp.ne.s32.totalorder %s59, %s61
      %p65 = scmp.eq.s32.totalorder %s25, 0
      %p66 = por %p64, %p65
      %p67 = scmp.ne.s32.totalorder %s59, %s61
      %p68 = scmp.eq.s32.totalorder %s30, 1
      %p69 = por %p67, %p68
      %p70 = scmp.ne.s32.totalorder %s61, %s62
      %p71 = scmp.eq.s32.totalorder %s30, 0
      %p72 = por %p70, %p71
      %p73 = scmp.ne.s32.totalorder %s61, %s62
      %p74 = scmp.eq.s32.totalorder %s31, 1
      %p75 = por %p73, %p74
      %p77 = scmp.ne.s32.totalorder %s62, %s76
      %p78 = scmp.eq.s32.totalorder %s31, 0
      %p79 = por %p77, %p78
      %s81 = sadd.s32 %s80, 1
      %p84 = scmp.eq.s32.totalorder %s25, 1
      %p85 = scmp.ne.s32.totalorder %s80, %s82
      %p86 = scmp.eq.s32.totalorder %s25, 0
      %p87 = por %p85, %p86
      %p88 = scmp.ne.s32.totalorder %s80, %s82
      %p89 = scmp.eq.s32.totalorder %s30, 1
      %p90 = por %p88, %p89
      %p91 = scmp.ne.s32.totalorder %s82, %s83
      %p92 = scmp.eq.s32.totalorder %s30, 0
      %p93 = por %p91, %p92
      %p94 = scmp.ne.s32.totalorder %s82, %s83
      %p95 = scmp.eq.s32.totalorder %s31, 1
      %p96 = por %p94, %p95
      %p98 = scmp.ne.s32.totalorder %s83, %s97
      %p99 = scmp.eq.s32.totalorder %s31, 0
      %p100 = por %p98, %p99
      %s102 = sadd.s32 %s101, 1
      %p105 = scmp.eq.s32.totalorder %s25, 1
      %p106 = scmp.ne.s32.totalorder %s101, %s103
      %p107 = scmp.eq.s32.totalorder %s25, 0
      %p108 = por %p106, %p107
      %p109 = scmp.ne.s32.totalorder %s101, %s103
      %p110 = scmp.eq.s32.totalorder %s30, 1
      %p111 = por %p109, %p110
      %p112 = scmp.ne.s32.totalorder %s103, %s104
      %p113 = scmp.eq.s32.totalorder %s30, 0
      %p114 = por %p112, %p113
      %p115 = scmp.ne.s32.totalorder %s103, %s104
      %p116 = scmp.eq.s32.totalorder %s31, 1
      %p117 = por %p115, %p116
      %p119 = scmp.ne.s32.totalorder %s104, %s118
      %p120 = scmp.eq.s32.totalorder %s31, 0
      %p121 = por %p119, %p120
      %s123 = sadd.s32 %s122, 1
      %p126 = scmp.eq.s32.totalorder %s25, 1
      %p127 = scmp.ne.s32.totalorder %s122, %s124
      %p128 = scmp.eq.s32.totalorder %s25, 0
      %p129 = por %p127, %p128
      %p130 = scmp.ne.s32.totalorder %s122, %s124
      %p131 = scmp.eq.s32.totalorder %s30, 1
      %p132 = por %p130, %p131
      %p133 = scmp.ne.s32.totalorder %s124, %s125
      %p134 = scmp.eq.s32.totalorder %s30, 0
      %p135 = por %p133, %p134
      %p136 = scmp.ne.s32.totalorder %s124, %s125
      %p137 = scmp.eq.s32.totalorder %s31, 1
      %p138 = por %p136, %p137
      %p140 = scmp.ne.s32.totalorder %s125, %s139
      %p141 = scmp.eq.s32.totalorder %s31, 0
      %p142 = por %p140, %p141
      %s144 = sadd.s32 %s143, 1
      %p147 = scmp.eq.s32.totalorder %s25, 1
      %p148 = scmp.ne.s32.totalorder %s143, %s145
      %p149 = scmp.eq.s32.totalorder %s25, 0
      %p150 = por %p148, %p149
      %p151 = scmp.ne.s32.totalorder %s143, %s145
      %p152 = scmp.eq.s32.totalorder %s30, 1
      %p153 = por %p151, %p152
      %p154 = scmp.ne.s32.totalorder %s145, %s146
      %p155 = scmp.eq.s32.totalorder %s30, 0
      %p156 = por %p154, %p155
      %p157 = scmp.ne.s32.totalorder %s145, %s146
      %p158 = scmp.eq.s32.totalorder %s31, 1
      %p159 = por %p157, %p158
      %p161 = scmp.ne.s32.totalorder %s146, %s160
      %p162 = scmp.eq.s32.totalorder %s31, 0
      %p163 = por %p161, %p162
      %s165 = sadd.s32 %s164, 1
      %p168 = scmp.eq.s32.totalorder %s25, 1
      %p169 = scmp.ne.s32.totalorder %s164, %s166
      %p170 = scmp.eq.s32.totalorder %s25, 0
      %p171 = por %p169, %p170
      %p172 = scmp.ne.s32.totalorder %s164, %s166
      %p173 = scmp.eq.s32.totalorder %s30, 1
      %p174 = por %p172, %p173
      %p175 = scmp.ne.s32.totalorder %s166, %s167
      %p176 = scmp.eq.s32.totalorder %s30, 0
      %p177 = por %p175, %p176
      %p178 = scmp.ne.s32.totalorder %s166, %s167
      %p179 = scmp.eq.s32.totalorder %s31, 1
      %p180 = por %p178, %p179
      %p182 = scmp.ne.s32.totalorder %s167, %s181
      %p183 = scmp.eq.s32.totalorder %s31, 0
      %p184 = por %p182, %p183
      %s186 = sadd.s32 %s185, 1
      %p189 = scmp.eq.s32.totalorder %s25, 1
      %p190 = scmp.ne.s32.totalorder %s185, %s187
      %p191 = scmp.eq.s32.totalorder %s25, 0
      %p192 = por %p190, %p191
      %p193 = scmp.ne.s32.totalorder %s185, %s187
      %p194 = scmp.eq.s32.totalorder %s30, 1
      %p195 = por %p193, %p194
      %p196 = scmp.ne.s32.totalorder %s187, %s188
      %p197 = scmp.eq.s32.totalorder %s30, 0
      %p198 = por %p196, %p197
      %p199 = scmp.ne.s32.totalorder %s187, %s188
      %p200 = scmp.eq.s32.totalorder %s31, 1
      %p201 = por %p199, %p200
      %p203 = scmp.ne.s32.totalorder %s188, %s202
      %p204 = scmp.eq.s32.totalorder %s31, 0
      %p205 = por %p203, %p204
      %s207 = sadd.s32 %s206, 1
      %p210 = scmp.eq.s32.totalorder %s25, 1
      %p211 = scmp.ne.s32.totalorder %s206, %s208
      %p212 = scmp.eq.s32.totalorder %s25, 0
      %p213 = por %p211, %p212
      %p214 = scmp.ne.s32.totalorder %s206, %s208
      %p215 = scmp.eq.s32.totalorder %s30, 1
      %p216 = por %p214, %p215
      %p217 = scmp.ne.s32.totalorder %s208, %s209
      %p218 = scmp.eq.s32.totalorder %s30, 0
      %p219 = por %p217, %p218
      %p220 = scmp.ne.s32.totalorder %s208, %s209
      %p221 = scmp.eq.s32.totalorder %s31, 1
      %p222 = por %p220, %p221
      %p224 = scmp.ne.s32.totalorder %s209, %s223
      %p225 = scmp.eq.s32.totalorder %s31, 0
      %p226 = por %p224, %p225
      %s228 = sadd.s32 %s227, 1
      %p231 = scmp.eq.s32.totalorder %s25, 1
      %p232 = scmp.ne.s32.totalorder %s227, %s229
      %p233 = scmp.eq.s32.totalorder %s25, 0
      %p234 = por %p232, %p233
      %p235 = scmp.ne.s32.totalorder %s227, %s229
      %p236 = scmp.eq.s32.totalorder %s30, 1
      %p237 = por %p235, %p236
      %p238 = scmp.ne.s32.totalorder %s229, %s230
      %p239 = scmp.eq.s32.totalorder %s30, 0
      %p240 = por %p238, %p239
      %p241 = scmp.ne.s32.totalorder %s229, %s230
      %p242 = scmp.eq.s32.totalorder %s31, 1
      %p243 = por %p241, %p242
      %p245 = scmp.ne.s32.totalorder %s230, %s244
      %p246 = scmp.eq.s32.totalorder %s31, 0
      %p247 = por %p245, %p246
      %s249 = sadd.s32 %s248, 1
      %p252 = scmp.eq.s32.totalorder %s25, 1
      %p253 = scmp.ne.s32.totalorder %s248, %s250
      %p254 = scmp.eq.s32.totalorder %s25, 0
      %p255 = por %p253, %p254
      %p256 = scmp.ne.s32.totalorder %s248, %s250
      %p257 = scmp.eq.s32.totalorder %s30, 1
      %p258 = por %p256, %p257
      %p259 = scmp.ne.s32.totalorder %s250, %s251
      %p260 = scmp.eq.s32.totalorder %s30, 0
      %p261 = por %p259, %p260
      %p262 = scmp.ne.s32.totalorder %s250, %s251
      %p263 = scmp.eq.s32.totalorder %s31, 1
      %p264 = por %p262, %p263
      %p266 = scmp.ne.s32.totalorder %s251, %s265
      %p267 = scmp.eq.s32.totalorder %s31, 0
      %p268 = por %p266, %p267
      %s270 = sadd.s32 %s269, 1
      %p273 = scmp.eq.s32.totalorder %s25, 1
      %p274 = scmp.ne.s32.totalorder %s269, %s271
      %p275 = scmp.eq.s32.totalorder %s25, 0
      %p276 = por %p274, %p275
      %p277 = scmp.ne.s32.totalorder %s269, %s271
      %p278 = scmp.eq.s32.totalorder %s30, 1
      %p279 = por %p277, %p278
      %p280 = scmp.ne.s32.totalorder %s271, %s272
      %p281 = scmp.eq.s32.totalorder %s30, 0
      %p282 = por %p280, %p281
      %p283 = scmp.ne.s32.totalorder %s271, %s272
      %p284 = scmp.eq.s32.totalorder %s31, 1
      %p285 = por %p283, %p284
      %p287 = scmp.ne.s32.totalorder %s272, %s286
      %p288 = scmp.eq.s32.totalorder %s31, 0
      %p289 = por %p287, %p288
      %s291 = sadd.s32 %s290, 1
      %p294 = scmp.eq.s32.totalorder %s25, 1
      %p295 = scmp.ne.s32.totalorder %s290, %s292
      %p296 = scmp.eq.s32.totalorder %s25, 0
      %p297 = por %p295, %p296
      %p298 = scmp.ne.s32.totalorder %s290, %s292
      %p299 = scmp.eq.s32.totalorder %s30, 1
      %p300 = por %p298, %p299
      %p301 = scmp.ne.s32.totalorder %s292, %s293
      %p302 = scmp.eq.s32.totalorder %s30, 0
      %p303 = por %p301, %p302
      %p304 = scmp.ne.s32.totalorder %s292, %s293
      %p305 = scmp.eq.s32.totalorder %s31, 1
      %p306 = por %p304, %p305
      %p308 = scmp.ne.s32.totalorder %s293, %s307
      %p309 = scmp.eq.s32.totalorder %s31, 0
      %p310 = por %p308, %p309
      %s312 = sadd.s32 %s311, 1
      %p315 = scmp.eq.s32.totalorder %s25, 1
      %p316 = scmp.ne.s32.totalorder %s311, %s313
      %p317 = scmp.eq.s32.totalorder %s25, 0
      %p318 = por %p316, %p317
      %p319 = scmp.ne.s32.totalorder %s311, %s313
      %p320 = scmp.eq.s32.totalorder %s30, 1
      %p321 = por %p319, %p320
      %p322 = scmp.ne.s32.totalorder %s313, %s314
      %p323 = scmp.eq.s32.totalorder %s30, 0
      %p324 = por %p322, %p323
      %p325 = scmp.ne.s32.totalorder %s313, %s314
      %p326 = scmp.eq.s32.totalorder %s31, 1
      %p327 = por %p325, %p326
      %p329 = scmp.ne.s32.totalorder %s314, %s328
      %p330 = scmp.eq.s32.totalorder %s31, 0
      %p331 = por %p329, %p330
      %s333 = sadd.s32 %s332, 1
      %p336 = scmp.eq.s32.totalorder %s25, 1
      %p337 = scmp.ne.s32.totalorder %s332, %s334
      %p338 = scmp.eq.s32.totalorder %s25, 0
      %p339 = por %p337, %p338
      %p340 = scmp.ne.s32.totalorder %s332, %s334
      %p341 = scmp.eq.s32.totalorder %s30, 1
      %p342 = por %p340, %p341
      %p343 = scmp.ne.s32.totalorder %s334, %s335
      %p344 = scmp.eq.s32.totalorder %s30, 0
      %p345 = por %p343, %p344
      %p346 = scmp.ne.s32.totalorder %s334, %s335
      %p347 = scmp.eq.s32.totalorder %s31, 1
      %p348 = por %p346, %p347
      %p350 = scmp.ne.s32.totalorder %s335, %s349
      %p351 = scmp.eq.s32.totalorder %s31, 0
      %p352 = por %p350, %p351
      %s353 = ssub.s32 %s25, %s32
      %p354 = scmp.eq.s32.totalorder %s353, 0
      %s356 = sadd.s32 %s355, 1
      %s357 = scalar_select %p354, %s355, %s356
      %p360 = pneg %p354
      %p361 = scmp.eq.s32.totalorder %s25, 1
      %p362 = por %p360, %p361
      %p363 = scmp.ne.s32.totalorder %s355, %s358
      %p364 = scmp.eq.s32.totalorder %s25, 0
      %p365 = por %p363, %p364
      %p366 = scmp.ne.s32.totalorder %s355, %s358
      %p367 = scmp.eq.s32.totalorder %s30, 1
      %p368 = por %p366, %p367
      %p369 = scmp.ne.s32.totalorder %s358, %s359
      %p370 = scmp.eq.s32.totalorder %s30, 0
      %p371 = por %p369, %p370
      %p372 = scmp.ne.s32.totalorder %s358, %s359
      %p373 = scmp.eq.s32.totalorder %s31, 1
      %p374 = por %p372, %p373
      %p376 = scmp.ne.s32.totalorder %s359, %s375
      %p377 = scmp.eq.s32.totalorder %s31, 0
      %p378 = por %p376, %p377
      %p379 = scmp.le.s32.totalorder 1, %s25
      %p380 = scmp.lt.s32.totalorder %s25, 3
      %p381 = pnand %p379, %p380
      %p382 = pneg %p381
      // Predicated region
      $region9: #{_lambda_.1} parent=5 // pred_check
        _
      $region10: #{_lambda_.1} parent=5 // pred_check_branch
        %384 = sbr.rel (%p381) target = $region12
      $region11: #{_lambda_.1} parent=5 // pred_region
        %s385 = ssub.s32 %s25, 1
        // Predicated region
        $region13: #{_lambda_.1} parent=11 // pred_check
          %p386 = pneg %p72
        $region14: #{_lambda_.1} parent=11 // pred_check_branch
          %388 = sbr.rel (%p386) target = $region16
        $region15: #{_lambda_.1} parent=11 // pred_region
          %s390 = ssub.s32 1536, 1536
          %391 = vsyncadd [#allocation3], %s390
          %s392 = sshll.u32 [#allocation2], 4
          %s393 = int_to_ptr.vmem [resolvable:$true] %s392
          %398 = dma.hbm_to_vmem [thread:$0]  %s1, 1536, %s393, [#allocation3], 128, 128, 8
        $region16: #{_lambda_.1} parent=11 // pred_fallthru
          _
        // Predicated region
        $region17: #{_lambda_.1} parent=11 // pred_check
          %p399 = pneg %p93
        $region18: #{_lambda_.1} parent=11 // pred_check_branch
          %401 = sbr.rel (%p399) target = $region20
        $region19: #{_lambda_.1} parent=11 // pred_region
          _
        $region20: #{_lambda_.1} parent=11 // pred_fallthru
          _
        // Predicated region
        $region21: #{_lambda_.1} parent=11 // pred_check
          %p402 = pneg %p114
        $region22: #{_lambda_.1} parent=11 // pred_check_branch
          %404 = sbr.rel (%p402) target = $region24
        $region23: #{_lambda_.1} parent=11 // pred_region
          %s406 = ssub.s32 4224, 4224
          %407 = vsyncadd [#allocation5], %s406
          %s408 = sshll.u32 [#allocation4], 4
          %s409 = int_to_ptr.vmem [resolvable:$true] %s408
          %414 = dma.hbm_to_vmem [thread:$0]  %s3, 4224, %s409, [#allocation5], 128, 128, 8
        $region24: #{_lambda_.1} parent=11 // pred_fallthru
          _
        // Predicated region
        $region25: #{_lambda_.1} parent=11 // pred_check
          %p415 = pneg %p135
        $region26: #{_lambda_.1} parent=11 // pred_check_branch
          %417 = sbr.rel (%p415) target = $region28
        $region27: #{_lambda_.1} parent=11 // pred_region
          _
        $region28: #{_lambda_.1} parent=11 // pred_fallthru
          _
        // Predicated region
        $region29: #{_lambda_.1} parent=11 // pred_check
          %p418 = pneg %p156
        $region30: #{_lambda_.1} parent=11 // pred_check_branch
          %420 = sbr.rel (%p418) target = $region32
        $region31: #{_lambda_.1} parent=11 // pred_region
          %s422 = ssub.s32 4224, 4224
          %423 = vsyncadd [#allocation5], %s422
          %s424 = sshll.u32 [#allocation6], 4
          %s425 = int_to_ptr.vmem [resolvable:$true] %s424
          %430 = dma.hbm_to_vmem [thread:$0]  %s5, 4224, %s425, [#allocation5], 128, 128, 8
        $region32: #{_lambda_.1} parent=11 // pred_fallthru
          _
        // Predicated region
        $region33: #{_lambda_.1} parent=11 // pred_check
          %p431 = pneg %p177
        $region34: #{_lambda_.1} parent=11 // pred_check_branch
          %433 = sbr.rel (%p431) target = $region36
        $region35: #{_lambda_.1} parent=11 // pred_region
          _
        $region36: #{_lambda_.1} parent=11 // pred_fallthru
          _
        // Predicated region
        $region37: #{_lambda_.1} parent=11 // pred_check
          %p434 = pneg %p198
        $region38: #{_lambda_.1} parent=11 // pred_check_branch
          %436 = sbr.rel (%p434) target = $region40
        $region39: #{_lambda_.1} parent=11 // pred_region
          %s438 = ssub.s32 4224, 4224
          %439 = vsyncadd [#allocation8], %s438
          %s440 = sshll.u32 [#allocation7], 4
          %s441 = int_to_ptr.vmem [resolvable:$true] %s440
          %446 = dma.hbm_to_vmem [thread:$0]  %s7, 4224, %s441, [#allocation8], 128, 128, 8
        $region40: #{_lambda_.1} parent=11 // pred_fallthru
          _
        // Predicated region
        $region41: #{_lambda_.1} parent=11 // pred_check
          %p447 = pneg %p219
        $region42: #{_lambda_.1} parent=11 // pred_check_branch
          %449 = sbr.rel (%p447) target = $region44
        $region43: #{_lambda_.1} parent=11 // pred_region
          _
        $region44: #{_lambda_.1} parent=11 // pred_fallthru
          _
        // Predicated region
        $region45: #{_lambda_.1} parent=11 // pred_check
          %p450 = pneg %p240
        $region46: #{_lambda_.1} parent=11 // pred_check_branch
          %452 = sbr.rel (%p450) target = $region48
        $region47: #{_lambda_.1} parent=11 // pred_region
          %s454 = ssub.s32 2304, 2304
          %455 = vsyncadd [#allocation8], %s454
          %s456 = sshll.u32 [#allocation9], 4
          %s457 = int_to_ptr.vmem [resolvable:$true] %s456
          %462 = dma.hbm_to_vmem [thread:$0]  %s9, 2304, %s457, [#allocation8], 128, 128, 8
        $region48: #{_lambda_.1} parent=11 // pred_fallthru
          _
        // Predicated region
        $region49: #{_lambda_.1} parent=11 // pred_check
          %p463 = pneg %p261
        $region50: #{_lambda_.1} parent=11 // pred_check_branch
          %465 = sbr.rel (%p463) target = $region52
        $region51: #{_lambda_.1} parent=11 // pred_region
          _
        $region52: #{_lambda_.1} parent=11 // pred_fallthru
          _
        // Predicated region
        $region53: #{_lambda_.1} parent=11 // pred_check
          %p466 = pneg %p282
        $region54: #{_lambda_.1} parent=11 // pred_check_branch
          %468 = sbr.rel (%p466) target = $region56
        $region55: #{_lambda_.1} parent=11 // pred_region
          %s470 = ssub.s32 2304, 2304
          %471 = vsyncadd [#allocation11], %s470
          %s472 = sshll.u32 [#allocation10], 4
          %s473 = int_to_ptr.vmem [resolvable:$true] %s472
          %478 = dma.hbm_to_vmem [thread:$0]  %s11, 2304, %s473, [#allocation11], 128, 128, 8
        $region56: #{_lambda_.1} parent=11 // pred_fallthru
          _
        // Predicated region
        $region57: #{_lambda_.1} parent=11 // pred_check
          %p479 = pneg %p303
        $region58: #{_lambda_.1} parent=11 // pred_check_branch
          %481 = sbr.rel (%p479) target = $region60
        $region59: #{_lambda_.1} parent=11 // pred_region
          _
        $region60: #{_lambda_.1} parent=11 // pred_fallthru
          _
        // Predicated region
        $region61: #{_lambda_.1} parent=11 // pred_check
          %p482 = pneg %p324
        $region62: #{_lambda_.1} parent=11 // pred_check_branch
          %484 = sbr.rel (%p482) target = $region64
        $region63: #{_lambda_.1} parent=11 // pred_region
          %s486 = ssub.s32 2304, 2304
          %487 = vsyncadd [#allocation11], %s486
          %s488 = sshll.u32 [#allocation12], 4
          %s489 = int_to_ptr.vmem [resolvable:$true] %s488
          %494 = dma.hbm_to_vmem [thread:$0]  %s13, 2304, %s489, [#allocation11], 128, 128, 8
        $region64: #{_lambda_.1} parent=11 // pred_fallthru
          _
        // Predicated region
        $region65: #{_lambda_.1} parent=11 // pred_check
          %p495 = pneg %p345
        $region66: #{_lambda_.1} parent=11 // pred_check_branch
          %497 = sbr.rel (%p495) target = $region68
        $region67: #{_lambda_.1} parent=11 // pred_region
          _
        $region68: #{_lambda_.1} parent=11 // pred_fallthru
          _
      $region12: #{_lambda_.1} parent=5 // pred_fallthru
        _
      %p498 = scmp.lt.s32.totalorder %s25, 2
      // Predicated region
      $region69: #{_lambda_.1} parent=5 // pred_check
        %p499 = pneg %p498
      $region70: #{_lambda_.1} parent=5 // pred_check_branch
        %501 = sbr.rel (%p499) target = $region72
      $region71: #{_lambda_.1} parent=5 // pred_region
        // Predicated region
        $region73: #{_lambda_.1} parent=71 // pred_check
          %p502 = pneg %p45
        $region74: #{_lambda_.1} parent=71 // pred_check_branch
          %504 = sbr.rel (%p502) target = $region76
        $region75: #{_lambda_.1} parent=71 // pred_region
          %p505 = scmp.lt.s32.totalorder %s25, 1
          %s506 = scalar_select %p505, %s25, 1
          %s507 = smul.addr %s506, 4
          %s508 = scalar_lea.vmem %s0, %s507
        $region76: #{_lambda_.1} parent=71 // pred_fallthru
          _
      $region72: #{_lambda_.1} parent=5 // pred_fallthru
        _
      %p509 = scmp.le.s32.totalorder 1, %s25
      %p510 = scmp.lt.s32.totalorder %s25, 3
      %p511 = pnand %p509, %p510
      %p512 = pneg %p511
      // Predicated region
      $region77: #{_lambda_.1} parent=5 // pred_check
        _
      $region78: #{_lambda_.1} parent=5 // pred_check_branch
        %514 = sbr.rel (%p511) target = $region80
      $region79: #{_lambda_.1} parent=5 // pred_region
        %s515 = ssub.s32 %s25, 1
        // Predicated region
        $region81: #{_lambda_.1} parent=79 // pred_check
          %p516 = pneg %p72
        $region82: #{_lambda_.1} parent=79 // pred_check_branch
          %518 = sbr.rel (%p516) target = $region84
        $region83: #{_lambda_.1} parent=79 // pred_region
          %519 = dma.done [#allocation3], 1536
        $region84: #{_lambda_.1} parent=79 // pred_fallthru
          _
        // Predicated region
        $region85: #{_lambda_.1} parent=79 // pred_check
          %p520 = pneg %p114
        $region86: #{_lambda_.1} parent=79 // pred_check_branch
          %522 = sbr.rel (%p520) target = $region88
        $region87: #{_lambda_.1} parent=79 // pred_region
          %523 = dma.done [#allocation5], 4224
        $region88: #{_lambda_.1} parent=79 // pred_fallthru
          _
        // Predicated region
        $region89: #{_lambda_.1} parent=79 // pred_check
          %p524 = pneg %p156
        $region90: #{_lambda_.1} parent=79 // pred_check_branch
          %526 = sbr.rel (%p524) target = $region92
        $region91: #{_lambda_.1} parent=79 // pred_region
          %527 = dma.done [#allocation5], 4224
        $region92: #{_lambda_.1} parent=79 // pred_fallthru
          _
        // Predicated region
        $region93: #{_lambda_.1} parent=79 // pred_check
          %p528 = pneg %p198
        $region94: #{_lambda_.1} parent=79 // pred_check_branch
          %530 = sbr.rel (%p528) target = $region96
        $region95: #{_lambda_.1} parent=79 // pred_region
          %531 = dma.done [#allocation8], 4224
        $region96: #{_lambda_.1} parent=79 // pred_fallthru
          _
        // Predicated region
        $region97: #{_lambda_.1} parent=79 // pred_check
          %p532 = pneg %p240
        $region98: #{_lambda_.1} parent=79 // pred_check_branch
          %534 = sbr.rel (%p532) target = $region100
        $region99: #{_lambda_.1} parent=79 // pred_region
          %535 = dma.done [#allocation8], 2304
        $region100: #{_lambda_.1} parent=79 // pred_fallthru
          _
        // Predicated region
        $region101: #{_lambda_.1} parent=79 // pred_check
          %p536 = pneg %p282
        $region102: #{_lambda_.1} parent=79 // pred_check_branch
          %538 = sbr.rel (%p536) target = $region104
        $region103: #{_lambda_.1} parent=79 // pred_region
          %539 = dma.done [#allocation11], 2304
        $region104: #{_lambda_.1} parent=79 // pred_fallthru
          _
        // Predicated region
        $region105: #{_lambda_.1} parent=79 // pred_check
          %p540 = pneg %p324
        $region106: #{_lambda_.1} parent=79 // pred_check_branch
          %542 = sbr.rel (%p540) target = $region108
        $region107: #{_lambda_.1} parent=79 // pred_region
          %543 = dma.done [#allocation11], 2304
        $region108: #{_lambda_.1} parent=79 // pred_fallthru
          _
        %p544 = scmp.lt.s32.totalorder %s30, 1
        %s545 = scalar_select %p544, %s30, 1
        %s546 = smul.addr %s545, 4
        %s547 = scalar_lea.vmem %s0, %s546
        %p548 = pneg %p51
        %p549 = pneg %p48
        %p550 = pneg %p72
        %p551 = pneg %p69
        %p552 = pneg %p93
        %p553 = pneg %p90
        %p554 = pneg %p114
        %p555 = pneg %p111
        %p556 = pneg %p135
        %p557 = pneg %p132
        %p558 = pneg %p156
        %p559 = pneg %p153
        %p560 = pneg %p177
        %p561 = pneg %p174
        %p562 = pneg %p198
        %p563 = pneg %p195
        %p564 = pneg %p219
        %p565 = pneg %p216
        %p566 = pneg %p240
        %p567 = pneg %p237
        %p568 = pneg %p261
        %p569 = pneg %p258
        %p570 = pneg %p282
        %p571 = pneg %p279
        %p572 = pneg %p303
        %p573 = pneg %p300
        %p574 = pneg %p324
        %p575 = pneg %p321
        %p576 = pneg %p345
        %p577 = pneg %p342
        %p578 = pneg %p371
        %p579 = pneg %p368
        %p580 = scmp.lt.s32.totalorder %s30, 1
        %s581 = scalar_select %p580, %s30, 1
        %s582 = smul.addr %s581, 8
        %s583 = scalar_lea.vmem %s15, %s582
        %p584 = scmp.lt.s32.totalorder %s30, 1
        %s585 = scalar_select %p584, %s30, 1
        %s586 = smul.addr %s585, 4
        %s587 = scalar_lea.vmem %s0, %s586
        %p588 = scmp.lt.s32.totalorder %s30, 1
        %s589 = scalar_select %p588, %s30, 1
        %s590 = smul.addr %s589, 8
        %s591 = scalar_lea.vmem %s15, %s590
        %v592 = vld [vmem:[%s587] sm:$0xf]
        %v594 = vrot.slane %v592, 7
        %v596 = vrot.slane %v592, 6
        %v598 = vrot.slane %v592, 5
        %v600 = vrot.slane %v592, 4
        %vm602 = vcmask 1040384
        %v603 = vsel %vm602, 0.0, %v594
        %vm604 = vcmask 1041408
        %v605 = vsel %vm604, %v603, 0.0
        %vm606 = vcmask 1042432
        %v607 = vsel %vm606, %v605, %v596
        %vm608 = vcmask 1043456
        %v609 = vsel %vm608, %v607, 0.0
        %vm610 = vcmask 1044480
        %v611 = vsel %vm610, %v609, %v598
        %vm612 = vcmask 1045504
        %v613 = vsel %vm612, %v611, 0.0
        %vm614 = vcmask 1046528
        %v615 = vsel %vm614, %v613, %v600
        %v616 = vld [vmem:[#allocation2] sm:$0xff]
        %v617 = vld [vmem:[#allocation2 + $0x8] sm:$0xff]
        %v618 = vld [vmem:[#allocation2 + $0x10] sm:$0xff]
        %v619 = vld [vmem:[#allocation2 + $0x18] sm:$0xff]
        %s620 = scalar_lea.vmem [#allocation2], 32
        %v621 = vld [vmem:[%s620] sm:$0xff]
        %v622 = vld [vmem:[%s620 + $0x8] sm:$0xff]
        %v623 = vld [vmem:[%s620 + $0x10] sm:$0xff]
        %v624 = vld [vmem:[%s620 + $0x18] sm:$0xff]
        %v626 = vrot.slane %v615, 1
        %vm627 = vcmask 261120
        %v628 = vsel %vm627, %v626, 0
        %630 = vmatprep.subr.mxu0 0.0
        %631 = vmatpush1.msra.mxu0 %v621
        %632 = vmatprep.subr.mxu0 0.0
        %633 = vmatpush1.msra.mxu0 %v622
        %634 = vmatprep.subr.mxu0 0.0
        %635 = vmatpush1.msra.mxu0 %v623
        %636 = vmatprep.subr.mxu0 0.0
        %637 = vmatpush1.msra.mxu0 %v624
        %638 = vmatprep.subr.mxu0 0.0
        %639 = vmatpush1.msra.mxu0 0.0
        %640 = vmatprep.subr.mxu0 0.0
        %641 = vmatpush1.msra.mxu0 0.0
        %642 = vmatprep.subr.mxu0 0.0
        %643 = vmatpush1.msra.mxu0 0.0
        %644 = vmatprep.subr.mxu0 0.0
        %645 = vmatpush1.msra.mxu0 0.0
        %646 = vmatprep.subr.mxu0 0.0
        %647 = vmatpush1.msra.mxu0 0.0
        %648 = vmatprep.subr.mxu0 0.0
        %649 = vmatpush1.msra.mxu0 0.0
        %650 = vmatprep.subr.mxu0 0.0
        %651 = vmatpush1.msra.mxu0 0.0
        %652 = vmatprep.subr.mxu0 0.0
        %653 = vmatpush1.msra.mxu0 0.0
        %654 = vmatprep.subr.mxu0 0.0
        %655 = vmatpush1.msra.mxu0 0.0
        %656 = vmatprep.subr.mxu0 0.0
        %657 = vmatpush1.msra.mxu0 0.0
        %658 = vmatprep.subr.mxu0 0.0
        %659 = vmatpush1.msra.mxu0 0.0
        %660 = vmatprep.subr.mxu0 0.0
        %661 = vmatpush1.msra.mxu0 0.0
        %662 = vmatprep.subr.mxu0 0.0
        %663 = vmatpush1.msra.mxu0 0.0
        %664 = vmatprep.subr.mxu0 0.0
        %665 = vmatpush1.msra.mxu0 0.0
        %666 = vmatprep.subr.mxu0 0.0
        %667 = vmatpush1.msra.mxu0 0.0
        %668 = vmatprep.subr.mxu0 0.0
        %669 = vmatpush1.msra.mxu0 0.0
        %670 = vmatprep.subr.mxu0 0.0
        %671 = vmatpush1.msra.mxu0 0.0
        %672 = vmatprep.subr.mxu0 0.0
        %673 = vmatpush1.msra.mxu0 0.0
        %674 = vmatprep.subr.mxu0 0.0
        %675 = vmatpush1.msra.mxu0 0.0
        %676 = vmatprep.subr.mxu0 0.0
        %677 = vmatpush1.msra.mxu0 0.0
        %678 = vmatprep.subr.mxu0 0.0
        %679 = vmatpush1.msra.mxu0 0.0
        %680 = vmatprep.subr.mxu0 0.0
        %681 = vmatpush1.msra.mxu0 0.0
        %682 = vmatprep.subr.mxu0 0.0
        %683 = vmatpush1.msra.mxu0 0.0
        %684 = vmatprep.subr.mxu0 0.0
        %685 = vmatpush1.msra.mxu0 0.0
        %686 = vmatprep.subr.mxu0 0.0
        %687 = vmatpush1.msra.mxu0 0.0
        %688 = vmatprep.subr.mxu0 0.0
        %689 = vmatpush1.msra.mxu0 0.0
        %690 = vmatprep.subr.mxu0 0.0
        %691 = vmatpush1.msra.mxu0 0.0
        %692 = vmatprep.subr.mxu0 0.0
        %693 = vmatpush1.msra.mxu0 0.0
        %694 = vmatprep.mubr.f32.mxu0 0.0
        %695 = vmatmul.mubr.f32.gmra.mrb[0].mxu0 %v628
        %v696 = vpop.f32.mrb[0].mxu0
        %v697 = vadd.f32 0.0, %v696
        %v698 = vpop.f32.mrb[0].mxu0
        %699 = vdwg.mxu0
        %v700 = vsel %vm627, %v615, 0
        %702 = vmatprep.subr.mxu0 0.0
        %703 = vmatpush1.msra.mxu0 %v616
        %704 = vmatprep.subr.mxu0 0.0
        %705 = vmatpush1.msra.mxu0 %v617
        %706 = vmatprep.subr.mxu0 0.0
        %707 = vmatpush1.msra.mxu0 %v618
        %708 = vmatprep.subr.mxu0 0.0
        %709 = vmatpush1.msra.mxu0 %v619
        %710 = vmatprep.subr.mxu0 0.0
        %711 = vmatpush1.msra.mxu0 0.0
        %712 = vmatprep.subr.mxu0 0.0
        %713 = vmatpush1.msra.mxu0 0.0
        %714 = vmatprep.subr.mxu0 0.0
        %715 = vmatpush1.msra.mxu0 0.0
        %716 = vmatprep.subr.mxu0 0.0
        %717 = vmatpush1.msra.mxu0 0.0
        %718 = vmatprep.subr.mxu0 0.0
        %719 = vmatpush1.msra.mxu0 0.0
        %720 = vmatprep.subr.mxu0 0.0
        %721 = vmatpush1.msra.mxu0 0.0
        %722 = vmatprep.subr.mxu0 0.0
        %723 = vmatpush1.msra.mxu0 0.0
        %724 = vmatprep.subr.mxu0 0.0
        %725 = vmatpush1.msra.mxu0 0.0
        %726 = vmatprep.subr.mxu0 0.0
        %727 = vmatpush1.msra.mxu0 0.0
        %728 = vmatprep.subr.mxu0 0.0
        %729 = vmatpush1.msra.mxu0 0.0
        %730 = vmatprep.subr.mxu0 0.0
        %731 = vmatpush1.msra.mxu0 0.0
        %732 = vmatprep.subr.mxu0 0.0
        %733 = vmatpush1.msra.mxu0 0.0
        %734 = vmatprep.subr.mxu0 0.0
        %735 = vmatpush1.msra.mxu0 0.0
        %736 = vmatprep.subr.mxu0 0.0
        %737 = vmatpush1.msra.mxu0 0.0
        %738 = vmatprep.subr.mxu0 0.0
        %739 = vmatpush1.msra.mxu0 0.0
        %740 = vmatprep.subr.mxu0 0.0
        %741 = vmatpush1.msra.mxu0 0.0
        %742 = vmatprep.subr.mxu0 0.0
        %743 = vmatpush1.msra.mxu0 0.0
        %744 = vmatprep.subr.mxu0 0.0
        %745 = vmatpush1.msra.mxu0 0.0
        %746 = vmatprep.subr.mxu0 0.0
        %747 = vmatpush1.msra.mxu0 0.0
        %748 = vmatprep.subr.mxu0 0.0
        %749 = vmatpush1.msra.mxu0 0.0
        %750 = vmatprep.subr.mxu0 0.0
        %751 = vmatpush1.msra.mxu0 0.0
        %752 = vmatprep.subr.mxu0 0.0
        %753 = vmatpush1.msra.mxu0 0.0
        %754 = vmatprep.subr.mxu0 0.0
        %755 = vmatpush1.msra.mxu0 0.0
        %756 = vmatprep.subr.mxu0 0.0
        %757 = vmatpush1.msra.mxu0 0.0
        %758 = vmatprep.subr.mxu0 0.0
        %759 = vmatpush1.msra.mxu0 0.0
        %760 = vmatprep.subr.mxu0 0.0
        %761 = vmatpush1.msra.mxu0 0.0
        %762 = vmatprep.subr.mxu0 0.0
        %763 = vmatpush1.msra.mxu0 0.0
        %764 = vmatprep.subr.mxu0 0.0
        %765 = vmatpush1.msra.mxu0 0.0
        %766 = vmatprep.mubr.f32.mxu0 0.0
        %767 = vmatmul.mubr.f32.gmra.mrb[0].mxu0 %v700
        %v768 = vpop.f32.mrb[0].mxu0
        %v769 = vadd.f32 %v697, %v768
        %v770 = vpop.f32.mrb[0].mxu0
        %771 = vdwg.mxu0
        %s772 = scalar_lea.vmem [#allocation2], 64
        %v773 = vld [vmem:[%s772] sm:$0xff]
        %v774 = vld [vmem:[%s772 + $0x8] sm:$0xff]
        %v775 = vld [vmem:[%s772 + $0x10] sm:$0xff]
        %v776 = vld [vmem:[%s772 + $0x18] sm:$0xff]
        %v778 = vrot.slane %v615, 2
        %v779 = vrot.slane 0.0, 2
        %v780 = vsel %vm612, %v778, %v779
        %v781 = vsel %vm627, %v780, 0
        %783 = vmatprep.subr.mxu0 0.0
        %784 = vmatpush1.msra.mxu0 %v773
        %785 = vmatprep.subr.mxu0 0.0
        %786 = vmatpush1.msra.mxu0 %v774
        %787 = vmatprep.subr.mxu0 0.0
        %788 = vmatpush1.msra.mxu0 %v775
        %789 = vmatprep.subr.mxu0 0.0
        %790 = vmatpush1.msra.mxu0 %v776
        %791 = vmatprep.subr.mxu0 0.0
        %792 = vmatpush1.msra.mxu0 0.0
        %793 = vmatprep.subr.mxu0 0.0
        %794 = vmatpush1.msra.mxu0 0.0
        %795 = vmatprep.subr.mxu0 0.0
        %796 = vmatpush1.msra.mxu0 0.0
        %797 = vmatprep.subr.mxu0 0.0
        %798 = vmatpush1.msra.mxu0 0.0
        %799 = vmatprep.subr.mxu0 0.0
        %800 = vmatpush1.msra.mxu0 0.0
        %801 = vmatprep.subr.mxu0 0.0
        %802 = vmatpush1.msra.mxu0 0.0
        %803 = vmatprep.subr.mxu0 0.0
        %804 = vmatpush1.msra.mxu0 0.0
        %805 = vmatprep.subr.mxu0 0.0
        %806 = vmatpush1.msra.mxu0 0.0
        %807 = vmatprep.subr.mxu0 0.0
        %808 = vmatpush1.msra.mxu0 0.0
        %809 = vmatprep.subr.mxu0 0.0
        %810 = vmatpush1.msra.mxu0 0.0
        %811 = vmatprep.subr.mxu0 0.0
        %812 = vmatpush1.msra.mxu0 0.0
        %813 = vmatprep.subr.mxu0 0.0
        %814 = vmatpush1.msra.mxu0 0.0
        %815 = vmatprep.subr.mxu0 0.0
        %816 = vmatpush1.msra.mxu0 0.0
        %817 = vmatprep.subr.mxu0 0.0
        %818 = vmatpush1.msra.mxu0 0.0
        %819 = vmatprep.subr.mxu0 0.0
        %820 = vmatpush1.msra.mxu0 0.0
        %821 = vmatprep.subr.mxu0 0.0
        %822 = vmatpush1.msra.mxu0 0.0
        %823 = vmatprep.subr.mxu0 0.0
        %824 = vmatpush1.msra.mxu0 0.0
        %825 = vmatprep.subr.mxu0 0.0
        %826 = vmatpush1.msra.mxu0 0.0
        %827 = vmatprep.subr.mxu0 0.0
        %828 = vmatpush1.msra.mxu0 0.0
        %829 = vmatprep.subr.mxu0 0.0
        %830 = vmatpush1.msra.mxu0 0.0
        %831 = vmatprep.subr.mxu0 0.0
        %832 = vmatpush1.msra.mxu0 0.0
        %833 = vmatprep.subr.mxu0 0.0
        %834 = vmatpush1.msra.mxu0 0.0
        %835 = vmatprep.subr.mxu0 0.0
        %836 = vmatpush1.msra.mxu0 0.0
        %837 = vmatprep.subr.mxu0 0.0
        %838 = vmatpush1.msra.mxu0 0.0
        %839 = vmatprep.subr.mxu0 0.0
        %840 = vmatpush1.msra.mxu0 0.0
        %841 = vmatprep.subr.mxu0 0.0
        %842 = vmatpush1.msra.mxu0 0.0
        %843 = vmatprep.subr.mxu0 0.0
        %844 = vmatpush1.msra.mxu0 0.0
        %845 = vmatprep.subr.mxu0 0.0
        %846 = vmatpush1.msra.mxu0 0.0
        %847 = vmatprep.mubr.f32.mxu0 0.0
        %848 = vmatmul.mubr.f32.gmra.mrb[0].mxu0 %v781
        %v849 = vpop.f32.mrb[0].mxu0
        %v850 = vadd.f32 0.0, %v849
        %v851 = vpop.f32.mrb[0].mxu0
        %852 = vdwg.mxu0
        %v853 = vadd.f32 %v769, %v850
        %v854 = vld [vmem:[%s2] sm:$0x1]
        %v856 = vlaneseq
        %v857 = vshrl.u32 %v856, 7
        %v858 = vsub.s32 0, %v857
        %v859 = vrot.slane %v854, %v858
        %v861 = vadd.f32 %v853, %v859
        %vm862 = vcmp.ge.f32.partialorder %v861, 0.0
        %v863 = vmul.f32 %v861, 0.01
        %v864 = vsel %vm862, %v861, %v863
        %v866 = vrot.slane %v864, 7
        %v868 = vsel %vm602, 0.0, %v866
        %v869 = vld [vmem:[#allocation4] sm:$0xff]
        %v870 = vld [vmem:[#allocation4 + $0x8] sm:$0xff]
        %v871 = vld [vmem:[#allocation4 + $0x10] sm:$0xff]
        %v872 = vld [vmem:[#allocation4 + $0x18] sm:$0xff]
        %v873 = vld [vmem:[#allocation4 + $0x20] sm:$0xff]
        %v874 = vld [vmem:[#allocation4 + $0x28] sm:$0xff]
        %v875 = vld [vmem:[#allocation4 + $0x30] sm:$0xff]
        %v876 = vld [vmem:[#allocation4 + $0x38] sm:$0xff]
        %v877 = vld [vmem:[#allocation4 + $0x40] sm:$0xff]
        %v878 = vld [vmem:[#allocation4 + $0x48] sm:$0xff]
        %v879 = vld [vmem:[#allocation4 + $0x50] sm:$0xf]
        %s880 = scalar_lea.vmem [#allocation4], 88
        %v881 = vld [vmem:[%s880] sm:$0xff]
        %v882 = vld [vmem:[%s880 + $0x8] sm:$0xff]
        %v883 = vld [vmem:[%s880 + $0x10] sm:$0xff]
        %v884 = vld [vmem:[%s880 + $0x18] sm:$0xff]
        %v885 = vld [vmem:[%s880 + $0x20] sm:$0xff]
        %v886 = vld [vmem:[%s880 + $0x28] sm:$0xff]
        %v887 = vld [vmem:[%s880 + $0x30] sm:$0xff]
        %v888 = vld [vmem:[%s880 + $0x38] sm:$0xff]
        %v889 = vld [vmem:[%s880 + $0x40] sm:$0xff]
        %v890 = vld [vmem:[%s880 + $0x48] sm:$0xff]
        %v891 = vld [vmem:[%s880 + $0x50] sm:$0xf]
        %v893 = vrot.slane %v868, 1
        %vm894 = vcmask 687104
        %v895 = vsel %vm894, %v893, 0
        %v898 = vsel %vm608, %v891, 0
        %900 = vmatprep.subr.mxu0 0.0
        %901 = vmatpush1.msra.mxu0 %v881
        %902 = vmatprep.subr.mxu0 0.0
        %903 = vmatpush1.msra.mxu0 %v882
        %904 = vmatprep.subr.mxu0 0.0
        %905 = vmatpush1.msra.mxu0 %v883
        %906 = vmatprep.subr.mxu0 0.0
        %907 = vmatpush1.msra.mxu0 %v884
        %908 = vmatprep.subr.mxu0 0.0
        %909 = vmatpush1.msra.mxu0 %v885
        %910 = vmatprep.subr.mxu0 0.0
        %911 = vmatpush1.msra.mxu0 %v886
        %912 = vmatprep.subr.mxu0 0.0
        %913 = vmatpush1.msra.mxu0 %v887
        %914 = vmatprep.subr.mxu0 0.0
        %915 = vmatpush1.msra.mxu0 %v888
        %916 = vmatprep.subr.mxu0 0.0
        %917 = vmatpush1.msra.mxu0 %v889
        %918 = vmatprep.subr.mxu0 0.0
        %919 = vmatpush1.msra.mxu0 %v890
        %920 = vmatprep.subr.mxu0 0.0
        %921 = vmatpush1.msra.mxu0 %v898
        %922 = vmatprep.subr.mxu0 0.0
        %923 = vmatpush1.msra.mxu0 0.0
        %924 = vmatprep.subr.mxu0 0.0
        %925 = vmatpush1.msra.mxu0 0.0
        %926 = vmatprep.subr.mxu0 0.0
        %927 = vmatpush1.msra.mxu0 0.0
        %928 = vmatprep.subr.mxu0 0.0
        %929 = vmatpush1.msra.mxu0 0.0
        %930 = vmatprep.subr.mxu0 0.0
        %931 = vmatpush1.msra.mxu0 0.0
        %932 = vmatprep.subr.mxu0 0.0
        %933 = vmatpush1.msra.mxu0 0.0
        %934 = vmatprep.subr.mxu0 0.0
        %935 = vmatpush1.msra.mxu0 0.0
        %936 = vmatprep.subr.mxu0 0.0
        %937 = vmatpush1.msra.mxu0 0.0
        %938 = vmatprep.subr.mxu0 0.0
        %939 = vmatpush1.msra.mxu0 0.0
        %940 = vmatprep.subr.mxu0 0.0
        %941 = vmatpush1.msra.mxu0 0.0
        %942 = vmatprep.subr.mxu0 0.0
        %943 = vmatpush1.msra.mxu0 0.0
        %944 = vmatprep.subr.mxu0 0.0
        %945 = vmatpush1.msra.mxu0 0.0
        %946 = vmatprep.subr.mxu0 0.0
        %947 = vmatpush1.msra.mxu0 0.0
        %948 = vmatprep.subr.mxu0 0.0
        %949 = vmatpush1.msra.mxu0 0.0
        %950 = vmatprep.subr.mxu0 0.0
        %951 = vmatpush1.msra.mxu0 0.0
        %952 = vmatprep.subr.mxu0 0.0
        %953 = vmatpush1.msra.mxu0 0.0
        %954 = vmatprep.subr.mxu0 0.0
        %955 = vmatpush1.msra.mxu0 0.0
        %956 = vmatprep.subr.mxu0 0.0
        %957 = vmatpush1.msra.mxu0 0.0
        %958 = vmatprep.subr.mxu0 0.0
        %959 = vmatpush1.msra.mxu0 0.0
        %960 = vmatprep.subr.mxu0 0.0
        %961 = vmatpush1.msra.mxu0 0.0
        %962 = vmatprep.subr.mxu0 0.0
        %963 = vmatpush1.msra.mxu0 0.0
        %964 = vmatprep.mubr.f32.mxu0 0.0
        %965 = vmatmul.mubr.f32.gmra.mrb[0].mxu0 %v895
        %v966 = vpop.f32.mrb[0].mxu0
        %v967 = vadd.f32 0.0, %v966
        %v968 = vpop.f32.mrb[0].mxu0
        %969 = vdwg.mxu0
        %v970 = vsel %vm894, %v868, 0
        %v973 = vsel %vm608, %v879, 0
        %975 = vmatprep.subr.mxu0 0.0
        %976 = vmatpush1.msra.mxu0 %v869
        %977 = vmatprep.subr.mxu0 0.0
        %978 = vmatpush1.msra.mxu0 %v870
        %979 = vmatprep.subr.mxu0 0.0
        %980 = vmatpush1.msra.mxu0 %v871
        %981 = vmatprep.subr.mxu0 0.0
        %982 = vmatpush1.msra.mxu0 %v872
        %983 = vmatprep.subr.mxu0 0.0
        %984 = vmatpush1.msra.mxu0 %v873
        %985 = vmatprep.subr.mxu0 0.0
        %986 = vmatpush1.msra.mxu0 %v874
        %987 = vmatprep.subr.mxu0 0.0
        %988 = vmatpush1.msra.mxu0 %v875
        %989 = vmatprep.subr.mxu0 0.0
        %990 = vmatpush1.msra.mxu0 %v876
        %991 = vmatprep.subr.mxu0 0.0
        %992 = vmatpush1.msra.mxu0 %v877
        %993 = vmatprep.subr.mxu0 0.0
        %994 = vmatpush1.msra.mxu0 %v878
        %995 = vmatprep.subr.mxu0 0.0
        %996 = vmatpush1.msra.mxu0 %v973
        %997 = vmatprep.subr.mxu0 0.0
        %998 = vmatpush1.msra.mxu0 0.0
        %999 = vmatprep.subr.mxu0 0.0
        %1000 = vmatpush1.msra.mxu0 0.0
        %1001 = vmatprep.subr.mxu0 0.0
        %1002 = vmatpush1.msra.mxu0 0.0
        %1003 = vmatprep.subr.mxu0 0.0
        %1004 = vmatpush1.msra.mxu0 0.0
        %1005 = vmatprep.subr.mxu0 0.0
        %1006 = vmatpush1.msra.mxu0 0.0
        %1007 = vmatprep.subr.mxu0 0.0
        %1008 = vmatpush1.msra.mxu0 0.0
        %1009 = vmatprep.subr.mxu0 0.0
        %1010 = vmatpush1.msra.mxu0 0.0
        %1011 = vmatprep.subr.mxu0 0.0
        %1012 = vmatpush1.msra.mxu0 0.0
        %1013 = vmatprep.subr.mxu0 0.0
        %1014 = vmatpush1.msra.mxu0 0.0
        %1015 = vmatprep.subr.mxu0 0.0
        %1016 = vmatpush1.msra.mxu0 0.0
        %1017 = vmatprep.subr.mxu0 0.0
        %1018 = vmatpush1.msra.mxu0 0.0
        %1019 = vmatprep.subr.mxu0 0.0
        %1020 = vmatpush1.msra.mxu0 0.0
        %1021 = vmatprep.subr.mxu0 0.0
        %1022 = vmatpush1.msra.mxu0 0.0
        %1023 = vmatprep.subr.mxu0 0.0
        %1024 = vmatpush1.msra.mxu0 0.0
        %1025 = vmatprep.subr.mxu0 0.0
        %1026 = vmatpush1.msra.mxu0 0.0
        %1027 = vmatprep.subr.mxu0 0.0
        %1028 = vmatpush1.msra.mxu0 0.0
        %1029 = vmatprep.subr.mxu0 0.0
        %1030 = vmatpush1.msra.mxu0 0.0
        %1031 = vmatprep.subr.mxu0 0.0
        %1032 = vmatpush1.msra.mxu0 0.0
        %1033 = vmatprep.subr.mxu0 0.0
        %1034 = vmatpush1.msra.mxu0 0.0
        %1035 = vmatprep.subr.mxu0 0.0
        %1036 = vmatpush1.msra.mxu0 0.0
        %1037 = vmatprep.subr.mxu0 0.0
        %1038 = vmatpush1.msra.mxu0 0.0
        %1039 = vmatprep.mubr.f32.mxu0 0.0
        %1040 = vmatmul.mubr.f32.gmra.mrb[0].mxu0 %v970
        %v1041 = vpop.f32.mrb[0].mxu0
        %v1042 = vadd.f32 %v967, %v1041
        %v1043 = vpop.f32.mrb[0].mxu0
        %1044 = vdwg.mxu0
        %s1045 = scalar_lea.vmem [#allocation4], 176
        %v1046 = vld [vmem:[%s1045] sm:$0xff]
        %v1047 = vld [vmem:[%s1045 + $0x8] sm:$0xff]
        %v1048 = vld [vmem:[%s1045 + $0x10] sm:$0xff]
        %v1049 = vld [vmem:[%s1045 + $0x18] sm:$0xff]
        %v1050 = vld [vmem:[%s1045 + $0x20] sm:$0xff]
        %v1051 = vld [vmem:[%s1045 + $0x28] sm:$0xff]
        %v1052 = vld [vmem:[%s1045 + $0x30] sm:$0xff]
        %v1053 = vld [vmem:[%s1045 + $0x38] sm:$0xff]
        %v1054 = vld [vmem:[%s1045 + $0x40] sm:$0xff]
        %v1055 = vld [vmem:[%s1045 + $0x48] sm:$0xff]
        %v1056 = vld [vmem:[%s1045 + $0x50] sm:$0xf]
        %v1057 = vrot.slane %v868, 2
        %v1058 = vsel %vm612, %v1057, %v779
        %v1059 = vsel %vm894, %v1058, 0
        %v1062 = vsel %vm608, %v1056, 0
        %1064 = vmatprep.subr.mxu0 0.0
        %1065 = vmatpush1.msra.mxu0 %v1046
        %1066 = vmatprep.subr.mxu0 0.0
        %1067 = vmatpush1.msra.mxu0 %v1047
        %1068 = vmatprep.subr.mxu0 0.0
        %1069 = vmatpush1.msra.mxu0 %v1048
        %1070 = vmatprep.subr.mxu0 0.0
        %1071 = vmatpush1.msra.mxu0 %v1049
        %1072 = vmatprep.subr.mxu0 0.0
        %1073 = vmatpush1.msra.mxu0 %v1050
        %1074 = vmatprep.subr.mxu0 0.0
        %1075 = vmatpush1.msra.mxu0 %v1051
        %1076 = vmatprep.subr.mxu0 0.0
        %1077 = vmatpush1.msra.mxu0 %v1052
        %1078 = vmatprep.subr.mxu0 0.0
        %1079 = vmatpush1.msra.mxu0 %v1053
        %1080 = vmatprep.subr.mxu0 0.0
        %1081 = vmatpush1.msra.mxu0 %v1054
        %1082 = vmatprep.subr.mxu0 0.0
        %1083 = vmatpush1.msra.mxu0 %v1055
        %1084 = vmatprep.subr.mxu0 0.0
        %1085 = vmatpush1.msra.mxu0 %v1062
        %1086 = vmatprep.subr.mxu0 0.0
        %1087 = vmatpush1.msra.mxu0 0.0
        %1088 = vmatprep.subr.mxu0 0.0
        %1089 = vmatpush1.msra.mxu0 0.0
        %1090 = vmatprep.subr.mxu0 0.0
        %1091 = vmatpush1.msra.mxu0 0.0
        %1092 = vmatprep.subr.mxu0 0.0
        %1093 = vmatpush1.msra.mxu0 0.0
        %1094 = vmatprep.subr.mxu0 0.0
        %1095 = vmatpush1.msra.mxu0 0.0
        %1096 = vmatprep.subr.mxu0 0.0
        %1097 = vmatpush1.msra.mxu0 0.0
        %1098 = vmatprep.subr.mxu0 0.0
        %1099 = vmatpush1.msra.mxu0 0.0
        %1100 = vmatprep.subr.mxu0 0.0
        %1101 = vmatpush1.msra.mxu0 0.0
        %1102 = vmatprep.subr.mxu0 0.0
        %1103 = vmatpush1.msra.mxu0 0.0
        %1104 = vmatprep.subr.mxu0 0.0
        %1105 = vmatpush1.msra.mxu0 0.0
        %1106 = vmatprep.subr.mxu0 0.0
        %1107 = vmatpush1.msra.mxu0 0.0
        %1108 = vmatprep.subr.mxu0 0.0
        %1109 = vmatpush1.msra.mxu0 0.0
        %1110 = vmatprep.subr.mxu0 0.0
        %1111 = vmatpush1.msra.mxu0 0.0
        %1112 = vmatprep.subr.mxu0 0.0
        %1113 = vmatpush1.msra.mxu0 0.0
        %1114 = vmatprep.subr.mxu0 0.0
        %1115 = vmatpush1.msra.mxu0 0.0
        %1116 = vmatprep.subr.mxu0 0.0
        %1117 = vmatpush1.msra.mxu0 0.0
        %1118 = vmatprep.subr.mxu0 0.0
        %1119 = vmatpush1.msra.mxu0 0.0
        %1120 = vmatprep.subr.mxu0 0.0
        %1121 = vmatpush1.msra.mxu0 0.0
        %1122 = vmatprep.subr.mxu0 0.0
        %1123 = vmatpush1.msra.mxu0 0.0
        %1124 = vmatprep.subr.mxu0 0.0
        %1125 = vmatpush1.msra.mxu0 0.0
        %1126 = vmatprep.subr.mxu0 0.0
        %1127 = vmatpush1.msra.mxu0 0.0
        %1128 = vmatprep.mubr.f32.mxu0 0.0
        %1129 = vmatmul.mubr.f32.gmra.mrb[0].mxu0 %v1059
        %v1130 = vpop.f32.mrb[0].mxu0
        %v1131 = vadd.f32 0.0, %v1130
        %v1132 = vpop.f32.mrb[0].mxu0
        %1133 = vdwg.mxu0
        %v1134 = vadd.f32 %v1042, %v1131
        %v1135 = vld [vmem:[%s4] sm:$0x1]
        %v1137 = vlaneseq
        %v1138 = vshrl.u32 %v1137, 7
        %v1139 = vsub.s32 0, %v1138
        %v1140 = vrot.slane %v1135, %v1139
        %v1142 = vadd.f32 %v1134, %v1140
        %vm1143 = vcmp.ge.f32.partialorder %v1142, 0.0
        %v1144 = vmul.f32 %v1142, 0.01
        %v1145 = vsel %vm1143, %v1142, %v1144
        %v1147 = vrot.slane %v1145, 7
        %v1149 = vsel %vm602, 0.0, %v1147
        %v1150 = vld [vmem:[#allocation6] sm:$0xff]
        %v1151 = vld [vmem:[#allocation6 + $0x8] sm:$0xff]
        %v1152 = vld [vmem:[#allocation6 + $0x10] sm:$0xff]
        %v1153 = vld [vmem:[#allocation6 + $0x18] sm:$0xff]
        %v1154 = vld [vmem:[#allocation6 + $0x20] sm:$0xff]
        %v1155 = vld [vmem:[#allocation6 + $0x28] sm:$0xff]
        %v1156 = vld [vmem:[#allocation6 + $0x30] sm:$0xff]
        %v1157 = vld [vmem:[#allocation6 + $0x38] sm:$0xff]
        %v1158 = vld [vmem:[#allocation6 + $0x40] sm:$0xff]
        %v1159 = vld [vmem:[#allocation6 + $0x48] sm:$0xff]
        %v1160 = vld [vmem:[#allocation6 + $0x50] sm:$0xf]
        %s1161 = scalar_lea.vmem [#allocation6], 88
        %v1162 = vld [vmem:[%s1161] sm:$0xff]
        %v1163 = vld [vmem:[%s1161 + $0x8] sm:$0xff]
        %v1164 = vld [vmem:[%s1161 + $0x10] sm:$0xff]
        %v1165 = vld [vmem:[%s1161 + $0x18] sm:$0xff]
        %v1166 = vld [vmem:[%s1161 + $0x20] sm:$0xff]
        %v1167 = vld [vmem:[%s1161 + $0x28] sm:$0xff]
        %v1168 = vld [vmem:[%s1161 + $0x30] sm:$0xff]
        %v1169 = vld [vmem:[%s1161 + $0x38] sm:$0xff]
        %v1170 = vld [vmem:[%s1161 + $0x40] sm:$0xff]
        %v1171 = vld [vmem:[%s1161 + $0x48] sm:$0xff]
        %v1172 = vld [vmem:[%s1161 + $0x50] sm:$0xf]
        %v1174 = vrot.slane %v1149, 1
        %v1175 = vsel %vm894, %v1174, 0
        %v1178 = vsel %vm608, %v1172, 0
        %1180 = vmatprep.subr.mxu0 0.0
        %1181 = vmatpush1.msra.mxu0 %v1162
        %1182 = vmatprep.subr.mxu0 0.0
        %1183 = vmatpush1.msra.mxu0 %v1163
        %1184 = vmatprep.subr.mxu0 0.0
        %1185 = vmatpush1.msra.mxu0 %v1164
        %1186 = vmatprep.subr.mxu0 0.0
        %1187 = vmatpush1.msra.mxu0 %v1165
        %1188 = vmatprep.subr.mxu0 0.0
        %1189 = vmatpush1.msra.mxu0 %v1166
        %1190 = vmatprep.subr.mxu0 0.0
        %1191 = vmatpush1.msra.mxu0 %v1167
        %1192 = vmatprep.subr.mxu0 0.0
        %1193 = vmatpush1.msra.mxu0 %v1168
        %1194 = vmatprep.subr.mxu0 0.0
        %1195 = vmatpush1.msra.mxu0 %v1169
        %1196 = vmatprep.subr.mxu0 0.0
        %1197 = vmatpush1.msra.mxu0 %v1170
        %1198 = vmatprep.subr.mxu0 0.0
        %1199 = vmatpush1.msra.mxu0 %v1171
        %1200 = vmatprep.subr.mxu0 0.0
        %1201 = vmatpush1.msra.mxu0 %v1178
        %1202 = vmatprep.subr.mxu0 0.0
        %1203 = vmatpush1.msra.mxu0 0.0
        %1204 = vmatprep.subr.mxu0 0.0
        %1205 = vmatpush1.msra.mxu0 0.0
        %1206 = vmatprep.subr.mxu0 0.0
        %1207 = vmatpush1.msra.mxu0 0.0
        %1208 = vmatprep.subr.mxu0 0.0
        %1209 = vmatpush1.msra.mxu0 0.0
        %1210 = vmatprep.subr.mxu0 0.0
        %1211 = vmatpush1.msra.mxu0 0.0
        %1212 = vmatprep.subr.mxu0 0.0
        %1213 = vmatpush1.msra.mxu0 0.0
        %1214 = vmatprep.subr.mxu0 0.0
        %1215 = vmatpush1.msra.mxu0 0.0
        %1216 = vmatprep.subr.mxu0 0.0
        %1217 = vmatpush1.msra.mxu0 0.0
        %1218 = vmatprep.subr.mxu0 0.0
        %1219 = vmatpush1.msra.mxu0 0.0
        %1220 = vmatprep.subr.mxu0 0.0
        %1221 = vmatpush1.msra.mxu0 0.0
        %1222 = vmatprep.subr.mxu0 0.0
        %1223 = vmatpush1.msra.mxu0 0.0
        %1224 = vmatprep.subr.mxu0 0.0
        %1225 = vmatpush1.msra.mxu0 0.0
        %1226 = vmatprep.subr.mxu0 0.0
        %1227 = vmatpush1.msra.mxu0 0.0
        %1228 = vmatprep.subr.mxu0 0.0
        %1229 = vmatpush1.msra.mxu0 0.0
        %1230 = vmatprep.subr.mxu0 0.0
        %1231 = vmatpush1.msra.mxu0 0.0
        %1232 = vmatprep.subr.mxu0 0.0
        %1233 = vmatpush1.msra.mxu0 0.0
        %1234 = vmatprep.subr.mxu0 0.0
        %1235 = vmatpush1.msra.mxu0 0.0
        %1236 = vmatprep.subr.mxu0 0.0
        %1237 = vmatpush1.msra.mxu0 0.0
        %1238 = vmatprep.subr.mxu0 0.0
        %1239 = vmatpush1.msra.mxu0 0.0
        %1240 = vmatprep.subr.mxu0 0.0
        %1241 = vmatpush1.msra.mxu0 0.0
        %1242 = vmatprep.subr.mxu0 0.0
        %1243 = vmatpush1.msra.mxu0 0.0
        %1244 = vmatprep.mubr.f32.mxu0 0.0
        %1245 = vmatmul.mubr.f32.gmra.mrb[0].mxu0 %v1175
        %v1246 = vpop.f32.mrb[0].mxu0
        %v1247 = vadd.f32 0.0, %v1246
        %v1248 = vpop.f32.mrb[0].mxu0
        %1249 = vdwg.mxu0
        %v1250 = vsel %vm894, %v1149, 0
        %v1253 = vsel %vm608, %v1160, 0
        %1255 = vmatprep.subr.mxu0 0.0
        %1256 = vmatpush1.msra.mxu0 %v1150
        %1257 = vmatprep.subr.mxu0 0.0
        %1258 = vmatpush1.msra.mxu0 %v1151
        %1259 = vmatprep.subr.mxu0 0.0
        %1260 = vmatpush1.msra.mxu0 %v1152
        %1261 = vmatprep.subr.mxu0 0.0
        %1262 = vmatpush1.msra.mxu0 %v1153
        %1263 = vmatprep.subr.mxu0 0.0
        %1264 = vmatpush1.msra.mxu0 %v1154
        %1265 = vmatprep.subr.mxu0 0.0
        %1266 = vmatpush1.msra.mxu0 %v1155
        %1267 = vmatprep.subr.mxu0 0.0
        %1268 = vmatpush1.msra.mxu0 %v1156
        %1269 = vmatprep.subr.mxu0 0.0
        %1270 = vmatpush1.msra.mxu0 %v1157
        %1271 = vmatprep.subr.mxu0 0.0
        %1272 = vmatpush1.msra.mxu0 %v1158
        %1273 = vmatprep.subr.mxu0 0.0
        %1274 = vmatpush1.msra.mxu0 %v1159
        %1275 = vmatprep.subr.mxu0 0.0
        %1276 = vmatpush1.msra.mxu0 %v1253
        %1277 = vmatprep.subr.mxu0 0.0
        %1278 = vmatpush1.msra.mxu0 0.0
        %1279 = vmatprep.subr.mxu0 0.0
        %1280 = vmatpush1.msra.mxu0 0.0
        %1281 = vmatprep.subr.mxu0 0.0
        %1282 = vmatpush1.msra.mxu0 0.0
        %1283 = vmatprep.subr.mxu0 0.0
        %1284 = vmatpush1.msra.mxu0 0.0
        %1285 = vmatprep.subr.mxu0 0.0
        %1286 = vmatpush1.msra.mxu0 0.0
        %1287 = vmatprep.subr.mxu0 0.0
        %1288 = vmatpush1.msra.mxu0 0.0
        %1289 = vmatprep.subr.mxu0 0.0
        %1290 = vmatpush1.msra.mxu0 0.0
        %1291 = vmatprep.subr.mxu0 0.0
        %1292 = vmatpush1.msra.mxu0 0.0
        %1293 = vmatprep.subr.mxu0 0.0
        %1294 = vmatpush1.msra.mxu0 0.0
        %1295 = vmatprep.subr.mxu0 0.0
        %1296 = vmatpush1.msra.mxu0 0.0
        %1297 = vmatprep.subr.mxu0 0.0
        %1298 = vmatpush1.msra.mxu0 0.0
        %1299 = vmatprep.subr.mxu0 0.0
        %1300 = vmatpush1.msra.mxu0 0.0
        %1301 = vmatprep.subr.mxu0 0.0
        %1302 = vmatpush1.msra.mxu0 0.0
        %1303 = vmatprep.subr.mxu0 0.0
        %1304 = vmatpush1.msra.mxu0 0.0
        %1305 = vmatprep.subr.mxu0 0.0
        %1306 = vmatpush1.msra.mxu0 0.0
        %1307 = vmatprep.subr.mxu0 0.0
        %1308 = vmatpush1.msra.mxu0 0.0
        %1309 = vmatprep.subr.mxu0 0.0
        %1310 = vmatpush1.msra.mxu0 0.0
        %1311 = vmatprep.subr.mxu0 0.0
        %1312 = vmatpush1.msra.mxu0 0.0
        %1313 = vmatprep.subr.mxu0 0.0
        %1314 = vmatpush1.msra.mxu0 0.0
        %1315 = vmatprep.subr.mxu0 0.0
        %1316 = vmatpush1.msra.mxu0 0.0
        %1317 = vmatprep.subr.mxu0 0.0
        %1318 = vmatpush1.msra.mxu0 0.0
        %1319 = vmatprep.mubr.f32.mxu0 0.0
        %1320 = vmatmul.mubr.f32.gmra.mrb[0].mxu0 %v1250
        %v1321 = vpop.f32.mrb[0].mxu0
        %v1322 = vadd.f32 %v1247, %v1321
        %v1323 = vpop.f32.mrb[0].mxu0
        %1324 = vdwg.mxu0
        %s1325 = scalar_lea.vmem [#allocation6], 176
        %v1326 = vld [vmem:[%s1325] sm:$0xff]
        %v1327 = vld [vmem:[%s1325 + $0x8] sm:$0xff]
        %v1328 = vld [vmem:[%s1325 + $0x10] sm:$0xff]
        %v1329 = vld [vmem:[%s1325 + $0x18] sm:$0xff]
        %v1330 = vld [vmem:[%s1325 + $0x20] sm:$0xff]
        %v1331 = vld [vmem:[%s1325 + $0x28] sm:$0xff]
        %v1332 = vld [vmem:[%s1325 + $0x30] sm:$0xff]
        %v1333 = vld [vmem:[%s1325 + $0x38] sm:$0xff]
        %v1334 = vld [vmem:[%s1325 + $0x40] sm:$0xff]
        %v1335 = vld [vmem:[%s1325 + $0x48] sm:$0xff]
        %v1336 = vld [vmem:[%s1325 + $0x50] sm:$0xf]
        %v1337 = vrot.slane %v1149, 2
        %v1338 = vsel %vm612, %v1337, %v779
        %v1339 = vsel %vm894, %v1338, 0
        %v1342 = vsel %vm608, %v1336, 0
        %1344 = vmatprep.subr.mxu0 0.0
        %1345 = vmatpush1.msra.mxu0 %v1326
        %1346 = vmatprep.subr.mxu0 0.0
        %1347 = vmatpush1.msra.mxu0 %v1327
        %1348 = vmatprep.subr.mxu0 0.0
        %1349 = vmatpush1.msra.mxu0 %v1328
        %1350 = vmatprep.subr.mxu0 0.0
        %1351 = vmatpush1.msra.mxu0 %v1329
        %1352 = vmatprep.subr.mxu0 0.0
        %1353 = vmatpush1.msra.mxu0 %v1330
        %1354 = vmatprep.subr.mxu0 0.0
        %1355 = vmatpush1.msra.mxu0 %v1331
        %1356 = vmatprep.subr.mxu0 0.0
        %1357 = vmatpush1.msra.mxu0 %v1332
        %1358 = vmatprep.subr.mxu0 0.0
        %1359 = vmatpush1.msra.mxu0 %v1333
        %1360 = vmatprep.subr.mxu0 0.0
        %1361 = vmatpush1.msra.mxu0 %v1334
        %1362 = vmatprep.subr.mxu0 0.0
        %1363 = vmatpush1.msra.mxu0 %v1335
        %1364 = vmatprep.subr.mxu0 0.0
        %1365 = vmatpush1.msra.mxu0 %v1342
        %1366 = vmatprep.subr.mxu0 0.0
        %1367 = vmatpush1.msra.mxu0 0.0
        %1368 = vmatprep.subr.mxu0 0.0
        %1369 = vmatpush1.msra.mxu0 0.0
        %1370 = vmatprep.subr.mxu0 0.0
        %1371 = vmatpush1.msra.mxu0 0.0
        %1372 = vmatprep.subr.mxu0 0.0
        %1373 = vmatpush1.msra.mxu0 0.0
        %1374 = vmatprep.subr.mxu0 0.0
        %1375 = vmatpush1.msra.mxu0 0.0
        %1376 = vmatprep.subr.mxu0 0.0
        %1377 = vmatpush1.msra.mxu0 0.0
        %1378 = vmatprep.subr.mxu0 0.0
        %1379 = vmatpush1.msra.mxu0 0.0
        %1380 = vmatprep.subr.mxu0 0.0
        %1381 = vmatpush1.msra.mxu0 0.0
        %1382 = vmatprep.subr.mxu0 0.0
        %1383 = vmatpush1.msra.mxu0 0.0
        %1384 = vmatprep.subr.mxu0 0.0
        %1385 = vmatpush1.msra.mxu0 0.0
        %1386 = vmatprep.subr.mxu0 0.0
        %1387 = vmatpush1.msra.mxu0 0.0
        %1388 = vmatprep.subr.mxu0 0.0
        %1389 = vmatpush1.msra.mxu0 0.0
        %1390 = vmatprep.subr.mxu0 0.0
        %1391 = vmatpush1.msra.mxu0 0.0
        %1392 = vmatprep.subr.mxu0 0.0
        %1393 = vmatpush1.msra.mxu0 0.0
        %1394 = vmatprep.subr.mxu0 0.0
        %1395 = vmatpush1.msra.mxu0 0.0
        %1396 = vmatprep.subr.mxu0 0.0
        %1397 = vmatpush1.msra.mxu0 0.0
        %1398 = vmatprep.subr.mxu0 0.0
        %1399 = vmatpush1.msra.mxu0 0.0
        %1400 = vmatprep.subr.mxu0 0.0
        %1401 = vmatpush1.msra.mxu0 0.0
        %1402 = vmatprep.subr.mxu0 0.0
        %1403 = vmatpush1.msra.mxu0 0.0
        %1404 = vmatprep.subr.mxu0 0.0
        %1405 = vmatpush1.msra.mxu0 0.0
        %1406 = vmatprep.subr.mxu0 0.0
        %1407 = vmatpush1.msra.mxu0 0.0
        %1408 = vmatprep.mubr.f32.mxu0 0.0
        %1409 = vmatmul.mubr.f32.gmra.mrb[0].mxu0 %v1339
        %v1410 = vpop.f32.mrb[0].mxu0
        %v1411 = vadd.f32 0.0, %v1410
        %v1412 = vpop.f32.mrb[0].mxu0
        %1413 = vdwg.mxu0
        %v1414 = vadd.f32 %v1322, %v1411
        %v1415 = vld [vmem:[%s6] sm:$0x1]
        %v1417 = vlaneseq
        %v1418 = vshrl.u32 %v1417, 7
        %v1419 = vsub.s32 0, %v1418
        %v1420 = vrot.slane %v1415, %v1419
        %v1422 = vadd.f32 %v1414, %v1420
        %v1423 = vadd.f32 %v1422, %v864
        %vm1424 = vcmp.ge.f32.partialorder %v1423, 0.0
        %v1425 = vmul.f32 %v1423, 0.01
        %v1426 = vsel %vm1424, %v1423, %v1425
        %v1428 = vrot.slane %v1426, 7
        %v1430 = vsel %vm602, 0.0, %v1428
        %v1431 = vld [vmem:[#allocation7] sm:$0xff]
        %v1432 = vld [vmem:[#allocation7 + $0x8] sm:$0xff]
        %v1433 = vld [vmem:[#allocation7 + $0x10] sm:$0xff]
        %v1434 = vld [vmem:[#allocation7 + $0x18] sm:$0xff]
        %v1435 = vld [vmem:[#allocation7 + $0x20] sm:$0xff]
        %v1436 = vld [vmem:[#allocation7 + $0x28] sm:$0xff]
        %v1437 = vld [vmem:[#allocation7 + $0x30] sm:$0xff]
        %v1438 = vld [vmem:[#allocation7 + $0x38] sm:$0xff]
        %v1439 = vld [vmem:[#allocation7 + $0x40] sm:$0xff]
        %v1440 = vld [vmem:[#allocation7 + $0x48] sm:$0xff]
        %v1441 = vld [vmem:[#allocation7 + $0x50] sm:$0xf]
        %s1442 = scalar_lea.vmem [#allocation7], 88
        %v1443 = vld [vmem:[%s1442] sm:$0xff]
        %v1444 = vld [vmem:[%s1442 + $0x8] sm:$0xff]
        %v1445 = vld [vmem:[%s1442 + $0x10] sm:$0xff]
        %v1446 = vld [vmem:[%s1442 + $0x18] sm:$0xff]
        %v1447 = vld [vmem:[%s1442 + $0x20] sm:$0xff]
        %v1448 = vld [vmem:[%s1442 + $0x28] sm:$0xff]
        %v1449 = vld [vmem:[%s1442 + $0x30] sm:$0xff]
        %v1450 = vld [vmem:[%s1442 + $0x38] sm:$0xff]
        %v1451 = vld [vmem:[%s1442 + $0x40] sm:$0xff]
        %v1452 = vld [vmem:[%s1442 + $0x48] sm:$0xff]
        %v1453 = vld [vmem:[%s1442 + $0x50] sm:$0xf]
        %v1455 = vrot.slane %v1430, 1
        %v1456 = vsel %vm894, %v1455, 0
        %v1459 = vsel %vm608, %v1453, 0
        %1461 = vmatprep.subr.mxu0 0.0
        %1462 = vmatpush1.msra.mxu0 %v1443
        %1463 = vmatprep.subr.mxu0 0.0
        %1464 = vmatpush1.msra.mxu0 %v1444
        %1465 = vmatprep.subr.mxu0 0.0
        %1466 = vmatpush1.msra.mxu0 %v1445
        %1467 = vmatprep.subr.mxu0 0.0
        %1468 = vmatpush1.msra.mxu0 %v1446
        %1469 = vmatprep.subr.mxu0 0.0
        %1470 = vmatpush1.msra.mxu0 %v1447
        %1471 = vmatprep.subr.mxu0 0.0
        %1472 = vmatpush1.msra.mxu0 %v1448
        %1473 = vmatprep.subr.mxu0 0.0
        %1474 = vmatpush1.msra.mxu0 %v1449
        %1475 = vmatprep.subr.mxu0 0.0
        %1476 = vmatpush1.msra.mxu0 %v1450
        %1477 = vmatprep.subr.mxu0 0.0
        %1478 = vmatpush1.msra.mxu0 %v1451
        %1479 = vmatprep.subr.mxu0 0.0
        %1480 = vmatpush1.msra.mxu0 %v1452
        %1481 = vmatprep.subr.mxu0 0.0
        %1482 = vmatpush1.msra.mxu0 %v1459
        %1483 = vmatprep.subr.mxu0 0.0
        %1484 = vmatpush1.msra.mxu0 0.0
        %1485 = vmatprep.subr.mxu0 0.0
        %1486 = vmatpush1.msra.mxu0 0.0
        %1487 = vmatprep.subr.mxu0 0.0
        %1488 = vmatpush1.msra.mxu0 0.0
        %1489 = vmatprep.subr.mxu0 0.0
        %1490 = vmatpush1.msra.mxu0 0.0
        %1491 = vmatprep.subr.mxu0 0.0
        %1492 = vmatpush1.msra.mxu0 0.0
        %1493 = vmatprep.subr.mxu0 0.0
        %1494 = vmatpush1.msra.mxu0 0.0
        %1495 = vmatprep.subr.mxu0 0.0
        %1496 = vmatpush1.msra.mxu0 0.0
        %1497 = vmatprep.subr.mxu0 0.0
        %1498 = vmatpush1.msra.mxu0 0.0
        %1499 = vmatprep.subr.mxu0 0.0
        %1500 = vmatpush1.msra.mxu0 0.0
        %1501 = vmatprep.subr.mxu0 0.0
        %1502 = vmatpush1.msra.mxu0 0.0
        %1503 = vmatprep.subr.mxu0 0.0
        %1504 = vmatpush1.msra.mxu0 0.0
        %1505 = vmatprep.subr.mxu0 0.0
        %1506 = vmatpush1.msra.mxu0 0.0
        %1507 = vmatprep.subr.mxu0 0.0
        %1508 = vmatpush1.msra.mxu0 0.0
        %1509 = vmatprep.subr.mxu0 0.0
        %1510 = vmatpush1.msra.mxu0 0.0
        %1511 = vmatprep.subr.mxu0 0.0
        %1512 = vmatpush1.msra.mxu0 0.0
        %1513 = vmatprep.subr.mxu0 0.0
        %1514 = vmatpush1.msra.mxu0 0.0
        %1515 = vmatprep.subr.mxu0 0.0
        %1516 = vmatpush1.msra.mxu0 0.0
        %1517 = vmatprep.subr.mxu0 0.0
        %1518 = vmatpush1.msra.mxu0 0.0
        %1519 = vmatprep.subr.mxu0 0.0
        %1520 = vmatpush1.msra.mxu0 0.0
        %1521 = vmatprep.subr.mxu0 0.0
        %1522 = vmatpush1.msra.mxu0 0.0
        %1523 = vmatprep.subr.mxu0 0.0
        %1524 = vmatpush1.msra.mxu0 0.0
        %1525 = vmatprep.mubr.f32.mxu0 0.0
        %1526 = vmatmul.mubr.f32.gmra.mrb[0].mxu0 %v1456
        %v1527 = vpop.f32.mrb[0].mxu0
        %v1528 = vadd.f32 0.0, %v1527
        %v1529 = vpop.f32.mrb[0].mxu0
        %1530 = vdwg.mxu0
        %v1531 = vsel %vm894, %v1430, 0
        %v1534 = vsel %vm608, %v1441, 0
        %1536 = vmatprep.subr.mxu0 0.0
        %1537 = vmatpush1.msra.mxu0 %v1431
        %1538 = vmatprep.subr.mxu0 0.0
        %1539 = vmatpush1.msra.mxu0 %v1432
        %1540 = vmatprep.subr.mxu0 0.0
        %1541 = vmatpush1.msra.mxu0 %v1433
        %1542 = vmatprep.subr.mxu0 0.0
        %1543 = vmatpush1.msra.mxu0 %v1434
        %1544 = vmatprep.subr.mxu0 0.0
        %1545 = vmatpush1.msra.mxu0 %v1435
        %1546 = vmatprep.subr.mxu0 0.0
        %1547 = vmatpush1.msra.mxu0 %v1436
        %1548 = vmatprep.subr.mxu0 0.0
        %1549 = vmatpush1.msra.mxu0 %v1437
        %1550 = vmatprep.subr.mxu0 0.0
        %1551 = vmatpush1.msra.mxu0 %v1438
        %1552 = vmatprep.subr.mxu0 0.0
        %1553 = vmatpush1.msra.mxu0 %v1439
        %1554 = vmatprep.subr.mxu0 0.0
        %1555 = vmatpush1.msra.mxu0 %v1440
        %1556 = vmatprep.subr.mxu0 0.0
        %1557 = vmatpush1.msra.mxu0 %v1534
        %1558 = vmatprep.subr.mxu0 0.0
        %1559 = vmatpush1.msra.mxu0 0.0
        %1560 = vmatprep.subr.mxu0 0.0
        %1561 = vmatpush1.msra.mxu0 0.0
        %1562 = vmatprep.subr.mxu0 0.0
        %1563 = vmatpush1.msra.mxu0 0.0
        %1564 = vmatprep.subr.mxu0 0.0
        %1565 = vmatpush1.msra.mxu0 0.0
        %1566 = vmatprep.subr.mxu0 0.0
        %1567 = vmatpush1.msra.mxu0 0.0
        %1568 = vmatprep.subr.mxu0 0.0
        %1569 = vmatpush1.msra.mxu0 0.0
        %1570 = vmatprep.subr.mxu0 0.0
        %1571 = vmatpush1.msra.mxu0 0.0
        %1572 = vmatprep.subr.mxu0 0.0
        %1573 = vmatpush1.msra.mxu0 0.0
        %1574 = vmatprep.subr.mxu0 0.0
        %1575 = vmatpush1.msra.mxu0 0.0
        %1576 = vmatprep.subr.mxu0 0.0
        %1577 = vmatpush1.msra.mxu0 0.0
        %1578 = vmatprep.subr.mxu0 0.0
        %1579 = vmatpush1.msra.mxu0 0.0
        %1580 = vmatprep.subr.mxu0 0.0
        %1581 = vmatpush1.msra.mxu0 0.0
        %1582 = vmatprep.subr.mxu0 0.0
        %1583 = vmatpush1.msra.mxu0 0.0
        %1584 = vmatprep.subr.mxu0 0.0
        %1585 = vmatpush1.msra.mxu0 0.0
        %1586 = vmatprep.subr.mxu0 0.0
        %1587 = vmatpush1.msra.mxu0 0.0
        %1588 = vmatprep.subr.mxu0 0.0
        %1589 = vmatpush1.msra.mxu0 0.0
        %1590 = vmatprep.subr.mxu0 0.0
        %1591 = vmatpush1.msra.mxu0 0.0
        %1592 = vmatprep.subr.mxu0 0.0
        %1593 = vmatpush1.msra.mxu0 0.0
        %1594 = vmatprep.subr.mxu0 0.0
        %1595 = vmatpush1.msra.mxu0 0.0
        %1596 = vmatprep.subr.mxu0 0.0
        %1597 = vmatpush1.msra.mxu0 0.0
        %1598 = vmatprep.subr.mxu0 0.0
        %1599 = vmatpush1.msra.mxu0 0.0
        %1600 = vmatprep.mubr.f32.mxu0 0.0
        %1601 = vmatmul.mubr.f32.gmra.mrb[0].mxu0 %v1531
        %v1602 = vpop.f32.mrb[0].mxu0
        %v1603 = vadd.f32 %v1528, %v1602
        %v1604 = vpop.f32.mrb[0].mxu0
        %1605 = vdwg.mxu0
        %s1606 = scalar_lea.vmem [#allocation7], 176
        %v1607 = vld [vmem:[%s1606] sm:$0xff]
        %v1608 = vld [vmem:[%s1606 + $0x8] sm:$0xff]
        %v1609 = vld [vmem:[%s1606 + $0x10] sm:$0xff]
        %v1610 = vld [vmem:[%s1606 + $0x18] sm:$0xff]
        %v1611 = vld [vmem:[%s1606 + $0x20] sm:$0xff]
        %v1612 = vld [vmem:[%s1606 + $0x28] sm:$0xff]
        %v1613 = vld [vmem:[%s1606 + $0x30] sm:$0xff]
        %v1614 = vld [vmem:[%s1606 + $0x38] sm:$0xff]
        %v1615 = vld [vmem:[%s1606 + $0x40] sm:$0xff]
        %v1616 = vld [vmem:[%s1606 + $0x48] sm:$0xff]
        %v1617 = vld [vmem:[%s1606 + $0x50] sm:$0xf]
        %v1618 = vrot.slane %v1430, 2
        %v1619 = vsel %vm612, %v1618, %v779
        %v1620 = vsel %vm894, %v1619, 0
        %v1623 = vsel %vm608, %v1617, 0
        %1625 = vmatprep.subr.mxu0 0.0
        %1626 = vmatpush1.msra.mxu0 %v1607
        %1627 = vmatprep.subr.mxu0 0.0
        %1628 = vmatpush1.msra.mxu0 %v1608
        %1629 = vmatprep.subr.mxu0 0.0
        %1630 = vmatpush1.msra.mxu0 %v1609
        %1631 = vmatprep.subr.mxu0 0.0
        %1632 = vmatpush1.msra.mxu0 %v1610
        %1633 = vmatprep.subr.mxu0 0.0
        %1634 = vmatpush1.msra.mxu0 %v1611
        %1635 = vmatprep.subr.mxu0 0.0
        %1636 = vmatpush1.msra.mxu0 %v1612
        %1637 = vmatprep.subr.mxu0 0.0
        %1638 = vmatpush1.msra.mxu0 %v1613
        %1639 = vmatprep.subr.mxu0 0.0
        %1640 = vmatpush1.msra.mxu0 %v1614
        %1641 = vmatprep.subr.mxu0 0.0
        %1642 = vmatpush1.msra.mxu0 %v1615
        %1643 = vmatprep.subr.mxu0 0.0
        %1644 = vmatpush1.msra.mxu0 %v1616
        %1645 = vmatprep.subr.mxu0 0.0
        %1646 = vmatpush1.msra.mxu0 %v1623
        %1647 = vmatprep.subr.mxu0 0.0
        %1648 = vmatpush1.msra.mxu0 0.0
        %1649 = vmatprep.subr.mxu0 0.0
        %1650 = vmatpush1.msra.mxu0 0.0
        %1651 = vmatprep.subr.mxu0 0.0
        %1652 = vmatpush1.msra.mxu0 0.0
        %1653 = vmatprep.subr.mxu0 0.0
        %1654 = vmatpush1.msra.mxu0 0.0
        %1655 = vmatprep.subr.mxu0 0.0
        %1656 = vmatpush1.msra.mxu0 0.0
        %1657 = vmatprep.subr.mxu0 0.0
        %1658 = vmatpush1.msra.mxu0 0.0
        %1659 = vmatprep.subr.mxu0 0.0
        %1660 = vmatpush1.msra.mxu0 0.0
        %1661 = vmatprep.subr.mxu0 0.0
        %1662 = vmatpush1.msra.mxu0 0.0
        %1663 = vmatprep.subr.mxu0 0.0
        %1664 = vmatpush1.msra.mxu0 0.0
        %1665 = vmatprep.subr.mxu0 0.0
        %1666 = vmatpush1.msra.mxu0 0.0
        %1667 = vmatprep.subr.mxu0 0.0
        %1668 = vmatpush1.msra.mxu0 0.0
        %1669 = vmatprep.subr.mxu0 0.0
        %1670 = vmatpush1.msra.mxu0 0.0
        %1671 = vmatprep.subr.mxu0 0.0
        %1672 = vmatpush1.msra.mxu0 0.0
        %1673 = vmatprep.subr.mxu0 0.0
        %1674 = vmatpush1.msra.mxu0 0.0
        %1675 = vmatprep.subr.mxu0 0.0
        %1676 = vmatpush1.msra.mxu0 0.0
        %1677 = vmatprep.subr.mxu0 0.0
        %1678 = vmatpush1.msra.mxu0 0.0
        %1679 = vmatprep.subr.mxu0 0.0
        %1680 = vmatpush1.msra.mxu0 0.0
        %1681 = vmatprep.subr.mxu0 0.0
        %1682 = vmatpush1.msra.mxu0 0.0
        %1683 = vmatprep.subr.mxu0 0.0
        %1684 = vmatpush1.msra.mxu0 0.0
        %1685 = vmatprep.subr.mxu0 0.0
        %1686 = vmatpush1.msra.mxu0 0.0
        %1687 = vmatprep.subr.mxu0 0.0
        %1688 = vmatpush1.msra.mxu0 0.0
        %1689 = vmatprep.mubr.f32.mxu0 0.0
        %1690 = vmatmul.mubr.f32.gmra.mrb[0].mxu0 %v1620
        %v1691 = vpop.f32.mrb[0].mxu0
        %v1692 = vadd.f32 0.0, %v1691
        %v1693 = vpop.f32.mrb[0].mxu0
        %1694 = vdwg.mxu0
        %v1695 = vadd.f32 %v1603, %v1692
        %v1696 = vld [vmem:[%s8] sm:$0x1]
        %v1698 = vlaneseq
        %v1699 = vshrl.u32 %v1698, 7
        %v1700 = vsub.s32 0, %v1699
        %v1701 = vrot.slane %v1696, %v1700
        %v1703 = vadd.f32 %v1695, %v1701
        %vm1704 = vcmp.ge.f32.partialorder %v1703, 0.0
        %v1705 = vmul.f32 %v1703, 0.01
        %v1706 = vsel %vm1704, %v1703, %v1705
        %v1708 = vrot.slane %v1706, 7
        %v1710 = vsel %vm602, 0.0, %v1708
        %v1711 = vld [vmem:[#allocation9] sm:$0xff]
        %v1712 = vld [vmem:[#allocation9 + $0x8] sm:$0xff]
        %v1713 = vld [vmem:[#allocation9 + $0x10] sm:$0xff]
        %v1714 = vld [vmem:[#allocation9 + $0x18] sm:$0xff]
        %v1715 = vld [vmem:[#allocation9 + $0x20] sm:$0xff]
        %v1716 = vld [vmem:[#allocation9 + $0x28] sm:$0x3]
        %s1717 = scalar_lea.vmem [#allocation9], 48
        %v1718 = vld [vmem:[%s1717] sm:$0xff]
        %v1719 = vld [vmem:[%s1717 + $0x8] sm:$0xff]
        %v1720 = vld [vmem:[%s1717 + $0x10] sm:$0xff]
        %v1721 = vld [vmem:[%s1717 + $0x18] sm:$0xff]
        %v1722 = vld [vmem:[%s1717 + $0x20] sm:$0xff]
        %v1723 = vld [vmem:[%s1717 + $0x28] sm:$0x3]
        %v1725 = vrot.slane %v1710, 1
        %vm1726 = vcmask 343040
        %v1727 = vsel %vm1726, %v1725, 0
        %v1730 = vsel %vm604, %v1723, 0
        %1732 = vmatprep.subr.mxu0 0.0
        %1733 = vmatpush1.msra.mxu0 %v1718
        %1734 = vmatprep.subr.mxu0 0.0
        %1735 = vmatpush1.msra.mxu0 %v1719
        %1736 = vmatprep.subr.mxu0 0.0
        %1737 = vmatpush1.msra.mxu0 %v1720
        %1738 = vmatprep.subr.mxu0 0.0
        %1739 = vmatpush1.msra.mxu0 %v1721
        %1740 = vmatprep.subr.mxu0 0.0
        %1741 = vmatpush1.msra.mxu0 %v1722
        %1742 = vmatprep.subr.mxu0 0.0
        %1743 = vmatpush1.msra.mxu0 %v1730
        %1744 = vmatprep.subr.mxu0 0.0
        %1745 = vmatpush1.msra.mxu0 0.0
        %1746 = vmatprep.subr.mxu0 0.0
        %1747 = vmatpush1.msra.mxu0 0.0
        %1748 = vmatprep.subr.mxu0 0.0
        %1749 = vmatpush1.msra.mxu0 0.0
        %1750 = vmatprep.subr.mxu0 0.0
        %1751 = vmatpush1.msra.mxu0 0.0
        %1752 = vmatprep.subr.mxu0 0.0
        %1753 = vmatpush1.msra.mxu0 0.0
        %1754 = vmatprep.subr.mxu0 0.0
        %1755 = vmatpush1.msra.mxu0 0.0
        %1756 = vmatprep.subr.mxu0 0.0
        %1757 = vmatpush1.msra.mxu0 0.0
        %1758 = vmatprep.subr.mxu0 0.0
        %1759 = vmatpush1.msra.mxu0 0.0
        %1760 = vmatprep.subr.mxu0 0.0
        %1761 = vmatpush1.msra.mxu0 0.0
        %1762 = vmatprep.subr.mxu0 0.0
        %1763 = vmatpush1.msra.mxu0 0.0
        %1764 = vmatprep.subr.mxu0 0.0
        %1765 = vmatpush1.msra.mxu0 0.0
        %1766 = vmatprep.subr.mxu0 0.0
        %1767 = vmatpush1.msra.mxu0 0.0
        %1768 = vmatprep.subr.mxu0 0.0
        %1769 = vmatpush1.msra.mxu0 0.0
        %1770 = vmatprep.subr.mxu0 0.0
        %1771 = vmatpush1.msra.mxu0 0.0
        %1772 = vmatprep.subr.mxu0 0.0
        %1773 = vmatpush1.msra.mxu0 0.0
        %1774 = vmatprep.subr.mxu0 0.0
        %1775 = vmatpush1.msra.mxu0 0.0
        %1776 = vmatprep.subr.mxu0 0.0
        %1777 = vmatpush1.msra.mxu0 0.0
        %1778 = vmatprep.subr.mxu0 0.0
        %1779 = vmatpush1.msra.mxu0 0.0
        %1780 = vmatprep.subr.mxu0 0.0
        %1781 = vmatpush1.msra.mxu0 0.0
        %1782 = vmatprep.subr.mxu0 0.0
        %1783 = vmatpush1.msra.mxu0 0.0
        %1784 = vmatprep.subr.mxu0 0.0
        %1785 = vmatpush1.msra.mxu0 0.0
        %1786 = vmatprep.subr.mxu0 0.0
        %1787 = vmatpush1.msra.mxu0 0.0
        %1788 = vmatprep.subr.mxu0 0.0
        %1789 = vmatpush1.msra.mxu0 0.0
        %1790 = vmatprep.subr.mxu0 0.0
        %1791 = vmatpush1.msra.mxu0 0.0
        %1792 = vmatprep.subr.mxu0 0.0
        %1793 = vmatpush1.msra.mxu0 0.0
        %1794 = vmatprep.subr.mxu0 0.0
        %1795 = vmatpush1.msra.mxu0 0.0
        %1796 = vmatprep.mubr.f32.mxu0 0.0
        %1797 = vmatmul.mubr.f32.gmra.mrb[0].mxu0 %v1727
        %v1798 = vpop.f32.mrb[0].mxu0
        %v1799 = vadd.f32 0.0, %v1798
        %v1800 = vpop.f32.mrb[0].mxu0
        %1801 = vdwg.mxu0
        %v1802 = vsel %vm1726, %v1710, 0
        %v1805 = vsel %vm604, %v1716, 0
        %1807 = vmatprep.subr.mxu0 0.0
        %1808 = vmatpush1.msra.mxu0 %v1711
        %1809 = vmatprep.subr.mxu0 0.0
        %1810 = vmatpush1.msra.mxu0 %v1712
        %1811 = vmatprep.subr.mxu0 0.0
        %1812 = vmatpush1.msra.mxu0 %v1713
        %1813 = vmatprep.subr.mxu0 0.0
        %1814 = vmatpush1.msra.mxu0 %v1714
        %1815 = vmatprep.subr.mxu0 0.0
        %1816 = vmatpush1.msra.mxu0 %v1715
        %1817 = vmatprep.subr.mxu0 0.0
        %1818 = vmatpush1.msra.mxu0 %v1805
        %1819 = vmatprep.subr.mxu0 0.0
        %1820 = vmatpush1.msra.mxu0 0.0
        %1821 = vmatprep.subr.mxu0 0.0
        %1822 = vmatpush1.msra.mxu0 0.0
        %1823 = vmatprep.subr.mxu0 0.0
        %1824 = vmatpush1.msra.mxu0 0.0
        %1825 = vmatprep.subr.mxu0 0.0
        %1826 = vmatpush1.msra.mxu0 0.0
        %1827 = vmatprep.subr.mxu0 0.0
        %1828 = vmatpush1.msra.mxu0 0.0
        %1829 = vmatprep.subr.mxu0 0.0
        %1830 = vmatpush1.msra.mxu0 0.0
        %1831 = vmatprep.subr.mxu0 0.0
        %1832 = vmatpush1.msra.mxu0 0.0
        %1833 = vmatprep.subr.mxu0 0.0
        %1834 = vmatpush1.msra.mxu0 0.0
        %1835 = vmatprep.subr.mxu0 0.0
        %1836 = vmatpush1.msra.mxu0 0.0
        %1837 = vmatprep.subr.mxu0 0.0
        %1838 = vmatpush1.msra.mxu0 0.0
        %1839 = vmatprep.subr.mxu0 0.0
        %1840 = vmatpush1.msra.mxu0 0.0
        %1841 = vmatprep.subr.mxu0 0.0
        %1842 = vmatpush1.msra.mxu0 0.0
        %1843 = vmatprep.subr.mxu0 0.0
        %1844 = vmatpush1.msra.mxu0 0.0
        %1845 = vmatprep.subr.mxu0 0.0
        %1846 = vmatpush1.msra.mxu0 0.0
        %1847 = vmatprep.subr.mxu0 0.0
        %1848 = vmatpush1.msra.mxu0 0.0
        %1849 = vmatprep.subr.mxu0 0.0
        %1850 = vmatpush1.msra.mxu0 0.0
        %1851 = vmatprep.subr.mxu0 0.0
        %1852 = vmatpush1.msra.mxu0 0.0
        %1853 = vmatprep.subr.mxu0 0.0
        %1854 = vmatpush1.msra.mxu0 0.0
        %1855 = vmatprep.subr.mxu0 0.0
        %1856 = vmatpush1.msra.mxu0 0.0
        %1857 = vmatprep.subr.mxu0 0.0
        %1858 = vmatpush1.msra.mxu0 0.0
        %1859 = vmatprep.subr.mxu0 0.0
        %1860 = vmatpush1.msra.mxu0 0.0
        %1861 = vmatprep.subr.mxu0 0.0
        %1862 = vmatpush1.msra.mxu0 0.0
        %1863 = vmatprep.subr.mxu0 0.0
        %1864 = vmatpush1.msra.mxu0 0.0
        %1865 = vmatprep.subr.mxu0 0.0
        %1866 = vmatpush1.msra.mxu0 0.0
        %1867 = vmatprep.subr.mxu0 0.0
        %1868 = vmatpush1.msra.mxu0 0.0
        %1869 = vmatprep.subr.mxu0 0.0
        %1870 = vmatpush1.msra.mxu0 0.0
        %1871 = vmatprep.mubr.f32.mxu0 0.0
        %1872 = vmatmul.mubr.f32.gmra.mrb[0].mxu0 %v1802
        %v1873 = vpop.f32.mrb[0].mxu0
        %v1874 = vadd.f32 %v1799, %v1873
        %v1875 = vpop.f32.mrb[0].mxu0
        %1876 = vdwg.mxu0
        %s1877 = scalar_lea.vmem [#allocation9], 96
        %v1878 = vld [vmem:[%s1877] sm:$0xff]
        %v1879 = vld [vmem:[%s1877 + $0x8] sm:$0xff]
        %v1880 = vld [vmem:[%s1877 + $0x10] sm:$0xff]
        %v1881 = vld [vmem:[%s1877 + $0x18] sm:$0xff]
        %v1882 = vld [vmem:[%s1877 + $0x20] sm:$0xff]
        %v1883 = vld [vmem:[%s1877 + $0x28] sm:$0x3]
        %v1884 = vrot.slane %v1710, 2
        %v1885 = vsel %vm612, %v1884, %v779
        %v1886 = vsel %vm1726, %v1885, 0
        %v1889 = vsel %vm604, %v1883, 0
        %1891 = vmatprep.subr.mxu0 0.0
        %1892 = vmatpush1.msra.mxu0 %v1878
        %1893 = vmatprep.subr.mxu0 0.0
        %1894 = vmatpush1.msra.mxu0 %v1879
        %1895 = vmatprep.subr.mxu0 0.0
        %1896 = vmatpush1.msra.mxu0 %v1880
        %1897 = vmatprep.subr.mxu0 0.0
        %1898 = vmatpush1.msra.mxu0 %v1881
        %1899 = vmatprep.subr.mxu0 0.0
        %1900 = vmatpush1.msra.mxu0 %v1882
        %1901 = vmatprep.subr.mxu0 0.0
        %1902 = vmatpush1.msra.mxu0 %v1889
        %1903 = vmatprep.subr.mxu0 0.0
        %1904 = vmatpush1.msra.mxu0 0.0
        %1905 = vmatprep.subr.mxu0 0.0
        %1906 = vmatpush1.msra.mxu0 0.0
        %1907 = vmatprep.subr.mxu0 0.0
        %1908 = vmatpush1.msra.mxu0 0.0
        %1909 = vmatprep.subr.mxu0 0.0
        %1910 = vmatpush1.msra.mxu0 0.0
        %1911 = vmatprep.subr.mxu0 0.0
        %1912 = vmatpush1.msra.mxu0 0.0
        %1913 = vmatprep.subr.mxu0 0.0
        %1914 = vmatpush1.msra.mxu0 0.0
        %1915 = vmatprep.subr.mxu0 0.0
        %1916 = vmatpush1.msra.mxu0 0.0
        %1917 = vmatprep.subr.mxu0 0.0
        %1918 = vmatpush1.msra.mxu0 0.0
        %1919 = vmatprep.subr.mxu0 0.0
        %1920 = vmatpush1.msra.mxu0 0.0
        %1921 = vmatprep.subr.mxu0 0.0
        %1922 = vmatpush1.msra.mxu0 0.0
        %1923 = vmatprep.subr.mxu0 0.0
        %1924 = vmatpush1.msra.mxu0 0.0
        %1925 = vmatprep.subr.mxu0 0.0
        %1926 = vmatpush1.msra.mxu0 0.0
        %1927 = vmatprep.subr.mxu0 0.0
        %1928 = vmatpush1.msra.mxu0 0.0
        %1929 = vmatprep.subr.mxu0 0.0
        %1930 = vmatpush1.msra.mxu0 0.0
        %1931 = vmatprep.subr.mxu0 0.0
        %1932 = vmatpush1.msra.mxu0 0.0
        %1933 = vmatprep.subr.mxu0 0.0
        %1934 = vmatpush1.msra.mxu0 0.0
        %1935 = vmatprep.subr.mxu0 0.0
        %1936 = vmatpush1.msra.mxu0 0.0
        %1937 = vmatprep.subr.mxu0 0.0
        %1938 = vmatpush1.msra.mxu0 0.0
        %1939 = vmatprep.subr.mxu0 0.0
        %1940 = vmatpush1.msra.mxu0 0.0
        %1941 = vmatprep.subr.mxu0 0.0
        %1942 = vmatpush1.msra.mxu0 0.0
        %1943 = vmatprep.subr.mxu0 0.0
        %1944 = vmatpush1.msra.mxu0 0.0
        %1945 = vmatprep.subr.mxu0 0.0
        %1946 = vmatpush1.msra.mxu0 0.0
        %1947 = vmatprep.subr.mxu0 0.0
        %1948 = vmatpush1.msra.mxu0 0.0
        %1949 = vmatprep.subr.mxu0 0.0
        %1950 = vmatpush1.msra.mxu0 0.0
        %1951 = vmatprep.subr.mxu0 0.0
        %1952 = vmatpush1.msra.mxu0 0.0
        %1953 = vmatprep.subr.mxu0 0.0
        %1954 = vmatpush1.msra.mxu0 0.0
        %1955 = vmatprep.mubr.f32.mxu0 0.0
        %1956 = vmatmul.mubr.f32.gmra.mrb[0].mxu0 %v1886
        %v1957 = vpop.f32.mrb[0].mxu0
        %v1958 = vadd.f32 0.0, %v1957
        %v1959 = vpop.f32.mrb[0].mxu0
        %1960 = vdwg.mxu0
        %v1961 = vadd.f32 %v1874, %v1958
        %v1962 = vld [vmem:[%s10] sm:$0x1]
        %v1964 = vlaneseq
        %v1965 = vshrl.u32 %v1964, 7
        %v1966 = vsub.s32 0, %v1965
        %v1967 = vrot.slane %v1962, %v1966
        %v1969 = vadd.f32 %v1961, %v1967
        %vm1970 = vcmp.ge.f32.partialorder %v1969, 0.0
        %v1971 = vmul.f32 %v1969, 0.01
        %v1972 = vsel %vm1970, %v1969, %v1971
        %v1974 = vrot.slane %v1972, 7
        %v1976 = vsel %vm602, 0.0, %v1974
        %v1977 = vld [vmem:[#allocation10] sm:$0xff]
        %v1978 = vld [vmem:[#allocation10 + $0x8] sm:$0xff]
        %v1979 = vld [vmem:[#allocation10 + $0x10] sm:$0xff]
        %v1980 = vld [vmem:[#allocation10 + $0x18] sm:$0xff]
        %v1981 = vld [vmem:[#allocation10 + $0x20] sm:$0xff]
        %v1982 = vld [vmem:[#allocation10 + $0x28] sm:$0x3]
        %s1983 = scalar_lea.vmem [#allocation10], 48
        %v1984 = vld [vmem:[%s1983] sm:$0xff]
        %v1985 = vld [vmem:[%s1983 + $0x8] sm:$0xff]
        %v1986 = vld [vmem:[%s1983 + $0x10] sm:$0xff]
        %v1987 = vld [vmem:[%s1983 + $0x18] sm:$0xff]
        %v1988 = vld [vmem:[%s1983 + $0x20] sm:$0xff]
        %v1989 = vld [vmem:[%s1983 + $0x28] sm:$0x3]
        %v1991 = vrot.slane %v1976, 1
        %v1992 = vsel %vm1726, %v1991, 0
        %v1995 = vsel %vm604, %v1989, 0
        %1997 = vmatprep.subr.mxu0 0.0
        %1998 = vmatpush1.msra.mxu0 %v1984
        %1999 = vmatprep.subr.mxu0 0.0
        %2000 = vmatpush1.msra.mxu0 %v1985
        %2001 = vmatprep.subr.mxu0 0.0
        %2002 = vmatpush1.msra.mxu0 %v1986
        %2003 = vmatprep.subr.mxu0 0.0
        %2004 = vmatpush1.msra.mxu0 %v1987
        %2005 = vmatprep.subr.mxu0 0.0
        %2006 = vmatpush1.msra.mxu0 %v1988
        %2007 = vmatprep.subr.mxu0 0.0
        %2008 = vmatpush1.msra.mxu0 %v1995
        %2009 = vmatprep.subr.mxu0 0.0
        %2010 = vmatpush1.msra.mxu0 0.0
        %2011 = vmatprep.subr.mxu0 0.0
        %2012 = vmatpush1.msra.mxu0 0.0
        %2013 = vmatprep.subr.mxu0 0.0
        %2014 = vmatpush1.msra.mxu0 0.0
        %2015 = vmatprep.subr.mxu0 0.0
        %2016 = vmatpush1.msra.mxu0 0.0
        %2017 = vmatprep.subr.mxu0 0.0
        %2018 = vmatpush1.msra.mxu0 0.0
        %2019 = vmatprep.subr.mxu0 0.0
        %2020 = vmatpush1.msra.mxu0 0.0
        %2021 = vmatprep.subr.mxu0 0.0
        %2022 = vmatpush1.msra.mxu0 0.0
        %2023 = vmatprep.subr.mxu0 0.0
        %2024 = vmatpush1.msra.mxu0 0.0
        %2025 = vmatprep.subr.mxu0 0.0
        %2026 = vmatpush1.msra.mxu0 0.0
        %2027 = vmatprep.subr.mxu0 0.0
        %2028 = vmatpush1.msra.mxu0 0.0
        %2029 = vmatprep.subr.mxu0 0.0
        %2030 = vmatpush1.msra.mxu0 0.0
        %2031 = vmatprep.subr.mxu0 0.0
        %2032 = vmatpush1.msra.mxu0 0.0
        %2033 = vmatprep.subr.mxu0 0.0
        %2034 = vmatpush1.msra.mxu0 0.0
        %2035 = vmatprep.subr.mxu0 0.0
        %2036 = vmatpush1.msra.mxu0 0.0
        %2037 = vmatprep.subr.mxu0 0.0
        %2038 = vmatpush1.msra.mxu0 0.0
        %2039 = vmatprep.subr.mxu0 0.0
        %2040 = vmatpush1.msra.mxu0 0.0
        %2041 = vmatprep.subr.mxu0 0.0
        %2042 = vmatpush1.msra.mxu0 0.0
        %2043 = vmatprep.subr.mxu0 0.0
        %2044 = vmatpush1.msra.mxu0 0.0
        %2045 = vmatprep.subr.mxu0 0.0
        %2046 = vmatpush1.msra.mxu0 0.0
        %2047 = vmatprep.subr.mxu0 0.0
        %2048 = vmatpush1.msra.mxu0 0.0
        %2049 = vmatprep.subr.mxu0 0.0
        %2050 = vmatpush1.msra.mxu0 0.0
        %2051 = vmatprep.subr.mxu0 0.0
        %2052 = vmatpush1.msra.mxu0 0.0
        %2053 = vmatprep.subr.mxu0 0.0
        %2054 = vmatpush1.msra.mxu0 0.0
        %2055 = vmatprep.subr.mxu0 0.0
        %2056 = vmatpush1.msra.mxu0 0.0
        %2057 = vmatprep.subr.mxu0 0.0
        %2058 = vmatpush1.msra.mxu0 0.0
        %2059 = vmatprep.subr.mxu0 0.0
        %2060 = vmatpush1.msra.mxu0 0.0
        %2061 = vmatprep.mubr.f32.mxu0 0.0
        %2062 = vmatmul.mubr.f32.gmra.mrb[0].mxu0 %v1992
        %v2063 = vpop.f32.mrb[0].mxu0
        %v2064 = vadd.f32 0.0, %v2063
        %v2065 = vpop.f32.mrb[0].mxu0
        %2066 = vdwg.mxu0
        %v2067 = vsel %vm1726, %v1976, 0
        %v2070 = vsel %vm604, %v1982, 0
        %2072 = vmatprep.subr.mxu0 0.0
        %2073 = vmatpush1.msra.mxu0 %v1977
        %2074 = vmatprep.subr.mxu0 0.0
        %2075 = vmatpush1.msra.mxu0 %v1978
        %2076 = vmatprep.subr.mxu0 0.0
        %2077 = vmatpush1.msra.mxu0 %v1979
        %2078 = vmatprep.subr.mxu0 0.0
        %2079 = vmatpush1.msra.mxu0 %v1980
        %2080 = vmatprep.subr.mxu0 0.0
        %2081 = vmatpush1.msra.mxu0 %v1981
        %2082 = vmatprep.subr.mxu0 0.0
        %2083 = vmatpush1.msra.mxu0 %v2070
        %2084 = vmatprep.subr.mxu0 0.0
        %2085 = vmatpush1.msra.mxu0 0.0
        %2086 = vmatprep.subr.mxu0 0.0
        %2087 = vmatpush1.msra.mxu0 0.0
        %2088 = vmatprep.subr.mxu0 0.0
        %2089 = vmatpush1.msra.mxu0 0.0
        %2090 = vmatprep.subr.mxu0 0.0
        %2091 = vmatpush1.msra.mxu0 0.0
        %2092 = vmatprep.subr.mxu0 0.0
        %2093 = vmatpush1.msra.mxu0 0.0
        %2094 = vmatprep.subr.mxu0 0.0
        %2095 = vmatpush1.msra.mxu0 0.0
        %2096 = vmatprep.subr.mxu0 0.0
        %2097 = vmatpush1.msra.mxu0 0.0
        %2098 = vmatprep.subr.mxu0 0.0
        %2099 = vmatpush1.msra.mxu0 0.0
        %2100 = vmatprep.subr.mxu0 0.0
        %2101 = vmatpush1.msra.mxu0 0.0
        %2102 = vmatprep.subr.mxu0 0.0
        %2103 = vmatpush1.msra.mxu0 0.0
        %2104 = vmatprep.subr.mxu0 0.0
        %2105 = vmatpush1.msra.mxu0 0.0
        %2106 = vmatprep.subr.mxu0 0.0
        %2107 = vmatpush1.msra.mxu0 0.0
        %2108 = vmatprep.subr.mxu0 0.0
        %2109 = vmatpush1.msra.mxu0 0.0
        %2110 = vmatprep.subr.mxu0 0.0
        %2111 = vmatpush1.msra.mxu0 0.0
        %2112 = vmatprep.subr.mxu0 0.0
        %2113 = vmatpush1.msra.mxu0 0.0
        %2114 = vmatprep.subr.mxu0 0.0
        %2115 = vmatpush1.msra.mxu0 0.0
        %2116 = vmatprep.subr.mxu0 0.0
        %2117 = vmatpush1.msra.mxu0 0.0
        %2118 = vmatprep.subr.mxu0 0.0
        %2119 = vmatpush1.msra.mxu0 0.0
        %2120 = vmatprep.subr.mxu0 0.0
        %2121 = vmatpush1.msra.mxu0 0.0
        %2122 = vmatprep.subr.mxu0 0.0
        %2123 = vmatpush1.msra.mxu0 0.0
        %2124 = vmatprep.subr.mxu0 0.0
        %2125 = vmatpush1.msra.mxu0 0.0
        %2126 = vmatprep.subr.mxu0 0.0
        %2127 = vmatpush1.msra.mxu0 0.0
        %2128 = vmatprep.subr.mxu0 0.0
        %2129 = vmatpush1.msra.mxu0 0.0
        %2130 = vmatprep.subr.mxu0 0.0
        %2131 = vmatpush1.msra.mxu0 0.0
        %2132 = vmatprep.subr.mxu0 0.0
        %2133 = vmatpush1.msra.mxu0 0.0
        %2134 = vmatprep.subr.mxu0 0.0
        %2135 = vmatpush1.msra.mxu0 0.0
        %2136 = vmatprep.mubr.f32.mxu0 0.0
        %2137 = vmatmul.mubr.f32.gmra.mrb[0].mxu0 %v2067
        %v2138 = vpop.f32.mrb[0].mxu0
        %v2139 = vadd.f32 %v2064, %v2138
        %v2140 = vpop.f32.mrb[0].mxu0
        %2141 = vdwg.mxu0
        %s2142 = scalar_lea.vmem [#allocation10], 96
        %v2143 = vld [vmem:[%s2142] sm:$0xff]
        %v2144 = vld [vmem:[%s2142 + $0x8] sm:$0xff]
        %v2145 = vld [vmem:[%s2142 + $0x10] sm:$0xff]
        %v2146 = vld [vmem:[%s2142 + $0x18] sm:$0xff]
        %v2147 = vld [vmem:[%s2142 + $0x20] sm:$0xff]
        %v2148 = vld [vmem:[%s2142 + $0x28] sm:$0x3]
        %v2149 = vrot.slane %v1976, 2
        %v2150 = vsel %vm612, %v2149, %v779
        %v2151 = vsel %vm1726, %v2150, 0
        %v2154 = vsel %vm604, %v2148, 0
        %2156 = vmatprep.subr.mxu0 0.0
        %2157 = vmatpush1.msra.mxu0 %v2143
        %2158 = vmatprep.subr.mxu0 0.0
        %2159 = vmatpush1.msra.mxu0 %v2144
        %2160 = vmatprep.subr.mxu0 0.0
        %2161 = vmatpush1.msra.mxu0 %v2145
        %2162 = vmatprep.subr.mxu0 0.0
        %2163 = vmatpush1.msra.mxu0 %v2146
        %2164 = vmatprep.subr.mxu0 0.0
        %2165 = vmatpush1.msra.mxu0 %v2147
        %2166 = vmatprep.subr.mxu0 0.0
        %2167 = vmatpush1.msra.mxu0 %v2154
        %2168 = vmatprep.subr.mxu0 0.0
        %2169 = vmatpush1.msra.mxu0 0.0
        %2170 = vmatprep.subr.mxu0 0.0
        %2171 = vmatpush1.msra.mxu0 0.0
        %2172 = vmatprep.subr.mxu0 0.0
        %2173 = vmatpush1.msra.mxu0 0.0
        %2174 = vmatprep.subr.mxu0 0.0
        %2175 = vmatpush1.msra.mxu0 0.0
        %2176 = vmatprep.subr.mxu0 0.0
        %2177 = vmatpush1.msra.mxu0 0.0
        %2178 = vmatprep.subr.mxu0 0.0
        %2179 = vmatpush1.msra.mxu0 0.0
        %2180 = vmatprep.subr.mxu0 0.0
        %2181 = vmatpush1.msra.mxu0 0.0
        %2182 = vmatprep.subr.mxu0 0.0
        %2183 = vmatpush1.msra.mxu0 0.0
        %2184 = vmatprep.subr.mxu0 0.0
        %2185 = vmatpush1.msra.mxu0 0.0
        %2186 = vmatprep.subr.mxu0 0.0
        %2187 = vmatpush1.msra.mxu0 0.0
        %2188 = vmatprep.subr.mxu0 0.0
        %2189 = vmatpush1.msra.mxu0 0.0
        %2190 = vmatprep.subr.mxu0 0.0
        %2191 = vmatpush1.msra.mxu0 0.0
        %2192 = vmatprep.subr.mxu0 0.0
        %2193 = vmatpush1.msra.mxu0 0.0
        %2194 = vmatprep.subr.mxu0 0.0
        %2195 = vmatpush1.msra.mxu0 0.0
        %2196 = vmatprep.subr.mxu0 0.0
        %2197 = vmatpush1.msra.mxu0 0.0
        %2198 = vmatprep.subr.mxu0 0.0
        %2199 = vmatpush1.msra.mxu0 0.0
        %2200 = vmatprep.subr.mxu0 0.0
        %2201 = vmatpush1.msra.mxu0 0.0
        %2202 = vmatprep.subr.mxu0 0.0
        %2203 = vmatpush1.msra.mxu0 0.0
        %2204 = vmatprep.subr.mxu0 0.0
        %2205 = vmatpush1.msra.mxu0 0.0
        %2206 = vmatprep.subr.mxu0 0.0
        %2207 = vmatpush1.msra.mxu0 0.0
        %2208 = vmatprep.subr.mxu0 0.0
        %2209 = vmatpush1.msra.mxu0 0.0
        %2210 = vmatprep.subr.mxu0 0.0
        %2211 = vmatpush1.msra.mxu0 0.0
        %2212 = vmatprep.subr.mxu0 0.0
        %2213 = vmatpush1.msra.mxu0 0.0
        %2214 = vmatprep.subr.mxu0 0.0
        %2215 = vmatpush1.msra.mxu0 0.0
        %2216 = vmatprep.subr.mxu0 0.0
        %2217 = vmatpush1.msra.mxu0 0.0
        %2218 = vmatprep.subr.mxu0 0.0
        %2219 = vmatpush1.msra.mxu0 0.0
        %2220 = vmatprep.mubr.f32.mxu0 0.0
        %2221 = vmatmul.mubr.f32.gmra.mrb[0].mxu0 %v2151
        %v2222 = vpop.f32.mrb[0].mxu0
        %v2223 = vadd.f32 0.0, %v2222
        %v2224 = vpop.f32.mrb[0].mxu0
        %2225 = vdwg.mxu0
        %v2226 = vadd.f32 %v2139, %v2223
        %v2227 = vld [vmem:[%s12] sm:$0x1]
        %v2229 = vlaneseq
        %v2230 = vshrl.u32 %v2229, 7
        %v2231 = vsub.s32 0, %v2230
        %v2232 = vrot.slane %v2227, %v2231
        %v2234 = vadd.f32 %v2226, %v2232
        %v2235 = vadd.f32 %v2234, %v1706
        %vm2236 = vcmp.ge.f32.partialorder %v2235, 0.0
        %v2237 = vmul.f32 %v2235, 0.01
        %v2238 = vsel %vm2236, %v2235, %v2237
        %v2240 = vrot.slane %v2238, 7
        %v2242 = vsel %vm602, 0.0, %v2240
        %v2243 = vld [vmem:[#allocation12] sm:$0xff]
        %v2244 = vld [vmem:[#allocation12 + $0x8] sm:$0xff]
        %v2245 = vld [vmem:[#allocation12 + $0x10] sm:$0xff]
        %v2246 = vld [vmem:[#allocation12 + $0x18] sm:$0xff]
        %v2247 = vld [vmem:[#allocation12 + $0x20] sm:$0xff]
        %v2248 = vld [vmem:[#allocation12 + $0x28] sm:$0x3]
        %s2249 = scalar_lea.vmem [#allocation12], 48
        %v2250 = vld [vmem:[%s2249] sm:$0xff]
        %v2251 = vld [vmem:[%s2249 + $0x8] sm:$0xff]
        %v2252 = vld [vmem:[%s2249 + $0x10] sm:$0xff]
        %v2253 = vld [vmem:[%s2249 + $0x18] sm:$0xff]
        %v2254 = vld [vmem:[%s2249 + $0x20] sm:$0xff]
        %v2255 = vld [vmem:[%s2249 + $0x28] sm:$0x3]
        %v2257 = vrot.slane %v2242, 1
        %v2258 = vsel %vm1726, %v2257, 0
        %v2261 = vsel %vm604, %v2255, 0
        %2263 = vmatprep.subr.mxu0 0.0
        %2264 = vmatpush1.msra.mxu0 %v2250
        %2265 = vmatprep.subr.mxu0 0.0
        %2266 = vmatpush1.msra.mxu0 %v2251
        %2267 = vmatprep.subr.mxu0 0.0
        %2268 = vmatpush1.msra.mxu0 %v2252
        %2269 = vmatprep.subr.mxu0 0.0
        %2270 = vmatpush1.msra.mxu0 %v2253
        %2271 = vmatprep.subr.mxu0 0.0
        %2272 = vmatpush1.msra.mxu0 %v2254
        %2273 = vmatprep.subr.mxu0 0.0
        %2274 = vmatpush1.msra.mxu0 %v2261
        %2275 = vmatprep.subr.mxu0 0.0
        %2276 = vmatpush1.msra.mxu0 0.0
        %2277 = vmatprep.subr.mxu0 0.0
        %2278 = vmatpush1.msra.mxu0 0.0
        %2279 = vmatprep.subr.mxu0 0.0
        %2280 = vmatpush1.msra.mxu0 0.0
        %2281 = vmatprep.subr.mxu0 0.0
        %2282 = vmatpush1.msra.mxu0 0.0
        %2283 = vmatprep.subr.mxu0 0.0
        %2284 = vmatpush1.msra.mxu0 0.0
        %2285 = vmatprep.subr.mxu0 0.0
        %2286 = vmatpush1.msra.mxu0 0.0
        %2287 = vmatprep.subr.mxu0 0.0
        %2288 = vmatpush1.msra.mxu0 0.0
        %2289 = vmatprep.subr.mxu0 0.0
        %2290 = vmatpush1.msra.mxu0 0.0
        %2291 = vmatprep.subr.mxu0 0.0
        %2292 = vmatpush1.msra.mxu0 0.0
        %2293 = vmatprep.subr.mxu0 0.0
        %2294 = vmatpush1.msra.mxu0 0.0
        %2295 = vmatprep.subr.mxu0 0.0
        %2296 = vmatpush1.msra.mxu0 0.0
        %2297 = vmatprep.subr.mxu0 0.0
        %2298 = vmatpush1.msra.mxu0 0.0
        %2299 = vmatprep.subr.mxu0 0.0
        %2300 = vmatpush1.msra.mxu0 0.0
        %2301 = vmatprep.subr.mxu0 0.0
        %2302 = vmatpush1.msra.mxu0 0.0
        %2303 = vmatprep.subr.mxu0 0.0
        %2304 = vmatpush1.msra.mxu0 0.0
        %2305 = vmatprep.subr.mxu0 0.0
        %2306 = vmatpush1.msra.mxu0 0.0
        %2307 = vmatprep.subr.mxu0 0.0
        %2308 = vmatpush1.msra.mxu0 0.0
        %2309 = vmatprep.subr.mxu0 0.0
        %2310 = vmatpush1.msra.mxu0 0.0
        %2311 = vmatprep.subr.mxu0 0.0
        %2312 = vmatpush1.msra.mxu0 0.0
        %2313 = vmatprep.subr.mxu0 0.0
        %2314 = vmatpush1.msra.mxu0 0.0
        %2315 = vmatprep.subr.mxu0 0.0
        %2316 = vmatpush1.msra.mxu0 0.0
        %2317 = vmatprep.subr.mxu0 0.0
        %2318 = vmatpush1.msra.mxu0 0.0
        %2319 = vmatprep.subr.mxu0 0.0
        %2320 = vmatpush1.msra.mxu0 0.0
        %2321 = vmatprep.subr.mxu0 0.0
        %2322 = vmatpush1.msra.mxu0 0.0
        %2323 = vmatprep.subr.mxu0 0.0
        %2324 = vmatpush1.msra.mxu0 0.0
        %2325 = vmatprep.subr.mxu0 0.0
        %2326 = vmatpush1.msra.mxu0 0.0
        %2327 = vmatprep.mubr.f32.mxu0 0.0
        %2328 = vmatmul.mubr.f32.gmra.mrb[0].mxu0 %v2258
        %v2329 = vpop.f32.mrb[0].mxu0
        %v2330 = vadd.f32 0.0, %v2329
        %v2331 = vpop.f32.mrb[0].mxu0
        %2332 = vdwg.mxu0
        %v2333 = vsel %vm1726, %v2242, 0
        %v2336 = vsel %vm604, %v2248, 0
        %2338 = vmatprep.subr.mxu0 0.0
        %2339 = vmatpush1.msra.mxu0 %v2243
        %2340 = vmatprep.subr.mxu0 0.0
        %2341 = vmatpush1.msra.mxu0 %v2244
        %2342 = vmatprep.subr.mxu0 0.0
        %2343 = vmatpush1.msra.mxu0 %v2245
        %2344 = vmatprep.subr.mxu0 0.0
        %2345 = vmatpush1.msra.mxu0 %v2246
        %2346 = vmatprep.subr.mxu0 0.0
        %2347 = vmatpush1.msra.mxu0 %v2247
        %2348 = vmatprep.subr.mxu0 0.0
        %2349 = vmatpush1.msra.mxu0 %v2336
        %2350 = vmatprep.subr.mxu0 0.0
        %2351 = vmatpush1.msra.mxu0 0.0
        %2352 = vmatprep.subr.mxu0 0.0
        %2353 = vmatpush1.msra.mxu0 0.0
        %2354 = vmatprep.subr.mxu0 0.0
        %2355 = vmatpush1.msra.mxu0 0.0
        %2356 = vmatprep.subr.mxu0 0.0
        %2357 = vmatpush1.msra.mxu0 0.0
        %2358 = vmatprep.subr.mxu0 0.0
        %2359 = vmatpush1.msra.mxu0 0.0
        %2360 = vmatprep.subr.mxu0 0.0
        %2361 = vmatpush1.msra.mxu0 0.0
        %2362 = vmatprep.subr.mxu0 0.0
        %2363 = vmatpush1.msra.mxu0 0.0
        %2364 = vmatprep.subr.mxu0 0.0
        %2365 = vmatpush1.msra.mxu0 0.0
        %2366 = vmatprep.subr.mxu0 0.0
        %2367 = vmatpush1.msra.mxu0 0.0
        %2368 = vmatprep.subr.mxu0 0.0
        %2369 = vmatpush1.msra.mxu0 0.0
        %2370 = vmatprep.subr.mxu0 0.0
        %2371 = vmatpush1.msra.mxu0 0.0
        %2372 = vmatprep.subr.mxu0 0.0
        %2373 = vmatpush1.msra.mxu0 0.0
        %2374 = vmatprep.subr.mxu0 0.0
        %2375 = vmatpush1.msra.mxu0 0.0
        %2376 = vmatprep.subr.mxu0 0.0
        %2377 = vmatpush1.msra.mxu0 0.0
        %2378 = vmatprep.subr.mxu0 0.0
        %2379 = vmatpush1.msra.mxu0 0.0
        %2380 = vmatprep.subr.mxu0 0.0
        %2381 = vmatpush1.msra.mxu0 0.0
        %2382 = vmatprep.subr.mxu0 0.0
        %2383 = vmatpush1.msra.mxu0 0.0
        %2384 = vmatprep.subr.mxu0 0.0
        %2385 = vmatpush1.msra.mxu0 0.0
        %2386 = vmatprep.subr.mxu0 0.0
        %2387 = vmatpush1.msra.mxu0 0.0
        %2388 = vmatprep.subr.mxu0 0.0
        %2389 = vmatpush1.msra.mxu0 0.0
        %2390 = vmatprep.subr.mxu0 0.0
        %2391 = vmatpush1.msra.mxu0 0.0
        %2392 = vmatprep.subr.mxu0 0.0
        %2393 = vmatpush1.msra.mxu0 0.0
        %2394 = vmatprep.subr.mxu0 0.0
        %2395 = vmatpush1.msra.mxu0 0.0
        %2396 = vmatprep.subr.mxu0 0.0
        %2397 = vmatpush1.msra.mxu0 0.0
        %2398 = vmatprep.subr.mxu0 0.0
        %2399 = vmatpush1.msra.mxu0 0.0
        %2400 = vmatprep.subr.mxu0 0.0
        %2401 = vmatpush1.msra.mxu0 0.0
        %2402 = vmatprep.mubr.f32.mxu0 0.0
        %2403 = vmatmul.mubr.f32.gmra.mrb[0].mxu0 %v2333
        %v2404 = vpop.f32.mrb[0].mxu0
        %v2405 = vadd.f32 %v2330, %v2404
        %v2406 = vpop.f32.mrb[0].mxu0
        %2407 = vdwg.mxu0
        %s2408 = scalar_lea.vmem [#allocation12], 96
        %v2409 = vld [vmem:[%s2408] sm:$0xff]
        %v2410 = vld [vmem:[%s2408 + $0x8] sm:$0xff]
        %v2411 = vld [vmem:[%s2408 + $0x10] sm:$0xff]
        %v2412 = vld [vmem:[%s2408 + $0x18] sm:$0xff]
        %v2413 = vld [vmem:[%s2408 + $0x20] sm:$0xff]
        %v2414 = vld [vmem:[%s2408 + $0x28] sm:$0x3]
        %v2415 = vrot.slane %v2242, 2
        %v2416 = vsel %vm612, %v2415, %v779
        %v2417 = vsel %vm1726, %v2416, 0
        %v2420 = vsel %vm604, %v2414, 0
        %2422 = vmatprep.subr.mxu0 0.0
        %2423 = vmatpush1.msra.mxu0 %v2409
        %2424 = vmatprep.subr.mxu0 0.0
        %2425 = vmatpush1.msra.mxu0 %v2410
        %2426 = vmatprep.subr.mxu0 0.0
        %2427 = vmatpush1.msra.mxu0 %v2411
        %2428 = vmatprep.subr.mxu0 0.0
        %2429 = vmatpush1.msra.mxu0 %v2412
        %2430 = vmatprep.subr.mxu0 0.0
        %2431 = vmatpush1.msra.mxu0 %v2413
        %2432 = vmatprep.subr.mxu0 0.0
        %2433 = vmatpush1.msra.mxu0 %v2420
        %2434 = vmatprep.subr.mxu0 0.0
        %2435 = vmatpush1.msra.mxu0 0.0
        %2436 = vmatprep.subr.mxu0 0.0
        %2437 = vmatpush1.msra.mxu0 0.0
        %2438 = vmatprep.subr.mxu0 0.0
        %2439 = vmatpush1.msra.mxu0 0.0
        %2440 = vmatprep.subr.mxu0 0.0
        %2441 = vmatpush1.msra.mxu0 0.0
        %2442 = vmatprep.subr.mxu0 0.0
        %2443 = vmatpush1.msra.mxu0 0.0
        %2444 = vmatprep.subr.mxu0 0.0
        %2445 = vmatpush1.msra.mxu0 0.0
        %2446 = vmatprep.subr.mxu0 0.0
        %2447 = vmatpush1.msra.mxu0 0.0
        %2448 = vmatprep.subr.mxu0 0.0
        %2449 = vmatpush1.msra.mxu0 0.0
        %2450 = vmatprep.subr.mxu0 0.0
        %2451 = vmatpush1.msra.mxu0 0.0
        %2452 = vmatprep.subr.mxu0 0.0
        %2453 = vmatpush1.msra.mxu0 0.0
        %2454 = vmatprep.subr.mxu0 0.0
        %2455 = vmatpush1.msra.mxu0 0.0
        %2456 = vmatprep.subr.mxu0 0.0
        %2457 = vmatpush1.msra.mxu0 0.0
        %2458 = vmatprep.subr.mxu0 0.0
        %2459 = vmatpush1.msra.mxu0 0.0
        %2460 = vmatprep.subr.mxu0 0.0
        %2461 = vmatpush1.msra.mxu0 0.0
        %2462 = vmatprep.subr.mxu0 0.0
        %2463 = vmatpush1.msra.mxu0 0.0
        %2464 = vmatprep.subr.mxu0 0.0
        %2465 = vmatpush1.msra.mxu0 0.0
        %2466 = vmatprep.subr.mxu0 0.0
        %2467 = vmatpush1.msra.mxu0 0.0
        %2468 = vmatprep.subr.mxu0 0.0
        %2469 = vmatpush1.msra.mxu0 0.0
        %2470 = vmatprep.subr.mxu0 0.0
        %2471 = vmatpush1.msra.mxu0 0.0
        %2472 = vmatprep.subr.mxu0 0.0
        %2473 = vmatpush1.msra.mxu0 0.0
        %2474 = vmatprep.subr.mxu0 0.0
        %2475 = vmatpush1.msra.mxu0 0.0
        %2476 = vmatprep.subr.mxu0 0.0
        %2477 = vmatpush1.msra.mxu0 0.0
        %2478 = vmatprep.subr.mxu0 0.0
        %2479 = vmatpush1.msra.mxu0 0.0
        %2480 = vmatprep.subr.mxu0 0.0
        %2481 = vmatpush1.msra.mxu0 0.0
        %2482 = vmatprep.subr.mxu0 0.0
        %2483 = vmatpush1.msra.mxu0 0.0
        %2484 = vmatprep.subr.mxu0 0.0
        %2485 = vmatpush1.msra.mxu0 0.0
        %2486 = vmatprep.mubr.f32.mxu0 0.0
        %2487 = vmatmul.mubr.f32.gmra.mrb[0].mxu0 %v2417
        %v2488 = vpop.f32.mrb[0].mxu0
        %v2489 = vadd.f32 0.0, %v2488
        %v2490 = vpop.f32.mrb[0].mxu0
        %2491 = vdwg.mxu0
        %v2492 = vadd.f32 %v2405, %v2489
        %v2493 = vld [vmem:[%s14] sm:$0x1]
        %v2495 = vlaneseq
        %v2496 = vshrl.u32 %v2495, 7
        %v2497 = vsub.s32 0, %v2496
        %v2498 = vrot.slane %v2493, %v2497
        %v2500 = vadd.f32 %v2492, %v2498
        %v2501 = vsub.f32 0.0, %v2500
        %v2502 = vmul.f32 %v2501, 1.442695
        %v2503 = vpow.pop %v2502
        %v2504 = vadd.f32 %v2503, 1.0
        %v2505 = vrcp.pop %v2504
        %v2506 = vmul.f32 1.0, %v2505
        %vm2507 = vcmask 169984
        %2508 = vst.msk [vmem:[%s591] sm:$0x7f] %vm2507, %v2506
        %p2509 = scmp.lt.s32.totalorder %s30, 1
        %s2510 = scalar_select %p2509, %s30, 1
        %s2511 = smul.addr %s2510, 8
        %s2512 = scalar_lea.vmem %s15, %s2511
        // Predicated region
        $region109: #{_lambda_.1} parent=79 // pred_check
          %p2513 = pneg %p368
        $region110: #{_lambda_.1} parent=79 // pred_check_branch
          %2515 = sbr.rel (%p2513) target = $region112
        $region111: #{_lambda_.1} parent=79 // pred_region
          _
        $region112: #{_lambda_.1} parent=79 // pred_fallthru
          _
      $region80: #{_lambda_.1} parent=5 // pred_fallthru
        _
      %p2516 = scmp.le.s32.totalorder 2, %s25
      // Predicated region
      $region113: #{_lambda_.1} parent=5 // pred_check
        %p2517 = pneg %p2516
      $region114: #{_lambda_.1} parent=5 // pred_check_branch
        %2519 = sbr.rel (%p2517) target = $region116
      $region115: #{_lambda_.1} parent=5 // pred_region
        %s2520 = ssub.s32 %s25, 2
        // Predicated region
        $region117: #{_lambda_.1} parent=115 // pred_check
          %p2521 = pneg %p374
        $region118: #{_lambda_.1} parent=115 // pred_check_branch
          %2523 = sbr.rel (%p2521) target = $region120
        $region119: #{_lambda_.1} parent=115 // pred_region
          %p2524 = scmp.lt.s32.totalorder %s31, 1
          %s2525 = scalar_select %p2524, %s31, 1
          %s2526 = smul.addr %s2525, 8
          %s2527 = scalar_lea.vmem %s15, %s2526
        $region120: #{_lambda_.1} parent=115 // pred_fallthru
          _
      $region116: #{_lambda_.1} parent=5 // pred_fallthru
        _
    $region6: #{_lambda_.1} parent=1 // loop_footer
      %s29 = sadd.s32 1, %s25
    $region7: #{_lambda_.1} parent=1 // loop_footer_branch
      %24 = sbr.rel target = $region3
    $region8: #{_lambda_.1} parent=1 // loop_exit
      _
    %2528 = vsyncpa [#allocation3], 1
    %s2529 = scalar_lea.sflag [#allocation3], 1
    %2530 = vsyncpa %s2529, 1
    %2531 = vsyncpa [#allocation5], 1
    %2532 = vsyncpa [#allocation8], 1
    %2533 = vsyncpa [#allocation11], 1

</llo_original>
